<compile_context>
chip_gen: v7x
topology: tpu7x:2x2x1
jax: 0.10.0
libtpu: 0.0.40
codegen_flags: <defaults>
</compile_context>

<pallas_src>
import jax
import jax.numpy as jnp
from jax.experimental import pallas as pl
from jax.experimental.pallas import tpu as pltpu


def _logreg_kernel(x_ref, w_ref, b_ref, o_ref):
    # x_ref: (TILE_B, D) VMEM block (streamed over the batch grid axis)
    # w_ref: (D, 1)      VMEM, resident across grid steps (constant index_map)
    # b_ref: (1, 1)      SMEM scalar
    # o_ref: (TILE_B, 1) VMEM output block
    z = jnp.dot(x_ref[...], w_ref[...], preferred_element_type=jnp.float32)
    z = z + b_ref[0, 0]                                   # scalar bias, VPU broadcast
    o_ref[...] = jax.nn.sigmoid(z).astype(o_ref.dtype)    # logistic -> EUP slot


def _pick_tile_b(B, tile_b_max=8192, min_grid=4):
    """Fat tiles to amortize per-step overhead, but keep >= min_grid steps so
    v7x's 2 TCs each see >=2 tiles and the double buffer stays busy."""
    if B <= tile_b_max * min_grid:
        tile = max(512, pl.cdiv(B, min_grid))
    else:
        tile = tile_b_max
    tile = min(tile, B)
    if tile < B:
        tile = max(8, (tile // 8) * 8)   # sublane alignment unless full-batch block
    return tile


def _logreg_pallas(x, w, b, *, tile_b=None, core_parallel=False):
    """x: (B, D) f32/bf16; w: (1, D) (PyTorch nn.Linear weight); b: (1,)."""
    x = jnp.asarray(x)
    B, D = x.shape
    # Weight is tiny: cast to x's dtype (cheap) and hold as a (D, 1) column.
    w_col = jnp.reshape(jnp.asarray(w), (1, D)).astype(x.dtype).T
    b_smem = jnp.reshape(jnp.asarray(b, jnp.float32), (1, 1))    # scalar for SMEM

    if tile_b is None:
        tile_b = _pick_tile_b(B)
    # A block equal to the full batch is exempt from the 8-sublane rule;
    # otherwise keep the tile a multiple of 8.
    if tile_b >= B:
        tile_b = B
    else:
        tile_b = max(8, (tile_b // 8) * 8)
    grid = (pl.cdiv(B, tile_b),)              # partial last block handled by Pallas

    # Advisory cost: lane-padded HBM footprint (D=32 pads to 128 lanes in HBM,
    # the (B,1) output is lane-padded to 128 as well).
    x_item = jnp.dtype(x.dtype).itemsize
    cost = pl.CostEstimate(
        flops=2 * B * D,
        transcendentals=B,
        bytes_accessed=B * 128 * x_item + B * 128 * x_item + 128 * x_item,
    )

    # "parallel" is codegen-neutral; CORE_PARALLEL actually splits the batch grid
    # across v7x's two TensorCores (harmless to leave off on v5e/v6e).
    semantics = (pltpu.CORE_PARALLEL,) if core_parallel else ("parallel",)

    return pl.pallas_call(
        _logreg_kernel,
        out_shape=jax.ShapeDtypeStruct((B, 1), x.dtype),
        grid_spec=pltpu.PrefetchScalarGridSpec(
            num_scalar_prefetch=0,
            grid=grid,
            in_specs=[
                # Stream batch tiles of x (double-buffered prefetch/compute/writeback).
                pl.BlockSpec((tile_b, D), lambda i: (i, 0)),
                # Weight: same block every step -> stays resident in VMEM.
                pl.BlockSpec((D, 1), lambda i: (0, 0)),
                # Bias: whole (1,1) array in SMEM, read as a scalar.
                pl.BlockSpec(memory_space=pltpu.MemorySpace.SMEM),
            ],
            out_specs=pl.BlockSpec((tile_b, 1), lambda i: (i, 0)),
        ),
        compiler_params=pltpu.CompilerParams(
            dimension_semantics=semantics,
            # Explicit budget: ~16-17 MiB actually used at tile_b=8192 f32.
            # Needed on v5e (16 MiB default scoped VMEM); safe on v6e/v7x.
            vmem_limit_bytes=32 * 1024 * 1024,
        ),
        cost_estimate=cost,
    )(x, w_col, b_smem)


def logistic_regression(x, w, b, *, tile_b=None, min_pallas_batch=8192,
                        core_parallel=False):
    """Forward pass of LogisticRegression. Dispatches small batches to plain XLA
    (at B ~< 8K the whole op is a few MiB of HBM reads, and pallas_call launch
    plus per-step overhead makes the kernel at best break-even with fused XLA)."""
    B = x.shape[0]
    if B < min_pallas_batch:
        xf = jnp.asarray(x)
        wf = jnp.asarray(w).astype(xf.dtype)
        bf = jnp.asarray(b, jnp.float32)
        z = jnp.dot(xf, wf.T, preferred_element_type=jnp.float32) + bf
        return jax.nn.sigmoid(z).astype(xf.dtype)
    return _logreg_pallas(x, w, b, tile_b=tile_b, core_parallel=core_parallel)


if __name__ == "__main__":
    key = jax.random.PRNGKey(0)
    kx, kw, kb = jax.random.split(key, 3)

    input_dim = 32
    batch = 8192          # exercises the batch-tiled pipeline (tile_b=2048 -> grid=4)

    x = jax.random.normal(kx, (batch, input_dim), dtype=jnp.float32)

    # Deterministic init mimicking nn.Linear default: U(-1/sqrt(D), 1/sqrt(D))
    bound = 1.0 / jnp.sqrt(jnp.float32(input_dim))
    w = jax.random.uniform(kw, (1, input_dim), minval=-bound, maxval=bound,
                           dtype=jnp.float32)          # PyTorch weight shape (out, in)
    b = jax.random.uniform(kb, (1,), minval=-bound, maxval=bound, dtype=jnp.float32)

    def ref_fn(xx):
        return jax.nn.sigmoid(xx @ w.T + b)

    # 1) Main path: Pallas kernel (B=8192 >= min_pallas_batch -> auto tile 2048, grid 4).
    out = jax.block_until_ready(logistic_regression(x, w, b))
    assert out.shape == (batch, 1)
    assert jnp.allclose(out, ref_fn(x), atol=1e-5, rtol=1e-5), "mismatch vs reference"

    # 2) Ragged batch (not a multiple of the tile) exercises the partial-last-block path.
    x_ragged = x[:2100]
    out_r = jax.block_until_ready(_logreg_pallas(x_ragged, w, b, tile_b=512))
    assert out_r.shape == (2100, 1)
    assert jnp.allclose(out_r, ref_fn(x_ragged), atol=1e-5, rtol=1e-5), "ragged mismatch"

    # 3) bf16 passthrough (halves HBM read traffic); f32 accumulation inside the kernel.
    x_bf16 = x.astype(jnp.bfloat16)
    out_bf = jax.block_until_ready(_logreg_pallas(x_bf16, w, b))
    assert out_bf.dtype == jnp.bfloat16 and out_bf.shape == (batch, 1)
    assert jnp.allclose(out_bf.astype(jnp.float32), ref_fn(x), atol=1e-2, rtol=1e-2), \
        "bf16 mismatch"

    # 4) Tiny batch dispatches to plain fused XLA (kernel overhead not worth it there).
    out_t = jax.block_until_ready(logistic_regression(x[:8], w, b))
    assert jnp.allclose(out_t, ref_fn(x[:8]), atol=1e-5, rtol=1e-5), "tiny-batch mismatch"

    print("KERNEL_OK")
</pallas_src>

<mosaic_0001>
module attributes {stable_mosaic.version = 11 : i64} {
  func.func @_logreg_kernel(%arg0: i32, %arg1: memref<2048x32xf32, #tpu.memory_space<vmem>>, %arg2: memref<32x1xf32, #tpu.memory_space<vmem>>, %arg3: memref<1x1xf32, #tpu.memory_space<smem>>, %arg4: memref<2048x1xf32, #tpu.memory_space<vmem>>) attributes {dimension_semantics = [#tpu.dimension_semantics<parallel>], iteration_bounds = array<i64: 4>, scalar_prefetch = 0 : i64, scratch_operands = 0 : i64, tpu.core_type = #tpu.core_type<tc>, window_params = [{transform_indices = @transform_0, window_bounds = array<i64: 2048, 32>}, {pipeline_mode = #tpu.pipeline_mode<synchronous>, transform_indices = @transform_1, window_bounds = array<i64: 32, 1>}, {transform_indices = @transform_2, window_bounds = array<i64: 1, 1>}, {transform_indices = @transform_3, window_bounds = array<i64: 2048, 1>}]} {
    %c0 = arith.constant 0 : index
    %c0_0 = arith.constant 0 : index
    %0 = vector.load %arg1[%c0, %c0_0] : memref<2048x32xf32, #tpu.memory_space<vmem>>, vector<2048x32xf32>
    %c0_1 = arith.constant 0 : index
    %c0_2 = arith.constant 0 : index
    %1 = vector.load %arg2[%c0_1, %c0_2] : memref<32x1xf32, #tpu.memory_space<vmem>>, vector<32x1xf32>
    %cst = arith.constant dense<0.000000e+00> : vector<2048x1xf32>
    %2 = tpu.matmul %0, %1, %cst {dimension_numbers = #tpu.dot_dimension_numbers<[1], [0], [0], [1], [0, 0, 1, 1], [], []>} : vector<2048x32xf32>, vector<32x1xf32>, vector<2048x1xf32> -> vector<2048x1xf32>
    %c0_3 = arith.constant 0 : index
    %c0_4 = arith.constant 0 : index
    %3 = memref.load %arg3[%c0_3, %c0_4] : memref<1x1xf32, #tpu.memory_space<smem>>
    %4 = vector.broadcast %3 : f32 to vector<2048x1xf32>
    %5 = arith.addf %2, %4 : vector<2048x1xf32>
    %6 = arith.negf %5 : vector<2048x1xf32>
    %7 = math.exp %6 : vector<2048x1xf32>
    %cst_5 = arith.constant 1.000000e+00 : f32
    %8 = vector.broadcast %cst_5 : f32 to vector<2048x1xf32>
    %9 = arith.addf %8, %7 : vector<2048x1xf32>
    %10 = arith.divf %8, %9 : vector<2048x1xf32>
    %c0_6 = arith.constant 0 : index
    %c0_7 = arith.constant 0 : index
    %11 = vector.load %arg4[%c0_6, %c0_7] : memref<2048x1xf32, #tpu.memory_space<vmem>>, vector<2048x1xf32>
    tpu.vector_store %arg4[%c0_6, %c0_7], %10 {strides = array<i32>} : memref<2048x1xf32, #tpu.memory_space<vmem>>, vector<2048x1xf32>,
    return
  }
  func.func @transform_0(%arg0: i32) -> (i32, i32) {
    %c0_i32 = arith.constant 0 : i32
    %c0_i32_0 = arith.constant 0 : i32
    return %arg0, %c0_i32 : i32, i32
  }
  func.func @transform_1(%arg0: i32) -> (i32, i32) {
    %c0_i32 = arith.constant 0 : i32
    %c0_i32_0 = arith.constant 0 : i32
    %c0_i32_1 = arith.constant 0 : i32
    return %c0_i32, %c0_i32_0 : i32, i32
  }
  func.func @transform_2(%arg0: i32) -> (i32, i32) {
    %c0_i32 = arith.constant 0 : i32
    %c0_i32_0 = arith.constant 0 : i32
    %c0_i32_1 = arith.constant 0 : i32
    return %c0_i32, %c0_i32_0 : i32, i32
  }
  func.func @transform_3(%arg0: i32) -> (i32, i32) {
    %c0_i32 = arith.constant 0 : i32
    %c0_i32_0 = arith.constant 0 : i32
    return %arg0, %c0_i32 : i32, i32
  }
}

</mosaic_0001>

<llo_original>
// kernel: tpu_custom_call.1
$region0: #{tpu_custom_call.1}
  #allocation0 [shape = 'u32[]', space=smem, size = 0x4, offset = 0x4, fixed_abs, tag = 'smem constant byte address 0x4 - core index']
  #allocation1 [shape = 'u32[144,128]{1,0:T(1,128)}', space=vmem, size = 0x12000, scoped, tag = 'internal scratch']
  #allocation2 [shape = 'f32[1,1]{1,0:T(1,128)S(6)}', space=smem, size = 0x200, scoped, tag = 'scoped memory for tpu_custom_call.1']
  %s0 = inlined_call_operand.vmem [shape: f32[8192,32], index: 0, kind: input, shape index: {}]
  %s1 = inlined_call_operand.vmem [shape: f32[32,1], index: 1, kind: input, shape index: {}]
  %s2 = inlined_call_operand.<no memory space> [shape: f32[1,1], index: 2, kind: input, shape index: {}]
  %s3 = inlined_call_operand.vmem [shape: f32[8192,1], index: 3, kind: output, shape index: {}]
  %s4 = sld [smem:[#allocation0]]
  $region45: #{tpu_custom_call.1} parent=0
    _
  %s6 = ssub.s32 1, %s4
  %s7 = scalar_select 0, %s6, %s4
  %8 = sst [smem:[#allocation2]] %s2
  loop: start=0, step=1, limit=6
  $region2: #{tpu_custom_call.1} parent=0 // loop_pre_header
    _
  $region3: #{tpu_custom_call.1} parent=0 // loop_header
    %s10 = sphi 0, %s14
    %p11 = scmp.ge.s32.totalorder %s10, 6
    %s20 = sphi 0, %s22
    %s23 = sphi 0, %s20
    %s24 = sphi 0, %s23
    %s40 = sphi 0, %s24
    %s44 = sphi 0, %s44
    %s46 = sphi 0, %s44
    %s47 = sphi 0, %s46
    %s61 = sphi 0, %s47
    %s65 = sphi 0, %s65
    %s67 = sphi 0, %s65
    %s68 = sphi 0, %s67
    %s82 = sphi 0, %s68
    %s88 = sphi 0, %s90
    %s91 = sphi 0, %s88
    %s92 = sphi 0, %s91
    %s108 = sphi 0, %s92
  $region4: #{tpu_custom_call.1} parent=0 // loop_header_branch
    %13 = sbr.rel (%p11) target = $region8
  $region5: #{tpu_custom_call.1} parent=0 // loop_body
    %s15 = ssub.s32 %s10, 1
    %s16 = ssub.s32 %s10, 2
    %s17 = sadd.s32 %s10, 1
    %s18 = ssub.s32 %s10, %s17
    %p19 = scmp.eq.s32.totalorder %s18, 0
    %s21 = sadd.s32 %s20, 1
    %s22 = scalar_select %p19, %s20, %s21
    %p25 = pneg %p19
    %p26 = scmp.eq.s32.totalorder %s10, 3
    %p27 = por %p25, %p26
    %p28 = scmp.ne.s32.totalorder %s20, %s23
    %p29 = scmp.eq.s32.totalorder %s10, 0
    %p30 = por %p28, %p29
    %p31 = scmp.ne.s32.totalorder %s20, %s23
    %p32 = scmp.eq.s32.totalorder %s15, 3
    %p33 = por %p31, %p32
    %p34 = scmp.ne.s32.totalorder %s23, %s24
    %p35 = scmp.eq.s32.totalorder %s15, 0
    %p36 = por %p34, %p35
    %p37 = scmp.ne.s32.totalorder %s23, %s24
    %p38 = scmp.eq.s32.totalorder %s16, 3
    %p39 = por %p37, %p38
    %p41 = scmp.ne.s32.totalorder %s24, %s40
    %p42 = scmp.eq.s32.totalorder %s16, 0
    %p43 = por %p41, %p42
    %s45 = sadd.s32 %s44, 1
    %p48 = scmp.eq.s32.totalorder %s10, 3
    %p49 = scmp.ne.s32.totalorder %s44, %s46
    %p50 = scmp.eq.s32.totalorder %s10, 0
    %p51 = por %p49, %p50
    %p52 = scmp.ne.s32.totalorder %s44, %s46
    %p53 = scmp.eq.s32.totalorder %s15, 3
    %p54 = por %p52, %p53
    %p55 = scmp.ne.s32.totalorder %s46, %s47
    %p56 = scmp.eq.s32.totalorder %s15, 0
    %p57 = por %p55, %p56
    %p58 = scmp.ne.s32.totalorder %s46, %s47
    %p59 = scmp.eq.s32.totalorder %s16, 3
    %p60 = por %p58, %p59
    %p62 = scmp.ne.s32.totalorder %s47, %s61
    %p63 = scmp.eq.s32.totalorder %s16, 0
    %p64 = por %p62, %p63
    %s66 = sadd.s32 %s65, 1
    %p69 = scmp.eq.s32.totalorder %s10, 3
    %p70 = scmp.ne.s32.totalorder %s65, %s67
    %p71 = scmp.eq.s32.totalorder %s10, 0
    %p72 = por %p70, %p71
    %p73 = scmp.ne.s32.totalorder %s65, %s67
    %p74 = scmp.eq.s32.totalorder %s15, 3
    %p75 = por %p73, %p74
    %p76 = scmp.ne.s32.totalorder %s67, %s68
    %p77 = scmp.eq.s32.totalorder %s15, 0
    %p78 = por %p76, %p77
    %p79 = scmp.ne.s32.totalorder %s67, %s68
    %p80 = scmp.eq.s32.totalorder %s16, 3
    %p81 = por %p79, %p80
    %p83 = scmp.ne.s32.totalorder %s68, %s82
    %p84 = scmp.eq.s32.totalorder %s16, 0
    %p85 = por %p83, %p84
    %s86 = ssub.s32 %s10, %s17
    %p87 = scmp.eq.s32.totalorder %s86, 0
    %s89 = sadd.s32 %s88, 1
    %s90 = scalar_select %p87, %s88, %s89
    %p93 = pneg %p87
    %p94 = scmp.eq.s32.totalorder %s10, 3
    %p95 = por %p93, %p94
    %p96 = scmp.ne.s32.totalorder %s88, %s91
    %p97 = scmp.eq.s32.totalorder %s10, 0
    %p98 = por %p96, %p97
    %p99 = scmp.ne.s32.totalorder %s88, %s91
    %p100 = scmp.eq.s32.totalorder %s15, 3
    %p101 = por %p99, %p100
    %p102 = scmp.ne.s32.totalorder %s91, %s92
    %p103 = scmp.eq.s32.totalorder %s15, 0
    %p104 = por %p102, %p103
    %p105 = scmp.ne.s32.totalorder %s91, %s92
    %p106 = scmp.eq.s32.totalorder %s16, 3
    %p107 = por %p105, %p106
    %p109 = scmp.ne.s32.totalorder %s92, %s108
    %p110 = scmp.eq.s32.totalorder %s16, 0
    %p111 = por %p109, %p110
    %p112 = scmp.le.s32.totalorder 1, %s10
    %p113 = scmp.lt.s32.totalorder %s10, 5
    %p114 = pnand %p112, %p113
    %p115 = pneg %p114
    // Predicated region
    $region9: #{tpu_custom_call.1} parent=5 // pred_check
      _
    $region10: #{tpu_custom_call.1} parent=5 // pred_check_branch
      %117 = sbr.rel (%p114) target = $region12
    $region11: #{tpu_custom_call.1} parent=5 // pred_region
      %s118 = ssub.s32 %s10, 1
      // Predicated region
      $region13: #{tpu_custom_call.1} parent=11 // pred_check
        %p119 = pneg %p57
      $region14: #{tpu_custom_call.1} parent=11 // pred_check_branch
        %121 = sbr.rel (%p119) target = $region16
      $region15: #{tpu_custom_call.1} parent=11 // pred_region
        _
      $region16: #{tpu_custom_call.1} parent=11 // pred_fallthru
        _
      // Predicated region
      $region17: #{tpu_custom_call.1} parent=11 // pred_check
        %p122 = pneg %p78
      $region18: #{tpu_custom_call.1} parent=11 // pred_check_branch
        %124 = sbr.rel (%p122) target = $region20
      $region19: #{tpu_custom_call.1} parent=11 // pred_region
        _
      $region20: #{tpu_custom_call.1} parent=11 // pred_fallthru
        _
    $region12: #{tpu_custom_call.1} parent=5 // pred_fallthru
      _
    %p125 = scmp.lt.s32.totalorder %s10, 4
    // Predicated region
    $region21: #{tpu_custom_call.1} parent=5 // pred_check
      %p126 = pneg %p125
    $region22: #{tpu_custom_call.1} parent=5 // pred_check_branch
      %128 = sbr.rel (%p126) target = $region24
    $region23: #{tpu_custom_call.1} parent=5 // pred_region
      // Predicated region
      $region25: #{tpu_custom_call.1} parent=23 // pred_check
        %p129 = pneg %p30
      $region26: #{tpu_custom_call.1} parent=23 // pred_check_branch
        %131 = sbr.rel (%p129) target = $region28
      $region27: #{tpu_custom_call.1} parent=23 // pred_region
        %s132 = smul.u32 256, %s10
        %p133 = scmp.lt.s32.totalorder %s132, 1023
        %s134 = scalar_select %p133, %s132, 1023
        %s135 = smul.addr %s134, 8
        %s136 = scalar_lea.vmem %s0, %s135
        %s137 = smul.u32 256, %s10
      $region28: #{tpu_custom_call.1} parent=23 // pred_fallthru
        _
    $region24: #{tpu_custom_call.1} parent=5 // pred_fallthru
      _
    %p138 = scmp.le.s32.totalorder 1, %s10
    %p139 = scmp.lt.s32.totalorder %s10, 5
    %p140 = pnand %p138, %p139
    %p141 = pneg %p140
    // Predicated region
    $region29: #{tpu_custom_call.1} parent=5 // pred_check
      _
    $region30: #{tpu_custom_call.1} parent=5 // pred_check_branch
      %143 = sbr.rel (%p140) target = $region32
    $region31: #{tpu_custom_call.1} parent=5 // pred_region
      %s144 = ssub.s32 %s10, 1
      %s145 = smul.u32 256, %s15
      %p146 = scmp.lt.s32.totalorder %s145, 1023
      %s147 = scalar_select %p146, %s145, 1023
      %s148 = smul.addr %s147, 8
      %s149 = scalar_lea.vmem %s0, %s148
      %p150 = pneg %p36
      %p151 = pneg %p33
      %p152 = pneg %p57
      %p153 = pneg %p54
      %p154 = pneg %p78
      %p155 = pneg %p75
      %p156 = pneg %p104
      %p157 = pneg %p101
      %s158 = smul.u32 256, %s15
      %p159 = scmp.lt.s32.totalorder %s158, 1023
      %s160 = scalar_select %p159, %s158, 1023
      %s161 = smul.addr %s160, 8
      %s162 = scalar_lea.vmem %s3, %s161
      %s163 = smul.u32 256, %s15
      %p164 = scmp.lt.s32.totalorder %s163, 1023
      %s165 = scalar_select %p164, %s163, 1023
      %s166 = smul.addr %s165, 8
      %s167 = scalar_lea.vmem %s0, %s166
      %s168 = smul.u32 256, %s15
      %s169 = smul.u32 256, %s15
      %p170 = scmp.lt.s32.totalorder %s169, 1023
      %s171 = scalar_select %p170, %s169, 1023
      %s172 = smul.addr %s171, 8
      %s173 = scalar_lea.vmem %s3, %s172
      %s174 = smul.u32 256, %s15
      %v175 = vld [vmem:[%s167] sm:$0xff]
      %v176 = vld [vmem:[%s167 + $0x8] sm:$0xff]
      %v177 = vld [vmem:[%s167 + $0x10] sm:$0xff]
      %v178 = vld [vmem:[%s167 + $0x18] sm:$0xff]
      %v179 = vld [vmem:[%s167 + $0x20] sm:$0xff]
      %v180 = vld [vmem:[%s167 + $0x28] sm:$0xff]
      %v181 = vld [vmem:[%s167 + $0x30] sm:$0xff]
      %v182 = vld [vmem:[%s167 + $0x38] sm:$0xff]
      %v183 = vld [vmem:[%s167 + $0x40] sm:$0xff]
      %v184 = vld [vmem:[%s167 + $0x48] sm:$0xff]
      %v185 = vld [vmem:[%s167 + $0x50] sm:$0xff]
      %v186 = vld [vmem:[%s167 + $0x58] sm:$0xff]
      %v187 = vld [vmem:[%s167 + $0x60] sm:$0xff]
      %v188 = vld [vmem:[%s167 + $0x68] sm:$0xff]
      %v189 = vld [vmem:[%s167 + $0x70] sm:$0xff]
      %v190 = vld [vmem:[%s167 + $0x78] sm:$0xff]
      %v191 = vld [vmem:[%s167 + $0x80] sm:$0xff]
      %v192 = vld [vmem:[%s167 + $0x88] sm:$0xff]
      %v193 = vld [vmem:[%s167 + $0x90] sm:$0xff]
      %v194 = vld [vmem:[%s167 + $0x98] sm:$0xff]
      %v195 = vld [vmem:[%s167 + $0xa0] sm:$0xff]
      %v196 = vld [vmem:[%s167 + $0xa8] sm:$0xff]
      %v197 = vld [vmem:[%s167 + $0xb0] sm:$0xff]
      %v198 = vld [vmem:[%s167 + $0xb8] sm:$0xff]
      %v199 = vld [vmem:[%s167 + $0xc0] sm:$0xff]
      %v200 = vld [vmem:[%s167 + $0xc8] sm:$0xff]
      %v201 = vld [vmem:[%s167 + $0xd0] sm:$0xff]
      %v202 = vld [vmem:[%s167 + $0xd8] sm:$0xff]
      %v203 = vld [vmem:[%s167 + $0xe0] sm:$0xff]
      %v204 = vld [vmem:[%s167 + $0xe8] sm:$0xff]
      %v205 = vld [vmem:[%s167 + $0xf0] sm:$0xff]
      %v206 = vld [vmem:[%s167 + $0xf8] sm:$0xff]
      %v207 = vld [vmem:[%s167 + $0x100] sm:$0xff]
      %v208 = vld [vmem:[%s167 + $0x108] sm:$0xff]
      %v209 = vld [vmem:[%s167 + $0x110] sm:$0xff]
      %v210 = vld [vmem:[%s167 + $0x118] sm:$0xff]
      %v211 = vld [vmem:[%s167 + $0x120] sm:$0xff]
      %v212 = vld [vmem:[%s167 + $0x128] sm:$0xff]
      %v213 = vld [vmem:[%s167 + $0x130] sm:$0xff]
      %v214 = vld [vmem:[%s167 + $0x138] sm:$0xff]
      %v215 = vld [vmem:[%s167 + $0x140] sm:$0xff]
      %v216 = vld [vmem:[%s167 + $0x148] sm:$0xff]
      %v217 = vld [vmem:[%s167 + $0x150] sm:$0xff]
      %v218 = vld [vmem:[%s167 + $0x158] sm:$0xff]
      %v219 = vld [vmem:[%s167 + $0x160] sm:$0xff]
      %v220 = vld [vmem:[%s167 + $0x168] sm:$0xff]
      %v221 = vld [vmem:[%s167 + $0x170] sm:$0xff]
      %v222 = vld [vmem:[%s167 + $0x178] sm:$0xff]
      %v223 = vld [vmem:[%s167 + $0x180] sm:$0xff]
      %v224 = vld [vmem:[%s167 + $0x188] sm:$0xff]
      %v225 = vld [vmem:[%s167 + $0x190] sm:$0xff]
      %v226 = vld [vmem:[%s167 + $0x198] sm:$0xff]
      %v227 = vld [vmem:[%s167 + $0x1a0] sm:$0xff]
      %v228 = vld [vmem:[%s167 + $0x1a8] sm:$0xff]
      %v229 = vld [vmem:[%s167 + $0x1b0] sm:$0xff]
      %v230 = vld [vmem:[%s167 + $0x1b8] sm:$0xff]
      %v231 = vld [vmem:[%s167 + $0x1c0] sm:$0xff]
      %v232 = vld [vmem:[%s167 + $0x1c8] sm:$0xff]
      %v233 = vld [vmem:[%s167 + $0x1d0] sm:$0xff]
      %v234 = vld [vmem:[%s167 + $0x1d8] sm:$0xff]
      %v235 = vld [vmem:[%s167 + $0x1e0] sm:$0xff]
      %v236 = vld [vmem:[%s167 + $0x1e8] sm:$0xff]
      %v237 = vld [vmem:[%s167 + $0x1f0] sm:$0xff]
      %v238 = vld [vmem:[%s167 + $0x1f8] sm:$0xff]
      %v239 = vld [vmem:[%s167 + $0x200] sm:$0xff]
      %v240 = vld [vmem:[%s167 + $0x208] sm:$0xff]
      %v241 = vld [vmem:[%s167 + $0x210] sm:$0xff]
      %v242 = vld [vmem:[%s167 + $0x218] sm:$0xff]
      %v243 = vld [vmem:[%s167 + $0x220] sm:$0xff]
      %v244 = vld [vmem:[%s167 + $0x228] sm:$0xff]
      %v245 = vld [vmem:[%s167 + $0x230] sm:$0xff]
      %v246 = vld [vmem:[%s167 + $0x238] sm:$0xff]
      %v247 = vld [vmem:[%s167 + $0x240] sm:$0xff]
      %v248 = vld [vmem:[%s167 + $0x248] sm:$0xff]
      %v249 = vld [vmem:[%s167 + $0x250] sm:$0xff]
      %v250 = vld [vmem:[%s167 + $0x258] sm:$0xff]
      %v251 = vld [vmem:[%s167 + $0x260] sm:$0xff]
      %v252 = vld [vmem:[%s167 + $0x268] sm:$0xff]
      %v253 = vld [vmem:[%s167 + $0x270] sm:$0xff]
      %v254 = vld [vmem:[%s167 + $0x278] sm:$0xff]
      %v255 = vld [vmem:[%s167 + $0x280] sm:$0xff]
      %v256 = vld [vmem:[%s167 + $0x288] sm:$0xff]
      %v257 = vld [vmem:[%s167 + $0x290] sm:$0xff]
      %v258 = vld [vmem:[%s167 + $0x298] sm:$0xff]
      %v259 = vld [vmem:[%s167 + $0x2a0] sm:$0xff]
      %v260 = vld [vmem:[%s167 + $0x2a8] sm:$0xff]
      %v261 = vld [vmem:[%s167 + $0x2b0] sm:$0xff]
      %v262 = vld [vmem:[%s167 + $0x2b8] sm:$0xff]
      %v263 = vld [vmem:[%s167 + $0x2c0] sm:$0xff]
      %v264 = vld [vmem:[%s167 + $0x2c8] sm:$0xff]
      %v265 = vld [vmem:[%s167 + $0x2d0] sm:$0xff]
      %v266 = vld [vmem:[%s167 + $0x2d8] sm:$0xff]
      %v267 = vld [vmem:[%s167 + $0x2e0] sm:$0xff]
      %v268 = vld [vmem:[%s167 + $0x2e8] sm:$0xff]
      %v269 = vld [vmem:[%s167 + $0x2f0] sm:$0xff]
      %v270 = vld [vmem:[%s167 + $0x2f8] sm:$0xff]
      %v271 = vld [vmem:[%s167 + $0x300] sm:$0xff]
      %v272 = vld [vmem:[%s167 + $0x308] sm:$0xff]
      %v273 = vld [vmem:[%s167 + $0x310] sm:$0xff]
      %v274 = vld [vmem:[%s167 + $0x318] sm:$0xff]
      %v275 = vld [vmem:[%s167 + $0x320] sm:$0xff]
      %v276 = vld [vmem:[%s167 + $0x328] sm:$0xff]
      %v277 = vld [vmem:[%s167 + $0x330] sm:$0xff]
      %v278 = vld [vmem:[%s167 + $0x338] sm:$0xff]
      %v279 = vld [vmem:[%s167 + $0x340] sm:$0xff]
      %v280 = vld [vmem:[%s167 + $0x348] sm:$0xff]
      %v281 = vld [vmem:[%s167 + $0x350] sm:$0xff]
      %v282 = vld [vmem:[%s167 + $0x358] sm:$0xff]
      %v283 = vld [vmem:[%s167 + $0x360] sm:$0xff]
      %v284 = vld [vmem:[%s167 + $0x368] sm:$0xff]
      %v285 = vld [vmem:[%s167 + $0x370] sm:$0xff]
      %v286 = vld [vmem:[%s167 + $0x378] sm:$0xff]
      %v287 = vld [vmem:[%s167 + $0x380] sm:$0xff]
      %v288 = vld [vmem:[%s167 + $0x388] sm:$0xff]
      %v289 = vld [vmem:[%s167 + $0x390] sm:$0xff]
      %v290 = vld [vmem:[%s167 + $0x398] sm:$0xff]
      %v291 = vld [vmem:[%s167 + $0x3a0] sm:$0xff]
      %v292 = vld [vmem:[%s167 + $0x3a8] sm:$0xff]
      %v293 = vld [vmem:[%s167 + $0x3b0] sm:$0xff]
      %v294 = vld [vmem:[%s167 + $0x3b8] sm:$0xff]
      %v295 = vld [vmem:[%s167 + $0x3c0] sm:$0xff]
      %v296 = vld [vmem:[%s167 + $0x3c8] sm:$0xff]
      %v297 = vld [vmem:[%s167 + $0x3d0] sm:$0xff]
      %v298 = vld [vmem:[%s167 + $0x3d8] sm:$0xff]
      %v299 = vld [vmem:[%s167 + $0x3e0] sm:$0xff]
      %v300 = vld [vmem:[%s167 + $0x3e8] sm:$0xff]
      %v301 = vld [vmem:[%s167 + $0x3f0] sm:$0xff]
      %v302 = vld [vmem:[%s167 + $0x3f8] sm:$0xff]
      %v303 = vld [vmem:[%s167 + $0x400] sm:$0xff]
      %v304 = vld [vmem:[%s167 + $0x408] sm:$0xff]
      %v305 = vld [vmem:[%s167 + $0x410] sm:$0xff]
      %v306 = vld [vmem:[%s167 + $0x418] sm:$0xff]
      %v307 = vld [vmem:[%s167 + $0x420] sm:$0xff]
      %v308 = vld [vmem:[%s167 + $0x428] sm:$0xff]
      %v309 = vld [vmem:[%s167 + $0x430] sm:$0xff]
      %v310 = vld [vmem:[%s167 + $0x438] sm:$0xff]
      %v311 = vld [vmem:[%s167 + $0x440] sm:$0xff]
      %v312 = vld [vmem:[%s167 + $0x448] sm:$0xff]
      %v313 = vld [vmem:[%s167 + $0x450] sm:$0xff]
      %v314 = vld [vmem:[%s167 + $0x458] sm:$0xff]
      %v315 = vld [vmem:[%s167 + $0x460] sm:$0xff]
      %v316 = vld [vmem:[%s167 + $0x468] sm:$0xff]
      %v317 = vld [vmem:[%s167 + $0x470] sm:$0xff]
      %v318 = vld [vmem:[%s167 + $0x478] sm:$0xff]
      %v319 = vld [vmem:[%s167 + $0x480] sm:$0xff]
      %v320 = vld [vmem:[%s167 + $0x488] sm:$0xff]
      %v321 = vld [vmem:[%s167 + $0x490] sm:$0xff]
      %v322 = vld [vmem:[%s167 + $0x498] sm:$0xff]
      %v323 = vld [vmem:[%s167 + $0x4a0] sm:$0xff]
      %v324 = vld [vmem:[%s167 + $0x4a8] sm:$0xff]
      %v325 = vld [vmem:[%s167 + $0x4b0] sm:$0xff]
      %v326 = vld [vmem:[%s167 + $0x4b8] sm:$0xff]
      %v327 = vld [vmem:[%s167 + $0x4c0] sm:$0xff]
      %v328 = vld [vmem:[%s167 + $0x4c8] sm:$0xff]
      %v329 = vld [vmem:[%s167 + $0x4d0] sm:$0xff]
      %v330 = vld [vmem:[%s167 + $0x4d8] sm:$0xff]
      %v331 = vld [vmem:[%s167 + $0x4e0] sm:$0xff]
      %v332 = vld [vmem:[%s167 + $0x4e8] sm:$0xff]
      %v333 = vld [vmem:[%s167 + $0x4f0] sm:$0xff]
      %v334 = vld [vmem:[%s167 + $0x4f8] sm:$0xff]
      %v335 = vld [vmem:[%s167 + $0x500] sm:$0xff]
      %v336 = vld [vmem:[%s167 + $0x508] sm:$0xff]
      %v337 = vld [vmem:[%s167 + $0x510] sm:$0xff]
      %v338 = vld [vmem:[%s167 + $0x518] sm:$0xff]
      %v339 = vld [vmem:[%s167 + $0x520] sm:$0xff]
      %v340 = vld [vmem:[%s167 + $0x528] sm:$0xff]
      %v341 = vld [vmem:[%s167 + $0x530] sm:$0xff]
      %v342 = vld [vmem:[%s167 + $0x538] sm:$0xff]
      %v343 = vld [vmem:[%s167 + $0x540] sm:$0xff]
      %v344 = vld [vmem:[%s167 + $0x548] sm:$0xff]
      %v345 = vld [vmem:[%s167 + $0x550] sm:$0xff]
      %v346 = vld [vmem:[%s167 + $0x558] sm:$0xff]
      %v347 = vld [vmem:[%s167 + $0x560] sm:$0xff]
      %v348 = vld [vmem:[%s167 + $0x568] sm:$0xff]
      %v349 = vld [vmem:[%s167 + $0x570] sm:$0xff]
      %v350 = vld [vmem:[%s167 + $0x578] sm:$0xff]
      %v351 = vld [vmem:[%s167 + $0x580] sm:$0xff]
      %v352 = vld [vmem:[%s167 + $0x588] sm:$0xff]
      %v353 = vld [vmem:[%s167 + $0x590] sm:$0xff]
      %v354 = vld [vmem:[%s167 + $0x598] sm:$0xff]
      %v355 = vld [vmem:[%s167 + $0x5a0] sm:$0xff]
      %v356 = vld [vmem:[%s167 + $0x5a8] sm:$0xff]
      %v357 = vld [vmem:[%s167 + $0x5b0] sm:$0xff]
      %v358 = vld [vmem:[%s167 + $0x5b8] sm:$0xff]
      %v359 = vld [vmem:[%s167 + $0x5c0] sm:$0xff]
      %v360 = vld [vmem:[%s167 + $0x5c8] sm:$0xff]
      %v361 = vld [vmem:[%s167 + $0x5d0] sm:$0xff]
      %v362 = vld [vmem:[%s167 + $0x5d8] sm:$0xff]
      %v363 = vld [vmem:[%s167 + $0x5e0] sm:$0xff]
      %v364 = vld [vmem:[%s167 + $0x5e8] sm:$0xff]
      %v365 = vld [vmem:[%s167 + $0x5f0] sm:$0xff]
      %v366 = vld [vmem:[%s167 + $0x5f8] sm:$0xff]
      %v367 = vld [vmem:[%s167 + $0x600] sm:$0xff]
      %v368 = vld [vmem:[%s167 + $0x608] sm:$0xff]
      %v369 = vld [vmem:[%s167 + $0x610] sm:$0xff]
      %v370 = vld [vmem:[%s167 + $0x618] sm:$0xff]
      %v371 = vld [vmem:[%s167 + $0x620] sm:$0xff]
      %v372 = vld [vmem:[%s167 + $0x628] sm:$0xff]
      %v373 = vld [vmem:[%s167 + $0x630] sm:$0xff]
      %v374 = vld [vmem:[%s167 + $0x638] sm:$0xff]
      %v375 = vld [vmem:[%s167 + $0x640] sm:$0xff]
      %v376 = vld [vmem:[%s167 + $0x648] sm:$0xff]
      %v377 = vld [vmem:[%s167 + $0x650] sm:$0xff]
      %v378 = vld [vmem:[%s167 + $0x658] sm:$0xff]
      %v379 = vld [vmem:[%s167 + $0x660] sm:$0xff]
      %v380 = vld [vmem:[%s167 + $0x668] sm:$0xff]
      %v381 = vld [vmem:[%s167 + $0x670] sm:$0xff]
      %v382 = vld [vmem:[%s167 + $0x678] sm:$0xff]
      %v383 = vld [vmem:[%s167 + $0x680] sm:$0xff]
      %v384 = vld [vmem:[%s167 + $0x688] sm:$0xff]
      %v385 = vld [vmem:[%s167 + $0x690] sm:$0xff]
      %v386 = vld [vmem:[%s167 + $0x698] sm:$0xff]
      %v387 = vld [vmem:[%s167 + $0x6a0] sm:$0xff]
      %v388 = vld [vmem:[%s167 + $0x6a8] sm:$0xff]
      %v389 = vld [vmem:[%s167 + $0x6b0] sm:$0xff]
      %v390 = vld [vmem:[%s167 + $0x6b8] sm:$0xff]
      %v391 = vld [vmem:[%s167 + $0x6c0] sm:$0xff]
      %v392 = vld [vmem:[%s167 + $0x6c8] sm:$0xff]
      %v393 = vld [vmem:[%s167 + $0x6d0] sm:$0xff]
      %v394 = vld [vmem:[%s167 + $0x6d8] sm:$0xff]
      %v395 = vld [vmem:[%s167 + $0x6e0] sm:$0xff]
      %v396 = vld [vmem:[%s167 + $0x6e8] sm:$0xff]
      %v397 = vld [vmem:[%s167 + $0x6f0] sm:$0xff]
      %v398 = vld [vmem:[%s167 + $0x6f8] sm:$0xff]
      %v399 = vld [vmem:[%s167 + $0x700] sm:$0xff]
      %v400 = vld [vmem:[%s167 + $0x708] sm:$0xff]
      %v401 = vld [vmem:[%s167 + $0x710] sm:$0xff]
      %v402 = vld [vmem:[%s167 + $0x718] sm:$0xff]
      %v403 = vld [vmem:[%s167 + $0x720] sm:$0xff]
      %v404 = vld [vmem:[%s167 + $0x728] sm:$0xff]
      %v405 = vld [vmem:[%s167 + $0x730] sm:$0xff]
      %v406 = vld [vmem:[%s167 + $0x738] sm:$0xff]
      %v407 = vld [vmem:[%s167 + $0x740] sm:$0xff]
      %v408 = vld [vmem:[%s167 + $0x748] sm:$0xff]
      %v409 = vld [vmem:[%s167 + $0x750] sm:$0xff]
      %v410 = vld [vmem:[%s167 + $0x758] sm:$0xff]
      %v411 = vld [vmem:[%s167 + $0x760] sm:$0xff]
      %v412 = vld [vmem:[%s167 + $0x768] sm:$0xff]
      %v413 = vld [vmem:[%s167 + $0x770] sm:$0xff]
      %v414 = vld [vmem:[%s167 + $0x778] sm:$0xff]
      %v415 = vld [vmem:[%s167 + $0x780] sm:$0xff]
      %v416 = vld [vmem:[%s167 + $0x788] sm:$0xff]
      %v417 = vld [vmem:[%s167 + $0x790] sm:$0xff]
      %v418 = vld [vmem:[%s167 + $0x798] sm:$0xff]
      %v419 = vld [vmem:[%s167 + $0x7a0] sm:$0xff]
      %v420 = vld [vmem:[%s167 + $0x7a8] sm:$0xff]
      %v421 = vld [vmem:[%s167 + $0x7b0] sm:$0xff]
      %v422 = vld [vmem:[%s167 + $0x7b8] sm:$0xff]
      %v423 = vld [vmem:[%s167 + $0x7c0] sm:$0xff]
      %v424 = vld [vmem:[%s167 + $0x7c8] sm:$0xff]
      %v425 = vld [vmem:[%s167 + $0x7d0] sm:$0xff]
      %v426 = vld [vmem:[%s167 + $0x7d8] sm:$0xff]
      %v427 = vld [vmem:[%s167 + $0x7e0] sm:$0xff]
      %v428 = vld [vmem:[%s167 + $0x7e8] sm:$0xff]
      %v429 = vld [vmem:[%s167 + $0x7f0] sm:$0xff]
      %v430 = vld [vmem:[%s167 + $0x7f8] sm:$0xff]
      %v431 = vld [vmem:[%s1] sm:$0xff]
      %v432 = vld [vmem:[%s1 + $0x8] sm:$0xff]
      %v433 = vld [vmem:[%s1 + $0x10] sm:$0xff]
      %v434 = vld [vmem:[%s1 + $0x18] sm:$0xff]
      %s435 = sld [smem:[#allocation2]]
      %v436 = vstv %s435
      %vm437 = vcmask 261120
      %v439 = vsel %vm437, %v175, 0
      %v442 = vsel %vm437, %v176, 0
      %v445 = vsel %vm437, %v177, 0
      %v448 = vsel %vm437, %v178, 0
      %v451 = vsel %vm437, %v179, 0
      %v454 = vsel %vm437, %v180, 0
      %v457 = vsel %vm437, %v181, 0
      %v460 = vsel %vm437, %v182, 0
      %v463 = vsel %vm437, %v183, 0
      %v466 = vsel %vm437, %v184, 0
      %v469 = vsel %vm437, %v185, 0
      %v472 = vsel %vm437, %v186, 0
      %v475 = vsel %vm437, %v187, 0
      %v478 = vsel %vm437, %v188, 0
      %v481 = vsel %vm437, %v189, 0
      %v484 = vsel %vm437, %v190, 0
      %v487 = vsel %vm437, %v191, 0
      %v490 = vsel %vm437, %v192, 0
      %v493 = vsel %vm437, %v193, 0
      %v496 = vsel %vm437, %v194, 0
      %v499 = vsel %vm437, %v195, 0
      %v502 = vsel %vm437, %v196, 0
      %v505 = vsel %vm437, %v197, 0
      %v508 = vsel %vm437, %v198, 0
      %v511 = vsel %vm437, %v199, 0
      %v514 = vsel %vm437, %v200, 0
      %v517 = vsel %vm437, %v201, 0
      %v520 = vsel %vm437, %v202, 0
      %v523 = vsel %vm437, %v203, 0
      %v526 = vsel %vm437, %v204, 0
      %v529 = vsel %vm437, %v205, 0
      %v532 = vsel %vm437, %v206, 0
      %v535 = vsel %vm437, %v207, 0
      %v538 = vsel %vm437, %v208, 0
      %v541 = vsel %vm437, %v209, 0
      %v544 = vsel %vm437, %v210, 0
      %v547 = vsel %vm437, %v211, 0
      %v550 = vsel %vm437, %v212, 0
      %v553 = vsel %vm437, %v213, 0
      %v556 = vsel %vm437, %v214, 0
      %v559 = vsel %vm437, %v215, 0
      %v562 = vsel %vm437, %v216, 0
      %v565 = vsel %vm437, %v217, 0
      %v568 = vsel %vm437, %v218, 0
      %v571 = vsel %vm437, %v219, 0
      %v574 = vsel %vm437, %v220, 0
      %v577 = vsel %vm437, %v221, 0
      %v580 = vsel %vm437, %v222, 0
      %v583 = vsel %vm437, %v223, 0
      %v586 = vsel %vm437, %v224, 0
      %v589 = vsel %vm437, %v225, 0
      %v592 = vsel %vm437, %v226, 0
      %v595 = vsel %vm437, %v227, 0
      %v598 = vsel %vm437, %v228, 0
      %v601 = vsel %vm437, %v229, 0
      %v604 = vsel %vm437, %v230, 0
      %v607 = vsel %vm437, %v231, 0
      %v610 = vsel %vm437, %v232, 0
      %v613 = vsel %vm437, %v233, 0
      %v616 = vsel %vm437, %v234, 0
      %v619 = vsel %vm437, %v235, 0
      %v622 = vsel %vm437, %v236, 0
      %v625 = vsel %vm437, %v237, 0
      %v628 = vsel %vm437, %v238, 0
      %v631 = vsel %vm437, %v239, 0
      %v634 = vsel %vm437, %v240, 0
      %v637 = vsel %vm437, %v241, 0
      %v640 = vsel %vm437, %v242, 0
      %v643 = vsel %vm437, %v243, 0
      %v646 = vsel %vm437, %v244, 0
      %v649 = vsel %vm437, %v245, 0
      %v652 = vsel %vm437, %v246, 0
      %v655 = vsel %vm437, %v247, 0
      %v658 = vsel %vm437, %v248, 0
      %v661 = vsel %vm437, %v249, 0
      %v664 = vsel %vm437, %v250, 0
      %v667 = vsel %vm437, %v251, 0
      %v670 = vsel %vm437, %v252, 0
      %v673 = vsel %vm437, %v253, 0
      %v676 = vsel %vm437, %v254, 0
      %v679 = vsel %vm437, %v255, 0
      %v682 = vsel %vm437, %v256, 0
      %v685 = vsel %vm437, %v257, 0
      %v688 = vsel %vm437, %v258, 0
      %v691 = vsel %vm437, %v259, 0
      %v694 = vsel %vm437, %v260, 0
      %v697 = vsel %vm437, %v261, 0
      %v700 = vsel %vm437, %v262, 0
      %v703 = vsel %vm437, %v263, 0
      %v706 = vsel %vm437, %v264, 0
      %v709 = vsel %vm437, %v265, 0
      %v712 = vsel %vm437, %v266, 0
      %v715 = vsel %vm437, %v267, 0
      %v718 = vsel %vm437, %v268, 0
      %v721 = vsel %vm437, %v269, 0
      %v724 = vsel %vm437, %v270, 0
      %v727 = vsel %vm437, %v271, 0
      %v730 = vsel %vm437, %v272, 0
      %v733 = vsel %vm437, %v273, 0
      %v736 = vsel %vm437, %v274, 0
      %v739 = vsel %vm437, %v275, 0
      %v742 = vsel %vm437, %v276, 0
      %v745 = vsel %vm437, %v277, 0
      %v748 = vsel %vm437, %v278, 0
      %v751 = vsel %vm437, %v279, 0
      %v754 = vsel %vm437, %v280, 0
      %v757 = vsel %vm437, %v281, 0
      %v760 = vsel %vm437, %v282, 0
      %v763 = vsel %vm437, %v283, 0
      %v766 = vsel %vm437, %v284, 0
      %v769 = vsel %vm437, %v285, 0
      %v772 = vsel %vm437, %v286, 0
      %v775 = vsel %vm437, %v287, 0
      %v778 = vsel %vm437, %v288, 0
      %v781 = vsel %vm437, %v289, 0
      %v784 = vsel %vm437, %v290, 0
      %v787 = vsel %vm437, %v291, 0
      %v790 = vsel %vm437, %v292, 0
      %v793 = vsel %vm437, %v293, 0
      %v796 = vsel %vm437, %v294, 0
      %v799 = vsel %vm437, %v295, 0
      %v802 = vsel %vm437, %v296, 0
      %v805 = vsel %vm437, %v297, 0
      %v808 = vsel %vm437, %v298, 0
      %v811 = vsel %vm437, %v299, 0
      %v814 = vsel %vm437, %v300, 0
      %v817 = vsel %vm437, %v301, 0
      %v820 = vsel %vm437, %v302, 0
      %v823 = vsel %vm437, %v303, 0
      %v826 = vsel %vm437, %v304, 0
      %v829 = vsel %vm437, %v305, 0
      %v832 = vsel %vm437, %v306, 0
      %v835 = vsel %vm437, %v307, 0
      %v838 = vsel %vm437, %v308, 0
      %v841 = vsel %vm437, %v309, 0
      %v844 = vsel %vm437, %v310, 0
      %v847 = vsel %vm437, %v311, 0
      %v850 = vsel %vm437, %v312, 0
      %v853 = vsel %vm437, %v313, 0
      %v856 = vsel %vm437, %v314, 0
      %v859 = vsel %vm437, %v315, 0
      %v862 = vsel %vm437, %v316, 0
      %v865 = vsel %vm437, %v317, 0
      %v868 = vsel %vm437, %v318, 0
      %v871 = vsel %vm437, %v319, 0
      %v874 = vsel %vm437, %v320, 0
      %v877 = vsel %vm437, %v321, 0
      %v880 = vsel %vm437, %v322, 0
      %v883 = vsel %vm437, %v323, 0
      %v886 = vsel %vm437, %v324, 0
      %v889 = vsel %vm437, %v325, 0
      %v892 = vsel %vm437, %v326, 0
      %v895 = vsel %vm437, %v327, 0
      %v898 = vsel %vm437, %v328, 0
      %v901 = vsel %vm437, %v329, 0
      %v904 = vsel %vm437, %v330, 0
      %v907 = vsel %vm437, %v331, 0
      %v910 = vsel %vm437, %v332, 0
      %v913 = vsel %vm437, %v333, 0
      %v916 = vsel %vm437, %v334, 0
      %v919 = vsel %vm437, %v335, 0
      %v922 = vsel %vm437, %v336, 0
      %v925 = vsel %vm437, %v337, 0
      %v928 = vsel %vm437, %v338, 0
      %v931 = vsel %vm437, %v339, 0
      %v934 = vsel %vm437, %v340, 0
      %v937 = vsel %vm437, %v341, 0
      %v940 = vsel %vm437, %v342, 0
      %v943 = vsel %vm437, %v343, 0
      %v946 = vsel %vm437, %v344, 0
      %v949 = vsel %vm437, %v345, 0
      %v952 = vsel %vm437, %v346, 0
      %v955 = vsel %vm437, %v347, 0
      %v958 = vsel %vm437, %v348, 0
      %v961 = vsel %vm437, %v349, 0
      %v964 = vsel %vm437, %v350, 0
      %v967 = vsel %vm437, %v351, 0
      %v970 = vsel %vm437, %v352, 0
      %v973 = vsel %vm437, %v353, 0
      %v976 = vsel %vm437, %v354, 0
      %v979 = vsel %vm437, %v355, 0
      %v982 = vsel %vm437, %v356, 0
      %v985 = vsel %vm437, %v357, 0
      %v988 = vsel %vm437, %v358, 0
      %v991 = vsel %vm437, %v359, 0
      %v994 = vsel %vm437, %v360, 0
      %v997 = vsel %vm437, %v361, 0
      %v1000 = vsel %vm437, %v362, 0
      %v1003 = vsel %vm437, %v363, 0
      %v1006 = vsel %vm437, %v364, 0
      %v1009 = vsel %vm437, %v365, 0
      %v1012 = vsel %vm437, %v366, 0
      %v1015 = vsel %vm437, %v367, 0
      %v1018 = vsel %vm437, %v368, 0
      %v1021 = vsel %vm437, %v369, 0
      %v1024 = vsel %vm437, %v370, 0
      %v1027 = vsel %vm437, %v371, 0
      %v1030 = vsel %vm437, %v372, 0
      %v1033 = vsel %vm437, %v373, 0
      %v1036 = vsel %vm437, %v374, 0
      %v1039 = vsel %vm437, %v375, 0
      %v1042 = vsel %vm437, %v376, 0
      %v1045 = vsel %vm437, %v377, 0
      %v1048 = vsel %vm437, %v378, 0
      %v1051 = vsel %vm437, %v379, 0
      %v1054 = vsel %vm437, %v380, 0
      %v1057 = vsel %vm437, %v381, 0
      %v1060 = vsel %vm437, %v382, 0
      %v1063 = vsel %vm437, %v383, 0
      %v1066 = vsel %vm437, %v384, 0
      %v1069 = vsel %vm437, %v385, 0
      %v1072 = vsel %vm437, %v386, 0
      %v1075 = vsel %vm437, %v387, 0
      %v1078 = vsel %vm437, %v388, 0
      %v1081 = vsel %vm437, %v389, 0
      %v1084 = vsel %vm437, %v390, 0
      %v1087 = vsel %vm437, %v391, 0
      %v1090 = vsel %vm437, %v392, 0
      %v1093 = vsel %vm437, %v393, 0
      %v1096 = vsel %vm437, %v394, 0
      %v1099 = vsel %vm437, %v395, 0
      %v1102 = vsel %vm437, %v396, 0
      %v1105 = vsel %vm437, %v397, 0
      %v1108 = vsel %vm437, %v398, 0
      %v1111 = vsel %vm437, %v399, 0
      %v1114 = vsel %vm437, %v400, 0
      %v1117 = vsel %vm437, %v401, 0
      %v1120 = vsel %vm437, %v402, 0
      %v1123 = vsel %vm437, %v403, 0
      %v1126 = vsel %vm437, %v404, 0
      %v1129 = vsel %vm437, %v405, 0
      %v1132 = vsel %vm437, %v406, 0
      %v1135 = vsel %vm437, %v407, 0
      %v1138 = vsel %vm437, %v408, 0
      %v1141 = vsel %vm437, %v409, 0
      %v1144 = vsel %vm437, %v410, 0
      %v1147 = vsel %vm437, %v411, 0
      %v1150 = vsel %vm437, %v412, 0
      %v1153 = vsel %vm437, %v413, 0
      %v1156 = vsel %vm437, %v414, 0
      %v1159 = vsel %vm437, %v415, 0
      %v1162 = vsel %vm437, %v416, 0
      %v1165 = vsel %vm437, %v417, 0
      %v1168 = vsel %vm437, %v418, 0
      %v1171 = vsel %vm437, %v419, 0
      %v1174 = vsel %vm437, %v420, 0
      %v1177 = vsel %vm437, %v421, 0
      %v1180 = vsel %vm437, %v422, 0
      %v1183 = vsel %vm437, %v423, 0
      %v1186 = vsel %vm437, %v424, 0
      %v1189 = vsel %vm437, %v425, 0
      %v1192 = vsel %vm437, %v426, 0
      %v1195 = vsel %vm437, %v427, 0
      %v1198 = vsel %vm437, %v428, 0
      %v1201 = vsel %vm437, %v429, 0
      %v1204 = vsel %vm437, %v430, 0
      %1206 = vmatprep.subr.mxu0 0.0
      %1207 = vmatpush1.msra.mxu0 %v431
      %1208 = vmatprep.subr.mxu0 0.0
      %1209 = vmatpush1.msra.mxu0 %v432
      %1210 = vmatprep.subr.mxu0 0.0
      %1211 = vmatpush1.msra.mxu0 %v433
      %1212 = vmatprep.subr.mxu0 0.0
      %1213 = vmatpush1.msra.mxu0 %v434
      %1214 = vmatprep.subr.mxu0 0.0
      %1215 = vmatpush1.msra.mxu0 0.0
      %1216 = vmatprep.subr.mxu0 0.0
      %1217 = vmatpush1.msra.mxu0 0.0
      %1218 = vmatprep.subr.mxu0 0.0
      %1219 = vmatpush1.msra.mxu0 0.0
      %1220 = vmatprep.subr.mxu0 0.0
      %1221 = vmatpush1.msra.mxu0 0.0
      %1222 = vmatprep.subr.mxu0 0.0
      %1223 = vmatpush1.msra.mxu0 0.0
      %1224 = vmatprep.subr.mxu0 0.0
      %1225 = vmatpush1.msra.mxu0 0.0
      %1226 = vmatprep.subr.mxu0 0.0
      %1227 = vmatpush1.msra.mxu0 0.0
      %1228 = vmatprep.subr.mxu0 0.0
      %1229 = vmatpush1.msra.mxu0 0.0
      %1230 = vmatprep.subr.mxu0 0.0
      %1231 = vmatpush1.msra.mxu0 0.0
      %1232 = vmatprep.subr.mxu0 0.0
      %1233 = vmatpush1.msra.mxu0 0.0
      %1234 = vmatprep.subr.mxu0 0.0
      %1235 = vmatpush1.msra.mxu0 0.0
      %1236 = vmatprep.subr.mxu0 0.0
      %1237 = vmatpush1.msra.mxu0 0.0
      %1238 = vmatprep.subr.mxu0 0.0
      %1239 = vmatpush1.msra.mxu0 0.0
      %1240 = vmatprep.subr.mxu0 0.0
      %1241 = vmatpush1.msra.mxu0 0.0
      %1242 = vmatprep.subr.mxu0 0.0
      %1243 = vmatpush1.msra.mxu0 0.0
      %1244 = vmatprep.subr.mxu0 0.0
      %1245 = vmatpush1.msra.mxu0 0.0
      %1246 = vmatprep.subr.mxu0 0.0
      %1247 = vmatpush1.msra.mxu0 0.0
      %1248 = vmatprep.subr.mxu0 0.0
      %1249 = vmatpush1.msra.mxu0 0.0
      %1250 = vmatprep.subr.mxu0 0.0
      %1251 = vmatpush1.msra.mxu0 0.0
      %1252 = vmatprep.subr.mxu0 0.0
      %1253 = vmatpush1.msra.mxu0 0.0
      %1254 = vmatprep.subr.mxu0 0.0
      %1255 = vmatpush1.msra.mxu0 0.0
      %1256 = vmatprep.subr.mxu0 0.0
      %1257 = vmatpush1.msra.mxu0 0.0
      %1258 = vmatprep.subr.mxu0 0.0
      %1259 = vmatpush1.msra.mxu0 0.0
      %1260 = vmatprep.subr.mxu0 0.0
      %1261 = vmatpush1.msra.mxu0 0.0
      %1262 = vmatprep.subr.mxu0 0.0
      %1263 = vmatpush1.msra.mxu0 0.0
      %1264 = vmatprep.subr.mxu0 0.0
      %1265 = vmatpush1.msra.mxu0 0.0
      %1266 = vmatprep.subr.mxu0 0.0
      %1267 = vmatpush1.msra.mxu0 0.0
      %1268 = vmatprep.subr.mxu0 0.0
      %1269 = vmatpush1.msra.mxu0 0.0
      %1270 = vmatprep.mubr.f32.mxu0 0.0
      %1271 = vmatmul.mubr.f32.gmra.mrb[0].mxu0 %v439
      %v1272 = vpop.f32.mrb[0].mxu0
      %v1273 = vadd.f32 %v436, %v1272
      %v1274 = vpop.f32.mrb[0].mxu0
      %1275 = vmatprep.mubr.f32.mxu0 0.0
      %1276 = vmatmul.mubr.f32.gmra.mrb[0].mxu0 %v442
      %v1277 = vpop.f32.mrb[0].mxu0
      %v1278 = vadd.f32 %v436, %v1277
      %v1279 = vpop.f32.mrb[0].mxu0
      %1280 = vmatprep.mubr.f32.mxu0 0.0
      %1281 = vmatmul.mubr.f32.gmra.mrb[0].mxu0 %v445
      %v1282 = vpop.f32.mrb[0].mxu0
      %v1283 = vadd.f32 %v436, %v1282
      %v1284 = vpop.f32.mrb[0].mxu0
      %1285 = vmatprep.mubr.f32.mxu0 0.0
      %1286 = vmatmul.mubr.f32.gmra.mrb[0].mxu0 %v448
      %v1287 = vpop.f32.mrb[0].mxu0
      %v1288 = vadd.f32 %v436, %v1287
      %v1289 = vpop.f32.mrb[0].mxu0
      %1290 = vmatprep.mubr.f32.mxu0 0.0
      %1291 = vmatmul.mubr.f32.gmra.mrb[0].mxu0 %v451
      %v1292 = vpop.f32.mrb[0].mxu0
      %v1293 = vadd.f32 %v436, %v1292
      %v1294 = vpop.f32.mrb[0].mxu0
      %1295 = vmatprep.mubr.f32.mxu0 0.0
      %1296 = vmatmul.mubr.f32.gmra.mrb[0].mxu0 %v454
      %v1297 = vpop.f32.mrb[0].mxu0
      %v1298 = vadd.f32 %v436, %v1297
      %v1299 = vpop.f32.mrb[0].mxu0
      %1300 = vmatprep.mubr.f32.mxu0 0.0
      %1301 = vmatmul.mubr.f32.gmra.mrb[0].mxu0 %v457
      %v1302 = vpop.f32.mrb[0].mxu0
      %v1303 = vadd.f32 %v436, %v1302
      %v1304 = vpop.f32.mrb[0].mxu0
      %1305 = vmatprep.mubr.f32.mxu0 0.0
      %1306 = vmatmul.mubr.f32.gmra.mrb[0].mxu0 %v460
      %v1307 = vpop.f32.mrb[0].mxu0
      %v1308 = vadd.f32 %v436, %v1307
      %v1309 = vpop.f32.mrb[0].mxu0
      %1310 = vmatprep.mubr.f32.mxu0 0.0
      %1311 = vmatmul.mubr.f32.gmra.mrb[0].mxu0 %v463
      %v1312 = vpop.f32.mrb[0].mxu0
      %v1313 = vadd.f32 %v436, %v1312
      %v1314 = vpop.f32.mrb[0].mxu0
      %1315 = vmatprep.mubr.f32.mxu0 0.0
      %1316 = vmatmul.mubr.f32.gmra.mrb[0].mxu0 %v466
      %v1317 = vpop.f32.mrb[0].mxu0
      %v1318 = vadd.f32 %v436, %v1317
      %v1319 = vpop.f32.mrb[0].mxu0
      %1320 = vmatprep.mubr.f32.mxu0 0.0
      %1321 = vmatmul.mubr.f32.gmra.mrb[0].mxu0 %v469
      %v1322 = vpop.f32.mrb[0].mxu0
      %v1323 = vadd.f32 %v436, %v1322
      %v1324 = vpop.f32.mrb[0].mxu0
      %1325 = vmatprep.mubr.f32.mxu0 0.0
      %1326 = vmatmul.mubr.f32.gmra.mrb[0].mxu0 %v472
      %v1327 = vpop.f32.mrb[0].mxu0
      %v1328 = vadd.f32 %v436, %v1327
      %v1329 = vpop.f32.mrb[0].mxu0
      %1330 = vmatprep.mubr.f32.mxu0 0.0
      %1331 = vmatmul.mubr.f32.gmra.mrb[0].mxu0 %v475
      %v1332 = vpop.f32.mrb[0].mxu0
      %v1333 = vadd.f32 %v436, %v1332
      %v1334 = vpop.f32.mrb[0].mxu0
      %1335 = vmatprep.mubr.f32.mxu0 0.0
      %1336 = vmatmul.mubr.f32.gmra.mrb[0].mxu0 %v478
      %v1337 = vpop.f32.mrb[0].mxu0
      %v1338 = vadd.f32 %v436, %v1337
      %v1339 = vpop.f32.mrb[0].mxu0
      %1340 = vmatprep.mubr.f32.mxu0 0.0
      %1341 = vmatmul.mubr.f32.gmra.mrb[0].mxu0 %v481
      %v1342 = vpop.f32.mrb[0].mxu0
      %v1343 = vadd.f32 %v436, %v1342
      %v1344 = vpop.f32.mrb[0].mxu0
      %1345 = vmatprep.mubr.f32.mxu0 0.0
      %1346 = vmatmul.mubr.f32.gmra.mrb[0].mxu0 %v484
      %v1347 = vpop.f32.mrb[0].mxu0
      %v1348 = vadd.f32 %v436, %v1347
      %v1349 = vpop.f32.mrb[0].mxu0
      %1350 = vmatprep.mubr.f32.mxu0 0.0
      %1351 = vmatmul.mubr.f32.gmra.mrb[0].mxu0 %v487
      %v1352 = vpop.f32.mrb[0].mxu0
      %v1353 = vadd.f32 %v436, %v1352
      %v1354 = vpop.f32.mrb[0].mxu0
      %1355 = vmatprep.mubr.f32.mxu0 0.0
      %1356 = vmatmul.mubr.f32.gmra.mrb[0].mxu0 %v490
      %v1357 = vpop.f32.mrb[0].mxu0
      %v1358 = vadd.f32 %v436, %v1357
      %v1359 = vpop.f32.mrb[0].mxu0
      %1360 = vmatprep.mubr.f32.mxu0 0.0
      %1361 = vmatmul.mubr.f32.gmra.mrb[0].mxu0 %v493
      %v1362 = vpop.f32.mrb[0].mxu0
      %v1363 = vadd.f32 %v436, %v1362
      %v1364 = vpop.f32.mrb[0].mxu0
      %1365 = vmatprep.mubr.f32.mxu0 0.0
      %1366 = vmatmul.mubr.f32.gmra.mrb[0].mxu0 %v496
      %v1367 = vpop.f32.mrb[0].mxu0
      %v1368 = vadd.f32 %v436, %v1367
      %v1369 = vpop.f32.mrb[0].mxu0
      %1370 = vmatprep.mubr.f32.mxu0 0.0
      %1371 = vmatmul.mubr.f32.gmra.mrb[0].mxu0 %v499
      %v1372 = vpop.f32.mrb[0].mxu0
      %v1373 = vadd.f32 %v436, %v1372
      %v1374 = vpop.f32.mrb[0].mxu0
      %1375 = vmatprep.mubr.f32.mxu0 0.0
      %1376 = vmatmul.mubr.f32.gmra.mrb[0].mxu0 %v502
      %v1377 = vpop.f32.mrb[0].mxu0
      %v1378 = vadd.f32 %v436, %v1377
      %v1379 = vpop.f32.mrb[0].mxu0
      %1380 = vmatprep.mubr.f32.mxu0 0.0
      %1381 = vmatmul.mubr.f32.gmra.mrb[0].mxu0 %v505
      %v1382 = vpop.f32.mrb[0].mxu0
      %v1383 = vadd.f32 %v436, %v1382
      %v1384 = vpop.f32.mrb[0].mxu0
      %1385 = vmatprep.mubr.f32.mxu0 0.0
      %1386 = vmatmul.mubr.f32.gmra.mrb[0].mxu0 %v508
      %v1387 = vpop.f32.mrb[0].mxu0
      %v1388 = vadd.f32 %v436, %v1387
      %v1389 = vpop.f32.mrb[0].mxu0
      %1390 = vmatprep.mubr.f32.mxu0 0.0
      %1391 = vmatmul.mubr.f32.gmra.mrb[0].mxu0 %v511
      %v1392 = vpop.f32.mrb[0].mxu0
      %v1393 = vadd.f32 %v436, %v1392
      %v1394 = vpop.f32.mrb[0].mxu0
      %1395 = vmatprep.mubr.f32.mxu0 0.0
      %1396 = vmatmul.mubr.f32.gmra.mrb[0].mxu0 %v514
      %v1397 = vpop.f32.mrb[0].mxu0
      %v1398 = vadd.f32 %v436, %v1397
      %v1399 = vpop.f32.mrb[0].mxu0
      %1400 = vmatprep.mubr.f32.mxu0 0.0
      %1401 = vmatmul.mubr.f32.gmra.mrb[0].mxu0 %v517
      %v1402 = vpop.f32.mrb[0].mxu0
      %v1403 = vadd.f32 %v436, %v1402
      %v1404 = vpop.f32.mrb[0].mxu0
      %1405 = vmatprep.mubr.f32.mxu0 0.0
      %1406 = vmatmul.mubr.f32.gmra.mrb[0].mxu0 %v520
      %v1407 = vpop.f32.mrb[0].mxu0
      %v1408 = vadd.f32 %v436, %v1407
      %v1409 = vpop.f32.mrb[0].mxu0
      %1410 = vmatprep.mubr.f32.mxu0 0.0
      %1411 = vmatmul.mubr.f32.gmra.mrb[0].mxu0 %v523
      %v1412 = vpop.f32.mrb[0].mxu0
      %v1413 = vadd.f32 %v436, %v1412
      %v1414 = vpop.f32.mrb[0].mxu0
      %1415 = vmatprep.mubr.f32.mxu0 0.0
      %1416 = vmatmul.mubr.f32.gmra.mrb[0].mxu0 %v526
      %v1417 = vpop.f32.mrb[0].mxu0
      %v1418 = vadd.f32 %v436, %v1417
      %v1419 = vpop.f32.mrb[0].mxu0
      %1420 = vmatprep.mubr.f32.mxu0 0.0
      %1421 = vmatmul.mubr.f32.gmra.mrb[0].mxu0 %v529
      %v1422 = vpop.f32.mrb[0].mxu0
      %v1423 = vadd.f32 %v436, %v1422
      %v1424 = vpop.f32.mrb[0].mxu0
      %1425 = vmatprep.mubr.f32.mxu0 0.0
      %1426 = vmatmul.mubr.f32.gmra.mrb[0].mxu0 %v532
      %v1427 = vpop.f32.mrb[0].mxu0
      %v1428 = vadd.f32 %v436, %v1427
      %v1429 = vpop.f32.mrb[0].mxu0
      %1430 = vmatprep.mubr.f32.mxu0 0.0
      %1431 = vmatmul.mubr.f32.gmra.mrb[0].mxu0 %v535
      %v1432 = vpop.f32.mrb[0].mxu0
      %v1433 = vadd.f32 %v436, %v1432
      %v1434 = vpop.f32.mrb[0].mxu0
      %1435 = vmatprep.mubr.f32.mxu0 0.0
      %1436 = vmatmul.mubr.f32.gmra.mrb[0].mxu0 %v538
      %v1437 = vpop.f32.mrb[0].mxu0
      %v1438 = vadd.f32 %v436, %v1437
      %v1439 = vpop.f32.mrb[0].mxu0
      %1440 = vmatprep.mubr.f32.mxu0 0.0
      %1441 = vmatmul.mubr.f32.gmra.mrb[0].mxu0 %v541
      %v1442 = vpop.f32.mrb[0].mxu0
      %v1443 = vadd.f32 %v436, %v1442
      %v1444 = vpop.f32.mrb[0].mxu0
      %1445 = vmatprep.mubr.f32.mxu0 0.0
      %1446 = vmatmul.mubr.f32.gmra.mrb[0].mxu0 %v544
      %v1447 = vpop.f32.mrb[0].mxu0
      %v1448 = vadd.f32 %v436, %v1447
      %v1449 = vpop.f32.mrb[0].mxu0
      %1450 = vmatprep.mubr.f32.mxu0 0.0
      %1451 = vmatmul.mubr.f32.gmra.mrb[0].mxu0 %v547
      %v1452 = vpop.f32.mrb[0].mxu0
      %v1453 = vadd.f32 %v436, %v1452
      %v1454 = vpop.f32.mrb[0].mxu0
      %1455 = vmatprep.mubr.f32.mxu0 0.0
      %1456 = vmatmul.mubr.f32.gmra.mrb[0].mxu0 %v550
      %v1457 = vpop.f32.mrb[0].mxu0
      %v1458 = vadd.f32 %v436, %v1457
      %v1459 = vpop.f32.mrb[0].mxu0
      %1460 = vmatprep.mubr.f32.mxu0 0.0
      %1461 = vmatmul.mubr.f32.gmra.mrb[0].mxu0 %v553
      %v1462 = vpop.f32.mrb[0].mxu0
      %v1463 = vadd.f32 %v436, %v1462
      %v1464 = vpop.f32.mrb[0].mxu0
      %1465 = vmatprep.mubr.f32.mxu0 0.0
      %1466 = vmatmul.mubr.f32.gmra.mrb[0].mxu0 %v556
      %v1467 = vpop.f32.mrb[0].mxu0
      %v1468 = vadd.f32 %v436, %v1467
      %v1469 = vpop.f32.mrb[0].mxu0
      %1470 = vmatprep.mubr.f32.mxu0 0.0
      %1471 = vmatmul.mubr.f32.gmra.mrb[0].mxu0 %v559
      %v1472 = vpop.f32.mrb[0].mxu0
      %v1473 = vadd.f32 %v436, %v1472
      %v1474 = vpop.f32.mrb[0].mxu0
      %1475 = vmatprep.mubr.f32.mxu0 0.0
      %1476 = vmatmul.mubr.f32.gmra.mrb[0].mxu0 %v562
      %v1477 = vpop.f32.mrb[0].mxu0
      %v1478 = vadd.f32 %v436, %v1477
      %v1479 = vpop.f32.mrb[0].mxu0
      %1480 = vmatprep.mubr.f32.mxu0 0.0
      %1481 = vmatmul.mubr.f32.gmra.mrb[0].mxu0 %v565
      %v1482 = vpop.f32.mrb[0].mxu0
      %v1483 = vadd.f32 %v436, %v1482
      %v1484 = vpop.f32.mrb[0].mxu0
      %1485 = vmatprep.mubr.f32.mxu0 0.0
      %1486 = vmatmul.mubr.f32.gmra.mrb[0].mxu0 %v568
      %v1487 = vpop.f32.mrb[0].mxu0
      %v1488 = vadd.f32 %v436, %v1487
      %v1489 = vpop.f32.mrb[0].mxu0
      %1490 = vmatprep.mubr.f32.mxu0 0.0
      %1491 = vmatmul.mubr.f32.gmra.mrb[0].mxu0 %v571
      %v1492 = vpop.f32.mrb[0].mxu0
      %v1493 = vadd.f32 %v436, %v1492
      %v1494 = vpop.f32.mrb[0].mxu0
      %1495 = vmatprep.mubr.f32.mxu0 0.0
      %1496 = vmatmul.mubr.f32.gmra.mrb[0].mxu0 %v574
      %v1497 = vpop.f32.mrb[0].mxu0
      %v1498 = vadd.f32 %v436, %v1497
      %v1499 = vpop.f32.mrb[0].mxu0
      %1500 = vmatprep.mubr.f32.mxu0 0.0
      %1501 = vmatmul.mubr.f32.gmra.mrb[0].mxu0 %v577
      %v1502 = vpop.f32.mrb[0].mxu0
      %v1503 = vadd.f32 %v436, %v1502
      %v1504 = vpop.f32.mrb[0].mxu0
      %1505 = vmatprep.mubr.f32.mxu0 0.0
      %1506 = vmatmul.mubr.f32.gmra.mrb[0].mxu0 %v580
      %v1507 = vpop.f32.mrb[0].mxu0
      %v1508 = vadd.f32 %v436, %v1507
      %v1509 = vpop.f32.mrb[0].mxu0
      %1510 = vmatprep.mubr.f32.mxu0 0.0
      %1511 = vmatmul.mubr.f32.gmra.mrb[0].mxu0 %v583
      %v1512 = vpop.f32.mrb[0].mxu0
      %v1513 = vadd.f32 %v436, %v1512
      %v1514 = vpop.f32.mrb[0].mxu0
      %1515 = vmatprep.mubr.f32.mxu0 0.0
      %1516 = vmatmul.mubr.f32.gmra.mrb[0].mxu0 %v586
      %v1517 = vpop.f32.mrb[0].mxu0
      %v1518 = vadd.f32 %v436, %v1517
      %v1519 = vpop.f32.mrb[0].mxu0
      %1520 = vmatprep.mubr.f32.mxu0 0.0
      %1521 = vmatmul.mubr.f32.gmra.mrb[0].mxu0 %v589
      %v1522 = vpop.f32.mrb[0].mxu0
      %v1523 = vadd.f32 %v436, %v1522
      %v1524 = vpop.f32.mrb[0].mxu0
      %1525 = vmatprep.mubr.f32.mxu0 0.0
      %1526 = vmatmul.mubr.f32.gmra.mrb[0].mxu0 %v592
      %v1527 = vpop.f32.mrb[0].mxu0
      %v1528 = vadd.f32 %v436, %v1527
      %v1529 = vpop.f32.mrb[0].mxu0
      %1530 = vmatprep.mubr.f32.mxu0 0.0
      %1531 = vmatmul.mubr.f32.gmra.mrb[0].mxu0 %v595
      %v1532 = vpop.f32.mrb[0].mxu0
      %v1533 = vadd.f32 %v436, %v1532
      %v1534 = vpop.f32.mrb[0].mxu0
      %1535 = vmatprep.mubr.f32.mxu0 0.0
      %1536 = vmatmul.mubr.f32.gmra.mrb[0].mxu0 %v598
      %v1537 = vpop.f32.mrb[0].mxu0
      %v1538 = vadd.f32 %v436, %v1537
      %v1539 = vpop.f32.mrb[0].mxu0
      %1540 = vmatprep.mubr.f32.mxu0 0.0
      %1541 = vmatmul.mubr.f32.gmra.mrb[0].mxu0 %v601
      %v1542 = vpop.f32.mrb[0].mxu0
      %v1543 = vadd.f32 %v436, %v1542
      %v1544 = vpop.f32.mrb[0].mxu0
      %1545 = vmatprep.mubr.f32.mxu0 0.0
      %1546 = vmatmul.mubr.f32.gmra.mrb[0].mxu0 %v604
      %v1547 = vpop.f32.mrb[0].mxu0
      %v1548 = vadd.f32 %v436, %v1547
      %v1549 = vpop.f32.mrb[0].mxu0
      %1550 = vmatprep.mubr.f32.mxu0 0.0
      %1551 = vmatmul.mubr.f32.gmra.mrb[0].mxu0 %v607
      %v1552 = vpop.f32.mrb[0].mxu0
      %v1553 = vadd.f32 %v436, %v1552
      %v1554 = vpop.f32.mrb[0].mxu0
      %1555 = vmatprep.mubr.f32.mxu0 0.0
      %1556 = vmatmul.mubr.f32.gmra.mrb[0].mxu0 %v610
      %v1557 = vpop.f32.mrb[0].mxu0
      %v1558 = vadd.f32 %v436, %v1557
      %v1559 = vpop.f32.mrb[0].mxu0
      %1560 = vmatprep.mubr.f32.mxu0 0.0
      %1561 = vmatmul.mubr.f32.gmra.mrb[0].mxu0 %v613
      %v1562 = vpop.f32.mrb[0].mxu0
      %v1563 = vadd.f32 %v436, %v1562
      %v1564 = vpop.f32.mrb[0].mxu0
      %1565 = vmatprep.mubr.f32.mxu0 0.0
      %1566 = vmatmul.mubr.f32.gmra.mrb[0].mxu0 %v616
      %v1567 = vpop.f32.mrb[0].mxu0
      %v1568 = vadd.f32 %v436, %v1567
      %v1569 = vpop.f32.mrb[0].mxu0
      %1570 = vmatprep.mubr.f32.mxu0 0.0
      %1571 = vmatmul.mubr.f32.gmra.mrb[0].mxu0 %v619
      %v1572 = vpop.f32.mrb[0].mxu0
      %v1573 = vadd.f32 %v436, %v1572
      %v1574 = vpop.f32.mrb[0].mxu0
      %1575 = vmatprep.mubr.f32.mxu0 0.0
      %1576 = vmatmul.mubr.f32.gmra.mrb[0].mxu0 %v622
      %v1577 = vpop.f32.mrb[0].mxu0
      %v1578 = vadd.f32 %v436, %v1577
      %v1579 = vpop.f32.mrb[0].mxu0
      %1580 = vmatprep.mubr.f32.mxu0 0.0
      %1581 = vmatmul.mubr.f32.gmra.mrb[0].mxu0 %v625
      %v1582 = vpop.f32.mrb[0].mxu0
      %v1583 = vadd.f32 %v436, %v1582
      %v1584 = vpop.f32.mrb[0].mxu0
      %1585 = vmatprep.mubr.f32.mxu0 0.0
      %1586 = vmatmul.mubr.f32.gmra.mrb[0].mxu0 %v628
      %v1587 = vpop.f32.mrb[0].mxu0
      %v1588 = vadd.f32 %v436, %v1587
      %v1589 = vpop.f32.mrb[0].mxu0
      %1590 = vmatprep.mubr.f32.mxu0 0.0
      %1591 = vmatmul.mubr.f32.gmra.mrb[0].mxu0 %v631
      %v1592 = vpop.f32.mrb[0].mxu0
      %v1593 = vadd.f32 %v436, %v1592
      %v1594 = vpop.f32.mrb[0].mxu0
      %1595 = vmatprep.mubr.f32.mxu0 0.0
      %1596 = vmatmul.mubr.f32.gmra.mrb[0].mxu0 %v634
      %v1597 = vpop.f32.mrb[0].mxu0
      %v1598 = vadd.f32 %v436, %v1597
      %v1599 = vpop.f32.mrb[0].mxu0
      %1600 = vmatprep.mubr.f32.mxu0 0.0
      %1601 = vmatmul.mubr.f32.gmra.mrb[0].mxu0 %v637
      %v1602 = vpop.f32.mrb[0].mxu0
      %v1603 = vadd.f32 %v436, %v1602
      %v1604 = vpop.f32.mrb[0].mxu0
      %1605 = vmatprep.mubr.f32.mxu0 0.0
      %1606 = vmatmul.mubr.f32.gmra.mrb[0].mxu0 %v640
      %v1607 = vpop.f32.mrb[0].mxu0
      %v1608 = vadd.f32 %v436, %v1607
      %v1609 = vpop.f32.mrb[0].mxu0
      %1610 = vmatprep.mubr.f32.mxu0 0.0
      %1611 = vmatmul.mubr.f32.gmra.mrb[0].mxu0 %v643
      %v1612 = vpop.f32.mrb[0].mxu0
      %v1613 = vadd.f32 %v436, %v1612
      %v1614 = vpop.f32.mrb[0].mxu0
      %1615 = vmatprep.mubr.f32.mxu0 0.0
      %1616 = vmatmul.mubr.f32.gmra.mrb[0].mxu0 %v646
      %v1617 = vpop.f32.mrb[0].mxu0
      %v1618 = vadd.f32 %v436, %v1617
      %v1619 = vpop.f32.mrb[0].mxu0
      %1620 = vmatprep.mubr.f32.mxu0 0.0
      %1621 = vmatmul.mubr.f32.gmra.mrb[0].mxu0 %v649
      %v1622 = vpop.f32.mrb[0].mxu0
      %v1623 = vadd.f32 %v436, %v1622
      %v1624 = vpop.f32.mrb[0].mxu0
      %1625 = vmatprep.mubr.f32.mxu0 0.0
      %1626 = vmatmul.mubr.f32.gmra.mrb[0].mxu0 %v652
      %v1627 = vpop.f32.mrb[0].mxu0
      %v1628 = vadd.f32 %v436, %v1627
      %v1629 = vpop.f32.mrb[0].mxu0
      %1630 = vmatprep.mubr.f32.mxu0 0.0
      %1631 = vmatmul.mubr.f32.gmra.mrb[0].mxu0 %v655
      %v1632 = vpop.f32.mrb[0].mxu0
      %v1633 = vadd.f32 %v436, %v1632
      %v1634 = vpop.f32.mrb[0].mxu0
      %1635 = vmatprep.mubr.f32.mxu0 0.0
      %1636 = vmatmul.mubr.f32.gmra.mrb[0].mxu0 %v658
      %v1637 = vpop.f32.mrb[0].mxu0
      %v1638 = vadd.f32 %v436, %v1637
      %v1639 = vpop.f32.mrb[0].mxu0
      %1640 = vmatprep.mubr.f32.mxu0 0.0
      %1641 = vmatmul.mubr.f32.gmra.mrb[0].mxu0 %v661
      %v1642 = vpop.f32.mrb[0].mxu0
      %v1643 = vadd.f32 %v436, %v1642
      %v1644 = vpop.f32.mrb[0].mxu0
      %1645 = vmatprep.mubr.f32.mxu0 0.0
      %1646 = vmatmul.mubr.f32.gmra.mrb[0].mxu0 %v664
      %v1647 = vpop.f32.mrb[0].mxu0
      %v1648 = vadd.f32 %v436, %v1647
      %v1649 = vpop.f32.mrb[0].mxu0
      %1650 = vmatprep.mubr.f32.mxu0 0.0
      %1651 = vmatmul.mubr.f32.gmra.mrb[0].mxu0 %v667
      %v1652 = vpop.f32.mrb[0].mxu0
      %v1653 = vadd.f32 %v436, %v1652
      %v1654 = vpop.f32.mrb[0].mxu0
      %1655 = vmatprep.mubr.f32.mxu0 0.0
      %1656 = vmatmul.mubr.f32.gmra.mrb[0].mxu0 %v670
      %v1657 = vpop.f32.mrb[0].mxu0
      %v1658 = vadd.f32 %v436, %v1657
      %v1659 = vpop.f32.mrb[0].mxu0
      %1660 = vmatprep.mubr.f32.mxu0 0.0
      %1661 = vmatmul.mubr.f32.gmra.mrb[0].mxu0 %v673
      %v1662 = vpop.f32.mrb[0].mxu0
      %v1663 = vadd.f32 %v436, %v1662
      %v1664 = vpop.f32.mrb[0].mxu0
      %1665 = vmatprep.mubr.f32.mxu0 0.0
      %1666 = vmatmul.mubr.f32.gmra.mrb[0].mxu0 %v676
      %v1667 = vpop.f32.mrb[0].mxu0
      %v1668 = vadd.f32 %v436, %v1667
      %v1669 = vpop.f32.mrb[0].mxu0
      %1670 = vmatprep.mubr.f32.mxu0 0.0
      %1671 = vmatmul.mubr.f32.gmra.mrb[0].mxu0 %v679
      %v1672 = vpop.f32.mrb[0].mxu0
      %v1673 = vadd.f32 %v436, %v1672
      %v1674 = vpop.f32.mrb[0].mxu0
      %1675 = vmatprep.mubr.f32.mxu0 0.0
      %1676 = vmatmul.mubr.f32.gmra.mrb[0].mxu0 %v682
      %v1677 = vpop.f32.mrb[0].mxu0
      %v1678 = vadd.f32 %v436, %v1677
      %v1679 = vpop.f32.mrb[0].mxu0
      %1680 = vmatprep.mubr.f32.mxu0 0.0
      %1681 = vmatmul.mubr.f32.gmra.mrb[0].mxu0 %v685
      %v1682 = vpop.f32.mrb[0].mxu0
      %v1683 = vadd.f32 %v436, %v1682
      %v1684 = vpop.f32.mrb[0].mxu0
      %1685 = vmatprep.mubr.f32.mxu0 0.0
      %1686 = vmatmul.mubr.f32.gmra.mrb[0].mxu0 %v688
      %v1687 = vpop.f32.mrb[0].mxu0
      %v1688 = vadd.f32 %v436, %v1687
      %v1689 = vpop.f32.mrb[0].mxu0
      %1690 = vmatprep.mubr.f32.mxu0 0.0
      %1691 = vmatmul.mubr.f32.gmra.mrb[0].mxu0 %v691
      %v1692 = vpop.f32.mrb[0].mxu0
      %v1693 = vadd.f32 %v436, %v1692
      %v1694 = vpop.f32.mrb[0].mxu0
      %1695 = vmatprep.mubr.f32.mxu0 0.0
      %1696 = vmatmul.mubr.f32.gmra.mrb[0].mxu0 %v694
      %v1697 = vpop.f32.mrb[0].mxu0
      %v1698 = vadd.f32 %v436, %v1697
      %v1699 = vpop.f32.mrb[0].mxu0
      %1700 = vmatprep.mubr.f32.mxu0 0.0
      %1701 = vmatmul.mubr.f32.gmra.mrb[0].mxu0 %v697
      %v1702 = vpop.f32.mrb[0].mxu0
      %v1703 = vadd.f32 %v436, %v1702
      %v1704 = vpop.f32.mrb[0].mxu0
      %1705 = vmatprep.mubr.f32.mxu0 0.0
      %1706 = vmatmul.mubr.f32.gmra.mrb[0].mxu0 %v700
      %v1707 = vpop.f32.mrb[0].mxu0
      %v1708 = vadd.f32 %v436, %v1707
      %v1709 = vpop.f32.mrb[0].mxu0
      %1710 = vmatprep.mubr.f32.mxu0 0.0
      %1711 = vmatmul.mubr.f32.gmra.mrb[0].mxu0 %v703
      %v1712 = vpop.f32.mrb[0].mxu0
      %v1713 = vadd.f32 %v436, %v1712
      %v1714 = vpop.f32.mrb[0].mxu0
      %1715 = vmatprep.mubr.f32.mxu0 0.0
      %1716 = vmatmul.mubr.f32.gmra.mrb[0].mxu0 %v706
      %v1717 = vpop.f32.mrb[0].mxu0
      %v1718 = vadd.f32 %v436, %v1717
      %v1719 = vpop.f32.mrb[0].mxu0
      %1720 = vmatprep.mubr.f32.mxu0 0.0
      %1721 = vmatmul.mubr.f32.gmra.mrb[0].mxu0 %v709
      %v1722 = vpop.f32.mrb[0].mxu0
      %v1723 = vadd.f32 %v436, %v1722
      %v1724 = vpop.f32.mrb[0].mxu0
      %1725 = vmatprep.mubr.f32.mxu0 0.0
      %1726 = vmatmul.mubr.f32.gmra.mrb[0].mxu0 %v712
      %v1727 = vpop.f32.mrb[0].mxu0
      %v1728 = vadd.f32 %v436, %v1727
      %v1729 = vpop.f32.mrb[0].mxu0
      %1730 = vmatprep.mubr.f32.mxu0 0.0
      %1731 = vmatmul.mubr.f32.gmra.mrb[0].mxu0 %v715
      %v1732 = vpop.f32.mrb[0].mxu0
      %v1733 = vadd.f32 %v436, %v1732
      %v1734 = vpop.f32.mrb[0].mxu0
      %1735 = vmatprep.mubr.f32.mxu0 0.0
      %1736 = vmatmul.mubr.f32.gmra.mrb[0].mxu0 %v718
      %v1737 = vpop.f32.mrb[0].mxu0
      %v1738 = vadd.f32 %v436, %v1737
      %v1739 = vpop.f32.mrb[0].mxu0
      %1740 = vmatprep.mubr.f32.mxu0 0.0
      %1741 = vmatmul.mubr.f32.gmra.mrb[0].mxu0 %v721
      %v1742 = vpop.f32.mrb[0].mxu0
      %v1743 = vadd.f32 %v436, %v1742
      %v1744 = vpop.f32.mrb[0].mxu0
      %1745 = vmatprep.mubr.f32.mxu0 0.0
      %1746 = vmatmul.mubr.f32.gmra.mrb[0].mxu0 %v724
      %v1747 = vpop.f32.mrb[0].mxu0
      %v1748 = vadd.f32 %v436, %v1747
      %v1749 = vpop.f32.mrb[0].mxu0
      %1750 = vmatprep.mubr.f32.mxu0 0.0
      %1751 = vmatmul.mubr.f32.gmra.mrb[0].mxu0 %v727
      %v1752 = vpop.f32.mrb[0].mxu0
      %v1753 = vadd.f32 %v436, %v1752
      %v1754 = vpop.f32.mrb[0].mxu0
      %1755 = vmatprep.mubr.f32.mxu0 0.0
      %1756 = vmatmul.mubr.f32.gmra.mrb[0].mxu0 %v730
      %v1757 = vpop.f32.mrb[0].mxu0
      %v1758 = vadd.f32 %v436, %v1757
      %v1759 = vpop.f32.mrb[0].mxu0
      %1760 = vmatprep.mubr.f32.mxu0 0.0
      %1761 = vmatmul.mubr.f32.gmra.mrb[0].mxu0 %v733
      %v1762 = vpop.f32.mrb[0].mxu0
      %v1763 = vadd.f32 %v436, %v1762
      %v1764 = vpop.f32.mrb[0].mxu0
      %1765 = vmatprep.mubr.f32.mxu0 0.0
      %1766 = vmatmul.mubr.f32.gmra.mrb[0].mxu0 %v736
      %v1767 = vpop.f32.mrb[0].mxu0
      %v1768 = vadd.f32 %v436, %v1767
      %v1769 = vpop.f32.mrb[0].mxu0
      %1770 = vmatprep.mubr.f32.mxu0 0.0
      %1771 = vmatmul.mubr.f32.gmra.mrb[0].mxu0 %v739
      %v1772 = vpop.f32.mrb[0].mxu0
      %v1773 = vadd.f32 %v436, %v1772
      %v1774 = vpop.f32.mrb[0].mxu0
      %1775 = vmatprep.mubr.f32.mxu0 0.0
      %1776 = vmatmul.mubr.f32.gmra.mrb[0].mxu0 %v742
      %v1777 = vpop.f32.mrb[0].mxu0
      %v1778 = vadd.f32 %v436, %v1777
      %v1779 = vpop.f32.mrb[0].mxu0
      %1780 = vmatprep.mubr.f32.mxu0 0.0
      %1781 = vmatmul.mubr.f32.gmra.mrb[0].mxu0 %v745
      %v1782 = vpop.f32.mrb[0].mxu0
      %v1783 = vadd.f32 %v436, %v1782
      %v1784 = vpop.f32.mrb[0].mxu0
      %1785 = vmatprep.mubr.f32.mxu0 0.0
      %1786 = vmatmul.mubr.f32.gmra.mrb[0].mxu0 %v748
      %v1787 = vpop.f32.mrb[0].mxu0
      %v1788 = vadd.f32 %v436, %v1787
      %v1789 = vpop.f32.mrb[0].mxu0
      %1790 = vmatprep.mubr.f32.mxu0 0.0
      %1791 = vmatmul.mubr.f32.gmra.mrb[0].mxu0 %v751
      %v1792 = vpop.f32.mrb[0].mxu0
      %v1793 = vadd.f32 %v436, %v1792
      %v1794 = vpop.f32.mrb[0].mxu0
      %1795 = vmatprep.mubr.f32.mxu0 0.0
      %1796 = vmatmul.mubr.f32.gmra.mrb[0].mxu0 %v754
      %v1797 = vpop.f32.mrb[0].mxu0
      %v1798 = vadd.f32 %v436, %v1797
      %v1799 = vpop.f32.mrb[0].mxu0
      %1800 = vmatprep.mubr.f32.mxu0 0.0
      %1801 = vmatmul.mubr.f32.gmra.mrb[0].mxu0 %v757
      %v1802 = vpop.f32.mrb[0].mxu0
      %v1803 = vadd.f32 %v436, %v1802
      %v1804 = vpop.f32.mrb[0].mxu0
      %1805 = vmatprep.mubr.f32.mxu0 0.0
      %1806 = vmatmul.mubr.f32.gmra.mrb[0].mxu0 %v760
      %v1807 = vpop.f32.mrb[0].mxu0
      %v1808 = vadd.f32 %v436, %v1807
      %v1809 = vpop.f32.mrb[0].mxu0
      %1810 = vmatprep.mubr.f32.mxu0 0.0
      %1811 = vmatmul.mubr.f32.gmra.mrb[0].mxu0 %v763
      %v1812 = vpop.f32.mrb[0].mxu0
      %v1813 = vadd.f32 %v436, %v1812
      %v1814 = vpop.f32.mrb[0].mxu0
      %1815 = vmatprep.mubr.f32.mxu0 0.0
      %1816 = vmatmul.mubr.f32.gmra.mrb[0].mxu0 %v766
      %v1817 = vpop.f32.mrb[0].mxu0
      %v1818 = vadd.f32 %v436, %v1817
      %v1819 = vpop.f32.mrb[0].mxu0
      %1820 = vmatprep.mubr.f32.mxu0 0.0
      %1821 = vmatmul.mubr.f32.gmra.mrb[0].mxu0 %v769
      %v1822 = vpop.f32.mrb[0].mxu0
      %v1823 = vadd.f32 %v436, %v1822
      %v1824 = vpop.f32.mrb[0].mxu0
      %1825 = vmatprep.mubr.f32.mxu0 0.0
      %1826 = vmatmul.mubr.f32.gmra.mrb[0].mxu0 %v772
      %v1827 = vpop.f32.mrb[0].mxu0
      %v1828 = vadd.f32 %v436, %v1827
      %v1829 = vpop.f32.mrb[0].mxu0
      %1830 = vmatprep.mubr.f32.mxu0 0.0
      %1831 = vmatmul.mubr.f32.gmra.mrb[0].mxu0 %v775
      %v1832 = vpop.f32.mrb[0].mxu0
      %v1833 = vadd.f32 %v436, %v1832
      %v1834 = vpop.f32.mrb[0].mxu0
      %1835 = vmatprep.mubr.f32.mxu0 0.0
      %1836 = vmatmul.mubr.f32.gmra.mrb[0].mxu0 %v778
      %v1837 = vpop.f32.mrb[0].mxu0
      %v1838 = vadd.f32 %v436, %v1837
      %v1839 = vpop.f32.mrb[0].mxu0
      %1840 = vmatprep.mubr.f32.mxu0 0.0
      %1841 = vmatmul.mubr.f32.gmra.mrb[0].mxu0 %v781
      %v1842 = vpop.f32.mrb[0].mxu0
      %v1843 = vadd.f32 %v436, %v1842
      %v1844 = vpop.f32.mrb[0].mxu0
      %1845 = vmatprep.mubr.f32.mxu0 0.0
      %1846 = vmatmul.mubr.f32.gmra.mrb[0].mxu0 %v784
      %v1847 = vpop.f32.mrb[0].mxu0
      %v1848 = vadd.f32 %v436, %v1847
      %v1849 = vpop.f32.mrb[0].mxu0
      %1850 = vmatprep.mubr.f32.mxu0 0.0
      %1851 = vmatmul.mubr.f32.gmra.mrb[0].mxu0 %v787
      %v1852 = vpop.f32.mrb[0].mxu0
      %v1853 = vadd.f32 %v436, %v1852
      %v1854 = vpop.f32.mrb[0].mxu0
      %1855 = vmatprep.mubr.f32.mxu0 0.0
      %1856 = vmatmul.mubr.f32.gmra.mrb[0].mxu0 %v790
      %v1857 = vpop.f32.mrb[0].mxu0
      %v1858 = vadd.f32 %v436, %v1857
      %v1859 = vpop.f32.mrb[0].mxu0
      %1860 = vmatprep.mubr.f32.mxu0 0.0
      %1861 = vmatmul.mubr.f32.gmra.mrb[0].mxu0 %v793
      %v1862 = vpop.f32.mrb[0].mxu0
      %v1863 = vadd.f32 %v436, %v1862
      %v1864 = vpop.f32.mrb[0].mxu0
      %1865 = vmatprep.mubr.f32.mxu0 0.0
      %1866 = vmatmul.mubr.f32.gmra.mrb[0].mxu0 %v796
      %v1867 = vpop.f32.mrb[0].mxu0
      %v1868 = vadd.f32 %v436, %v1867
      %v1869 = vpop.f32.mrb[0].mxu0
      %1870 = vmatprep.mubr.f32.mxu0 0.0
      %1871 = vmatmul.mubr.f32.gmra.mrb[0].mxu0 %v799
      %v1872 = vpop.f32.mrb[0].mxu0
      %v1873 = vadd.f32 %v436, %v1872
      %v1874 = vpop.f32.mrb[0].mxu0
      %1875 = vmatprep.mubr.f32.mxu0 0.0
      %1876 = vmatmul.mubr.f32.gmra.mrb[0].mxu0 %v802
      %v1877 = vpop.f32.mrb[0].mxu0
      %v1878 = vadd.f32 %v436, %v1877
      %v1879 = vpop.f32.mrb[0].mxu0
      %1880 = vmatprep.mubr.f32.mxu0 0.0
      %1881 = vmatmul.mubr.f32.gmra.mrb[0].mxu0 %v805
      %v1882 = vpop.f32.mrb[0].mxu0
      %v1883 = vadd.f32 %v436, %v1882
      %v1884 = vpop.f32.mrb[0].mxu0
      %1885 = vmatprep.mubr.f32.mxu0 0.0
      %1886 = vmatmul.mubr.f32.gmra.mrb[0].mxu0 %v808
      %v1887 = vpop.f32.mrb[0].mxu0
      %v1888 = vadd.f32 %v436, %v1887
      %v1889 = vpop.f32.mrb[0].mxu0
      %1890 = vmatprep.mubr.f32.mxu0 0.0
      %1891 = vmatmul.mubr.f32.gmra.mrb[0].mxu0 %v811
      %v1892 = vpop.f32.mrb[0].mxu0
      %v1893 = vadd.f32 %v436, %v1892
      %v1894 = vpop.f32.mrb[0].mxu0
      %1895 = vmatprep.mubr.f32.mxu0 0.0
      %1896 = vmatmul.mubr.f32.gmra.mrb[0].mxu0 %v814
      %v1897 = vpop.f32.mrb[0].mxu0
      %v1898 = vadd.f32 %v436, %v1897
      %v1899 = vpop.f32.mrb[0].mxu0
      %1900 = vmatprep.mubr.f32.mxu0 0.0
      %1901 = vmatmul.mubr.f32.gmra.mrb[0].mxu0 %v817
      %v1902 = vpop.f32.mrb[0].mxu0
      %v1903 = vadd.f32 %v436, %v1902
      %v1904 = vpop.f32.mrb[0].mxu0
      %1905 = vmatprep.mubr.f32.mxu0 0.0
      %1906 = vmatmul.mubr.f32.gmra.mrb[0].mxu0 %v820
      %v1907 = vpop.f32.mrb[0].mxu0
      %v1908 = vadd.f32 %v436, %v1907
      %v1909 = vpop.f32.mrb[0].mxu0
      %1910 = vmatprep.mubr.f32.mxu0 0.0
      %1911 = vmatmul.mubr.f32.gmra.mrb[0].mxu0 %v823
      %v1912 = vpop.f32.mrb[0].mxu0
      %v1913 = vadd.f32 %v436, %v1912
      %v1914 = vpop.f32.mrb[0].mxu0
      %1915 = vmatprep.mubr.f32.mxu0 0.0
      %1916 = vmatmul.mubr.f32.gmra.mrb[0].mxu0 %v826
      %v1917 = vpop.f32.mrb[0].mxu0
      %v1918 = vadd.f32 %v436, %v1917
      %v1919 = vpop.f32.mrb[0].mxu0
      %1920 = vmatprep.mubr.f32.mxu0 0.0
      %1921 = vmatmul.mubr.f32.gmra.mrb[0].mxu0 %v829
      %v1922 = vpop.f32.mrb[0].mxu0
      %v1923 = vadd.f32 %v436, %v1922
      %v1924 = vpop.f32.mrb[0].mxu0
      %1925 = vmatprep.mubr.f32.mxu0 0.0
      %1926 = vmatmul.mubr.f32.gmra.mrb[0].mxu0 %v832
      %v1927 = vpop.f32.mrb[0].mxu0
      %v1928 = vadd.f32 %v436, %v1927
      %v1929 = vpop.f32.mrb[0].mxu0
      %1930 = vmatprep.mubr.f32.mxu0 0.0
      %1931 = vmatmul.mubr.f32.gmra.mrb[0].mxu0 %v835
      %v1932 = vpop.f32.mrb[0].mxu0
      %v1933 = vadd.f32 %v436, %v1932
      %v1934 = vpop.f32.mrb[0].mxu0
      %1935 = vmatprep.mubr.f32.mxu0 0.0
      %1936 = vmatmul.mubr.f32.gmra.mrb[0].mxu0 %v838
      %v1937 = vpop.f32.mrb[0].mxu0
      %v1938 = vadd.f32 %v436, %v1937
      %v1939 = vpop.f32.mrb[0].mxu0
      %1940 = vmatprep.mubr.f32.mxu0 0.0
      %1941 = vmatmul.mubr.f32.gmra.mrb[0].mxu0 %v841
      %v1942 = vpop.f32.mrb[0].mxu0
      %v1943 = vadd.f32 %v436, %v1942
      %v1944 = vpop.f32.mrb[0].mxu0
      %1945 = vmatprep.mubr.f32.mxu0 0.0
      %1946 = vmatmul.mubr.f32.gmra.mrb[0].mxu0 %v844
      %v1947 = vpop.f32.mrb[0].mxu0
      %v1948 = vadd.f32 %v436, %v1947
      %v1949 = vpop.f32.mrb[0].mxu0
      %1950 = vmatprep.mubr.f32.mxu0 0.0
      %1951 = vmatmul.mubr.f32.gmra.mrb[0].mxu0 %v847
      %v1952 = vpop.f32.mrb[0].mxu0
      %v1953 = vadd.f32 %v436, %v1952
      %v1954 = vpop.f32.mrb[0].mxu0
      %1955 = vmatprep.mubr.f32.mxu0 0.0
      %1956 = vmatmul.mubr.f32.gmra.mrb[0].mxu0 %v850
      %v1957 = vpop.f32.mrb[0].mxu0
      %v1958 = vadd.f32 %v436, %v1957
      %v1959 = vpop.f32.mrb[0].mxu0
      %1960 = vmatprep.mubr.f32.mxu0 0.0
      %1961 = vmatmul.mubr.f32.gmra.mrb[0].mxu0 %v853
      %v1962 = vpop.f32.mrb[0].mxu0
      %v1963 = vadd.f32 %v436, %v1962
      %v1964 = vpop.f32.mrb[0].mxu0
      %1965 = vmatprep.mubr.f32.mxu0 0.0
      %1966 = vmatmul.mubr.f32.gmra.mrb[0].mxu0 %v856
      %v1967 = vpop.f32.mrb[0].mxu0
      %v1968 = vadd.f32 %v436, %v1967
      %v1969 = vpop.f32.mrb[0].mxu0
      %1970 = vmatprep.mubr.f32.mxu0 0.0
      %1971 = vmatmul.mubr.f32.gmra.mrb[0].mxu0 %v859
      %v1972 = vpop.f32.mrb[0].mxu0
      %v1973 = vadd.f32 %v436, %v1972
      %v1974 = vpop.f32.mrb[0].mxu0
      %1975 = vmatprep.mubr.f32.mxu0 0.0
      %1976 = vmatmul.mubr.f32.gmra.mrb[0].mxu0 %v862
      %v1977 = vpop.f32.mrb[0].mxu0
      %v1978 = vadd.f32 %v436, %v1977
      %v1979 = vpop.f32.mrb[0].mxu0
      %1980 = vmatprep.mubr.f32.mxu0 0.0
      %1981 = vmatmul.mubr.f32.gmra.mrb[0].mxu0 %v865
      %v1982 = vpop.f32.mrb[0].mxu0
      %v1983 = vadd.f32 %v436, %v1982
      %v1984 = vpop.f32.mrb[0].mxu0
      %1985 = vmatprep.mubr.f32.mxu0 0.0
      %1986 = vmatmul.mubr.f32.gmra.mrb[0].mxu0 %v868
      %v1987 = vpop.f32.mrb[0].mxu0
      %v1988 = vadd.f32 %v436, %v1987
      %v1989 = vpop.f32.mrb[0].mxu0
      %1990 = vmatprep.mubr.f32.mxu0 0.0
      %1991 = vmatmul.mubr.f32.gmra.mrb[0].mxu0 %v871
      %v1992 = vpop.f32.mrb[0].mxu0
      %v1993 = vadd.f32 %v436, %v1992
      %v1994 = vpop.f32.mrb[0].mxu0
      %1995 = vmatprep.mubr.f32.mxu0 0.0
      %1996 = vmatmul.mubr.f32.gmra.mrb[0].mxu0 %v874
      %v1997 = vpop.f32.mrb[0].mxu0
      %v1998 = vadd.f32 %v436, %v1997
      %v1999 = vpop.f32.mrb[0].mxu0
      %2000 = vmatprep.mubr.f32.mxu0 0.0
      %2001 = vmatmul.mubr.f32.gmra.mrb[0].mxu0 %v877
      %v2002 = vpop.f32.mrb[0].mxu0
      %v2003 = vadd.f32 %v436, %v2002
      %v2004 = vpop.f32.mrb[0].mxu0
      %2005 = vmatprep.mubr.f32.mxu0 0.0
      %2006 = vmatmul.mubr.f32.gmra.mrb[0].mxu0 %v880
      %v2007 = vpop.f32.mrb[0].mxu0
      %v2008 = vadd.f32 %v436, %v2007
      %v2009 = vpop.f32.mrb[0].mxu0
      %2010 = vmatprep.mubr.f32.mxu0 0.0
      %2011 = vmatmul.mubr.f32.gmra.mrb[0].mxu0 %v883
      %v2012 = vpop.f32.mrb[0].mxu0
      %v2013 = vadd.f32 %v436, %v2012
      %v2014 = vpop.f32.mrb[0].mxu0
      %2015 = vmatprep.mubr.f32.mxu0 0.0
      %2016 = vmatmul.mubr.f32.gmra.mrb[0].mxu0 %v886
      %v2017 = vpop.f32.mrb[0].mxu0
      %v2018 = vadd.f32 %v436, %v2017
      %v2019 = vpop.f32.mrb[0].mxu0
      %2020 = vmatprep.mubr.f32.mxu0 0.0
      %2021 = vmatmul.mubr.f32.gmra.mrb[0].mxu0 %v889
      %v2022 = vpop.f32.mrb[0].mxu0
      %v2023 = vadd.f32 %v436, %v2022
      %v2024 = vpop.f32.mrb[0].mxu0
      %2025 = vmatprep.mubr.f32.mxu0 0.0
      %2026 = vmatmul.mubr.f32.gmra.mrb[0].mxu0 %v892
      %v2027 = vpop.f32.mrb[0].mxu0
      %v2028 = vadd.f32 %v436, %v2027
      %v2029 = vpop.f32.mrb[0].mxu0
      %2030 = vmatprep.mubr.f32.mxu0 0.0
      %2031 = vmatmul.mubr.f32.gmra.mrb[0].mxu0 %v895
      %v2032 = vpop.f32.mrb[0].mxu0
      %v2033 = vadd.f32 %v436, %v2032
      %v2034 = vpop.f32.mrb[0].mxu0
      %2035 = vmatprep.mubr.f32.mxu0 0.0
      %2036 = vmatmul.mubr.f32.gmra.mrb[0].mxu0 %v898
      %v2037 = vpop.f32.mrb[0].mxu0
      %v2038 = vadd.f32 %v436, %v2037
      %v2039 = vpop.f32.mrb[0].mxu0
      %2040 = vmatprep.mubr.f32.mxu0 0.0
      %2041 = vmatmul.mubr.f32.gmra.mrb[0].mxu0 %v901
      %v2042 = vpop.f32.mrb[0].mxu0
      %v2043 = vadd.f32 %v436, %v2042
      %v2044 = vpop.f32.mrb[0].mxu0
      %2045 = vmatprep.mubr.f32.mxu0 0.0
      %2046 = vmatmul.mubr.f32.gmra.mrb[0].mxu0 %v904
      %v2047 = vpop.f32.mrb[0].mxu0
      %v2048 = vadd.f32 %v436, %v2047
      %v2049 = vpop.f32.mrb[0].mxu0
      %2050 = vmatprep.mubr.f32.mxu0 0.0
      %2051 = vmatmul.mubr.f32.gmra.mrb[0].mxu0 %v907
      %v2052 = vpop.f32.mrb[0].mxu0
      %v2053 = vadd.f32 %v436, %v2052
      %v2054 = vpop.f32.mrb[0].mxu0
      %2055 = vmatprep.mubr.f32.mxu0 0.0
      %2056 = vmatmul.mubr.f32.gmra.mrb[0].mxu0 %v910
      %v2057 = vpop.f32.mrb[0].mxu0
      %v2058 = vadd.f32 %v436, %v2057
      %v2059 = vpop.f32.mrb[0].mxu0
      %2060 = vmatprep.mubr.f32.mxu0 0.0
      %2061 = vmatmul.mubr.f32.gmra.mrb[0].mxu0 %v913
      %v2062 = vpop.f32.mrb[0].mxu0
      %v2063 = vadd.f32 %v436, %v2062
      %v2064 = vpop.f32.mrb[0].mxu0
      %2065 = vmatprep.mubr.f32.mxu0 0.0
      %2066 = vmatmul.mubr.f32.gmra.mrb[0].mxu0 %v916
      %v2067 = vpop.f32.mrb[0].mxu0
      %v2068 = vadd.f32 %v436, %v2067
      %v2069 = vpop.f32.mrb[0].mxu0
      %2070 = vmatprep.mubr.f32.mxu0 0.0
      %2071 = vmatmul.mubr.f32.gmra.mrb[0].mxu0 %v919
      %v2072 = vpop.f32.mrb[0].mxu0
      %v2073 = vadd.f32 %v436, %v2072
      %v2074 = vpop.f32.mrb[0].mxu0
      %2075 = vmatprep.mubr.f32.mxu0 0.0
      %2076 = vmatmul.mubr.f32.gmra.mrb[0].mxu0 %v922
      %v2077 = vpop.f32.mrb[0].mxu0
      %v2078 = vadd.f32 %v436, %v2077
      %v2079 = vpop.f32.mrb[0].mxu0
      %2080 = vmatprep.mubr.f32.mxu0 0.0
      %2081 = vmatmul.mubr.f32.gmra.mrb[0].mxu0 %v925
      %v2082 = vpop.f32.mrb[0].mxu0
      %v2083 = vadd.f32 %v436, %v2082
      %v2084 = vpop.f32.mrb[0].mxu0
      %2085 = vmatprep.mubr.f32.mxu0 0.0
      %2086 = vmatmul.mubr.f32.gmra.mrb[0].mxu0 %v928
      %v2087 = vpop.f32.mrb[0].mxu0
      %v2088 = vadd.f32 %v436, %v2087
      %v2089 = vpop.f32.mrb[0].mxu0
      %2090 = vmatprep.mubr.f32.mxu0 0.0
      %2091 = vmatmul.mubr.f32.gmra.mrb[0].mxu0 %v931
      %v2092 = vpop.f32.mrb[0].mxu0
      %v2093 = vadd.f32 %v436, %v2092
      %v2094 = vpop.f32.mrb[0].mxu0
      %2095 = vmatprep.mubr.f32.mxu0 0.0
      %2096 = vmatmul.mubr.f32.gmra.mrb[0].mxu0 %v934
      %v2097 = vpop.f32.mrb[0].mxu0
      %v2098 = vadd.f32 %v436, %v2097
      %v2099 = vpop.f32.mrb[0].mxu0
      %2100 = vmatprep.mubr.f32.mxu0 0.0
      %2101 = vmatmul.mubr.f32.gmra.mrb[0].mxu0 %v937
      %v2102 = vpop.f32.mrb[0].mxu0
      %v2103 = vadd.f32 %v436, %v2102
      %v2104 = vpop.f32.mrb[0].mxu0
      %2105 = vmatprep.mubr.f32.mxu0 0.0
      %2106 = vmatmul.mubr.f32.gmra.mrb[0].mxu0 %v940
      %v2107 = vpop.f32.mrb[0].mxu0
      %v2108 = vadd.f32 %v436, %v2107
      %v2109 = vpop.f32.mrb[0].mxu0
      %2110 = vmatprep.mubr.f32.mxu0 0.0
      %2111 = vmatmul.mubr.f32.gmra.mrb[0].mxu0 %v943
      %v2112 = vpop.f32.mrb[0].mxu0
      %v2113 = vadd.f32 %v436, %v2112
      %v2114 = vpop.f32.mrb[0].mxu0
      %2115 = vmatprep.mubr.f32.mxu0 0.0
      %2116 = vmatmul.mubr.f32.gmra.mrb[0].mxu0 %v946
      %v2117 = vpop.f32.mrb[0].mxu0
      %v2118 = vadd.f32 %v436, %v2117
      %v2119 = vpop.f32.mrb[0].mxu0
      %2120 = vmatprep.mubr.f32.mxu0 0.0
      %2121 = vmatmul.mubr.f32.gmra.mrb[0].mxu0 %v949
      %v2122 = vpop.f32.mrb[0].mxu0
      %v2123 = vadd.f32 %v436, %v2122
      %v2124 = vpop.f32.mrb[0].mxu0
      %2125 = vmatprep.mubr.f32.mxu0 0.0
      %2126 = vmatmul.mubr.f32.gmra.mrb[0].mxu0 %v952
      %v2127 = vpop.f32.mrb[0].mxu0
      %v2128 = vadd.f32 %v436, %v2127
      %v2129 = vpop.f32.mrb[0].mxu0
      %2130 = vmatprep.mubr.f32.mxu0 0.0
      %2131 = vmatmul.mubr.f32.gmra.mrb[0].mxu0 %v955
      %v2132 = vpop.f32.mrb[0].mxu0
      %v2133 = vadd.f32 %v436, %v2132
      %v2134 = vpop.f32.mrb[0].mxu0
      %2135 = vmatprep.mubr.f32.mxu0 0.0
      %2136 = vmatmul.mubr.f32.gmra.mrb[0].mxu0 %v958
      %v2137 = vpop.f32.mrb[0].mxu0
      %v2138 = vadd.f32 %v436, %v2137
      %v2139 = vpop.f32.mrb[0].mxu0
      %2140 = vmatprep.mubr.f32.mxu0 0.0
      %2141 = vmatmul.mubr.f32.gmra.mrb[0].mxu0 %v961
      %v2142 = vpop.f32.mrb[0].mxu0
      %v2143 = vadd.f32 %v436, %v2142
      %v2144 = vpop.f32.mrb[0].mxu0
      %2145 = vmatprep.mubr.f32.mxu0 0.0
      %2146 = vmatmul.mubr.f32.gmra.mrb[0].mxu0 %v964
      %v2147 = vpop.f32.mrb[0].mxu0
      %v2148 = vadd.f32 %v436, %v2147
      %v2149 = vpop.f32.mrb[0].mxu0
      %2150 = vmatprep.mubr.f32.mxu0 0.0
      %2151 = vmatmul.mubr.f32.gmra.mrb[0].mxu0 %v967
      %v2152 = vpop.f32.mrb[0].mxu0
      %v2153 = vadd.f32 %v436, %v2152
      %v2154 = vpop.f32.mrb[0].mxu0
      %2155 = vmatprep.mubr.f32.mxu0 0.0
      %2156 = vmatmul.mubr.f32.gmra.mrb[0].mxu0 %v970
      %v2157 = vpop.f32.mrb[0].mxu0
      %v2158 = vadd.f32 %v436, %v2157
      %v2159 = vpop.f32.mrb[0].mxu0
      %2160 = vmatprep.mubr.f32.mxu0 0.0
      %2161 = vmatmul.mubr.f32.gmra.mrb[0].mxu0 %v973
      %v2162 = vpop.f32.mrb[0].mxu0
      %v2163 = vadd.f32 %v436, %v2162
      %v2164 = vpop.f32.mrb[0].mxu0
      %2165 = vmatprep.mubr.f32.mxu0 0.0
      %2166 = vmatmul.mubr.f32.gmra.mrb[0].mxu0 %v976
      %v2167 = vpop.f32.mrb[0].mxu0
      %v2168 = vadd.f32 %v436, %v2167
      %v2169 = vpop.f32.mrb[0].mxu0
      %2170 = vmatprep.mubr.f32.mxu0 0.0
      %2171 = vmatmul.mubr.f32.gmra.mrb[0].mxu0 %v979
      %v2172 = vpop.f32.mrb[0].mxu0
      %v2173 = vadd.f32 %v436, %v2172
      %v2174 = vpop.f32.mrb[0].mxu0
      %2175 = vmatprep.mubr.f32.mxu0 0.0
      %2176 = vmatmul.mubr.f32.gmra.mrb[0].mxu0 %v982
      %v2177 = vpop.f32.mrb[0].mxu0
      %v2178 = vadd.f32 %v436, %v2177
      %v2179 = vpop.f32.mrb[0].mxu0
      %2180 = vmatprep.mubr.f32.mxu0 0.0
      %2181 = vmatmul.mubr.f32.gmra.mrb[0].mxu0 %v985
      %v2182 = vpop.f32.mrb[0].mxu0
      %v2183 = vadd.f32 %v436, %v2182
      %v2184 = vpop.f32.mrb[0].mxu0
      %2185 = vmatprep.mubr.f32.mxu0 0.0
      %2186 = vmatmul.mubr.f32.gmra.mrb[0].mxu0 %v988
      %v2187 = vpop.f32.mrb[0].mxu0
      %v2188 = vadd.f32 %v436, %v2187
      %v2189 = vpop.f32.mrb[0].mxu0
      %2190 = vmatprep.mubr.f32.mxu0 0.0
      %2191 = vmatmul.mubr.f32.gmra.mrb[0].mxu0 %v991
      %v2192 = vpop.f32.mrb[0].mxu0
      %v2193 = vadd.f32 %v436, %v2192
      %v2194 = vpop.f32.mrb[0].mxu0
      %2195 = vmatprep.mubr.f32.mxu0 0.0
      %2196 = vmatmul.mubr.f32.gmra.mrb[0].mxu0 %v994
      %v2197 = vpop.f32.mrb[0].mxu0
      %v2198 = vadd.f32 %v436, %v2197
      %v2199 = vpop.f32.mrb[0].mxu0
      %2200 = vmatprep.mubr.f32.mxu0 0.0
      %2201 = vmatmul.mubr.f32.gmra.mrb[0].mxu0 %v997
      %v2202 = vpop.f32.mrb[0].mxu0
      %v2203 = vadd.f32 %v436, %v2202
      %v2204 = vpop.f32.mrb[0].mxu0
      %2205 = vmatprep.mubr.f32.mxu0 0.0
      %2206 = vmatmul.mubr.f32.gmra.mrb[0].mxu0 %v1000
      %v2207 = vpop.f32.mrb[0].mxu0
      %v2208 = vadd.f32 %v436, %v2207
      %v2209 = vpop.f32.mrb[0].mxu0
      %2210 = vmatprep.mubr.f32.mxu0 0.0
      %2211 = vmatmul.mubr.f32.gmra.mrb[0].mxu0 %v1003
      %v2212 = vpop.f32.mrb[0].mxu0
      %v2213 = vadd.f32 %v436, %v2212
      %v2214 = vpop.f32.mrb[0].mxu0
      %2215 = vmatprep.mubr.f32.mxu0 0.0
      %2216 = vmatmul.mubr.f32.gmra.mrb[0].mxu0 %v1006
      %v2217 = vpop.f32.mrb[0].mxu0
      %v2218 = vadd.f32 %v436, %v2217
      %v2219 = vpop.f32.mrb[0].mxu0
      %2220 = vmatprep.mubr.f32.mxu0 0.0
      %2221 = vmatmul.mubr.f32.gmra.mrb[0].mxu0 %v1009
      %v2222 = vpop.f32.mrb[0].mxu0
      %v2223 = vadd.f32 %v436, %v2222
      %v2224 = vpop.f32.mrb[0].mxu0
      %2225 = vmatprep.mubr.f32.mxu0 0.0
      %2226 = vmatmul.mubr.f32.gmra.mrb[0].mxu0 %v1012
      %v2227 = vpop.f32.mrb[0].mxu0
      %v2228 = vadd.f32 %v436, %v2227
      %v2229 = vpop.f32.mrb[0].mxu0
      %2230 = vmatprep.mubr.f32.mxu0 0.0
      %2231 = vmatmul.mubr.f32.gmra.mrb[0].mxu0 %v1015
      %v2232 = vpop.f32.mrb[0].mxu0
      %v2233 = vadd.f32 %v436, %v2232
      %v2234 = vpop.f32.mrb[0].mxu0
      %2235 = vmatprep.mubr.f32.mxu0 0.0
      %2236 = vmatmul.mubr.f32.gmra.mrb[0].mxu0 %v1018
      %v2237 = vpop.f32.mrb[0].mxu0
      %v2238 = vadd.f32 %v436, %v2237
      %v2239 = vpop.f32.mrb[0].mxu0
      %2240 = vmatprep.mubr.f32.mxu0 0.0
      %2241 = vmatmul.mubr.f32.gmra.mrb[0].mxu0 %v1021
      %v2242 = vpop.f32.mrb[0].mxu0
      %v2243 = vadd.f32 %v436, %v2242
      %v2244 = vpop.f32.mrb[0].mxu0
      %2245 = vmatprep.mubr.f32.mxu0 0.0
      %2246 = vmatmul.mubr.f32.gmra.mrb[0].mxu0 %v1024
      %v2247 = vpop.f32.mrb[0].mxu0
      %v2248 = vadd.f32 %v436, %v2247
      %v2249 = vpop.f32.mrb[0].mxu0
      %2250 = vmatprep.mubr.f32.mxu0 0.0
      %2251 = vmatmul.mubr.f32.gmra.mrb[0].mxu0 %v1027
      %v2252 = vpop.f32.mrb[0].mxu0
      %v2253 = vadd.f32 %v436, %v2252
      %v2254 = vpop.f32.mrb[0].mxu0
      %2255 = vmatprep.mubr.f32.mxu0 0.0
      %2256 = vmatmul.mubr.f32.gmra.mrb[0].mxu0 %v1030
      %v2257 = vpop.f32.mrb[0].mxu0
      %v2258 = vadd.f32 %v436, %v2257
      %v2259 = vpop.f32.mrb[0].mxu0
      %2260 = vmatprep.mubr.f32.mxu0 0.0
      %2261 = vmatmul.mubr.f32.gmra.mrb[0].mxu0 %v1033
      %v2262 = vpop.f32.mrb[0].mxu0
      %v2263 = vadd.f32 %v436, %v2262
      %v2264 = vpop.f32.mrb[0].mxu0
      %2265 = vmatprep.mubr.f32.mxu0 0.0
      %2266 = vmatmul.mubr.f32.gmra.mrb[0].mxu0 %v1036
      %v2267 = vpop.f32.mrb[0].mxu0
      %v2268 = vadd.f32 %v436, %v2267
      %v2269 = vpop.f32.mrb[0].mxu0
      %2270 = vmatprep.mubr.f32.mxu0 0.0
      %2271 = vmatmul.mubr.f32.gmra.mrb[0].mxu0 %v1039
      %v2272 = vpop.f32.mrb[0].mxu0
      %v2273 = vadd.f32 %v436, %v2272
      %v2274 = vpop.f32.mrb[0].mxu0
      %2275 = vmatprep.mubr.f32.mxu0 0.0
      %2276 = vmatmul.mubr.f32.gmra.mrb[0].mxu0 %v1042
      %v2277 = vpop.f32.mrb[0].mxu0
      %v2278 = vadd.f32 %v436, %v2277
      %v2279 = vpop.f32.mrb[0].mxu0
      %2280 = vmatprep.mubr.f32.mxu0 0.0
      %2281 = vmatmul.mubr.f32.gmra.mrb[0].mxu0 %v1045
      %v2282 = vpop.f32.mrb[0].mxu0
      %v2283 = vadd.f32 %v436, %v2282
      %v2284 = vpop.f32.mrb[0].mxu0
      %2285 = vmatprep.mubr.f32.mxu0 0.0
      %2286 = vmatmul.mubr.f32.gmra.mrb[0].mxu0 %v1048
      %v2287 = vpop.f32.mrb[0].mxu0
      %v2288 = vadd.f32 %v436, %v2287
      %v2289 = vpop.f32.mrb[0].mxu0
      %2290 = vmatprep.mubr.f32.mxu0 0.0
      %2291 = vmatmul.mubr.f32.gmra.mrb[0].mxu0 %v1051
      %v2292 = vpop.f32.mrb[0].mxu0
      %v2293 = vadd.f32 %v436, %v2292
      %v2294 = vpop.f32.mrb[0].mxu0
      %2295 = vmatprep.mubr.f32.mxu0 0.0
      %2296 = vmatmul.mubr.f32.gmra.mrb[0].mxu0 %v1054
      %v2297 = vpop.f32.mrb[0].mxu0
      %v2298 = vadd.f32 %v436, %v2297
      %v2299 = vpop.f32.mrb[0].mxu0
      %2300 = vmatprep.mubr.f32.mxu0 0.0
      %2301 = vmatmul.mubr.f32.gmra.mrb[0].mxu0 %v1057
      %v2302 = vpop.f32.mrb[0].mxu0
      %v2303 = vadd.f32 %v436, %v2302
      %v2304 = vpop.f32.mrb[0].mxu0
      %2305 = vmatprep.mubr.f32.mxu0 0.0
      %2306 = vmatmul.mubr.f32.gmra.mrb[0].mxu0 %v1060
      %v2307 = vpop.f32.mrb[0].mxu0
      %v2308 = vadd.f32 %v436, %v2307
      %v2309 = vpop.f32.mrb[0].mxu0
      %2310 = vmatprep.mubr.f32.mxu0 0.0
      %2311 = vmatmul.mubr.f32.gmra.mrb[0].mxu0 %v1063
      %v2312 = vpop.f32.mrb[0].mxu0
      %v2313 = vadd.f32 %v436, %v2312
      %v2314 = vpop.f32.mrb[0].mxu0
      %2315 = vmatprep.mubr.f32.mxu0 0.0
      %2316 = vmatmul.mubr.f32.gmra.mrb[0].mxu0 %v1066
      %v2317 = vpop.f32.mrb[0].mxu0
      %v2318 = vadd.f32 %v436, %v2317
      %v2319 = vpop.f32.mrb[0].mxu0
      %2320 = vmatprep.mubr.f32.mxu0 0.0
      %2321 = vmatmul.mubr.f32.gmra.mrb[0].mxu0 %v1069
      %v2322 = vpop.f32.mrb[0].mxu0
      %v2323 = vadd.f32 %v436, %v2322
      %v2324 = vpop.f32.mrb[0].mxu0
      %2325 = vmatprep.mubr.f32.mxu0 0.0
      %2326 = vmatmul.mubr.f32.gmra.mrb[0].mxu0 %v1072
      %v2327 = vpop.f32.mrb[0].mxu0
      %v2328 = vadd.f32 %v436, %v2327
      %v2329 = vpop.f32.mrb[0].mxu0
      %2330 = vmatprep.mubr.f32.mxu0 0.0
      %2331 = vmatmul.mubr.f32.gmra.mrb[0].mxu0 %v1075
      %v2332 = vpop.f32.mrb[0].mxu0
      %v2333 = vadd.f32 %v436, %v2332
      %v2334 = vpop.f32.mrb[0].mxu0
      %2335 = vmatprep.mubr.f32.mxu0 0.0
      %2336 = vmatmul.mubr.f32.gmra.mrb[0].mxu0 %v1078
      %v2337 = vpop.f32.mrb[0].mxu0
      %v2338 = vadd.f32 %v436, %v2337
      %v2339 = vpop.f32.mrb[0].mxu0
      %2340 = vmatprep.mubr.f32.mxu0 0.0
      %2341 = vmatmul.mubr.f32.gmra.mrb[0].mxu0 %v1081
      %v2342 = vpop.f32.mrb[0].mxu0
      %v2343 = vadd.f32 %v436, %v2342
      %v2344 = vpop.f32.mrb[0].mxu0
      %2345 = vmatprep.mubr.f32.mxu0 0.0
      %2346 = vmatmul.mubr.f32.gmra.mrb[0].mxu0 %v1084
      %v2347 = vpop.f32.mrb[0].mxu0
      %v2348 = vadd.f32 %v436, %v2347
      %v2349 = vpop.f32.mrb[0].mxu0
      %2350 = vmatprep.mubr.f32.mxu0 0.0
      %2351 = vmatmul.mubr.f32.gmra.mrb[0].mxu0 %v1087
      %v2352 = vpop.f32.mrb[0].mxu0
      %v2353 = vadd.f32 %v436, %v2352
      %v2354 = vpop.f32.mrb[0].mxu0
      %2355 = vmatprep.mubr.f32.mxu0 0.0
      %2356 = vmatmul.mubr.f32.gmra.mrb[0].mxu0 %v1090
      %v2357 = vpop.f32.mrb[0].mxu0
      %v2358 = vadd.f32 %v436, %v2357
      %v2359 = vpop.f32.mrb[0].mxu0
      %2360 = vmatprep.mubr.f32.mxu0 0.0
      %2361 = vmatmul.mubr.f32.gmra.mrb[0].mxu0 %v1093
      %v2362 = vpop.f32.mrb[0].mxu0
      %v2363 = vadd.f32 %v436, %v2362
      %v2364 = vpop.f32.mrb[0].mxu0
      %2365 = vmatprep.mubr.f32.mxu0 0.0
      %2366 = vmatmul.mubr.f32.gmra.mrb[0].mxu0 %v1096
      %v2367 = vpop.f32.mrb[0].mxu0
      %v2368 = vadd.f32 %v436, %v2367
      %v2369 = vpop.f32.mrb[0].mxu0
      %2370 = vmatprep.mubr.f32.mxu0 0.0
      %2371 = vmatmul.mubr.f32.gmra.mrb[0].mxu0 %v1099
      %v2372 = vpop.f32.mrb[0].mxu0
      %v2373 = vadd.f32 %v436, %v2372
      %v2374 = vpop.f32.mrb[0].mxu0
      %2375 = vmatprep.mubr.f32.mxu0 0.0
      %2376 = vmatmul.mubr.f32.gmra.mrb[0].mxu0 %v1102
      %v2377 = vpop.f32.mrb[0].mxu0
      %v2378 = vadd.f32 %v436, %v2377
      %v2379 = vpop.f32.mrb[0].mxu0
      %2380 = vmatprep.mubr.f32.mxu0 0.0
      %2381 = vmatmul.mubr.f32.gmra.mrb[0].mxu0 %v1105
      %v2382 = vpop.f32.mrb[0].mxu0
      %v2383 = vadd.f32 %v436, %v2382
      %v2384 = vpop.f32.mrb[0].mxu0
      %2385 = vmatprep.mubr.f32.mxu0 0.0
      %2386 = vmatmul.mubr.f32.gmra.mrb[0].mxu0 %v1108
      %v2387 = vpop.f32.mrb[0].mxu0
      %v2388 = vadd.f32 %v436, %v2387
      %v2389 = vpop.f32.mrb[0].mxu0
      %2390 = vmatprep.mubr.f32.mxu0 0.0
      %2391 = vmatmul.mubr.f32.gmra.mrb[0].mxu0 %v1111
      %v2392 = vpop.f32.mrb[0].mxu0
      %v2393 = vadd.f32 %v436, %v2392
      %v2394 = vpop.f32.mrb[0].mxu0
      %2395 = vmatprep.mubr.f32.mxu0 0.0
      %2396 = vmatmul.mubr.f32.gmra.mrb[0].mxu0 %v1114
      %v2397 = vpop.f32.mrb[0].mxu0
      %v2398 = vadd.f32 %v436, %v2397
      %v2399 = vpop.f32.mrb[0].mxu0
      %2400 = vmatprep.mubr.f32.mxu0 0.0
      %2401 = vmatmul.mubr.f32.gmra.mrb[0].mxu0 %v1117
      %v2402 = vpop.f32.mrb[0].mxu0
      %v2403 = vadd.f32 %v436, %v2402
      %v2404 = vpop.f32.mrb[0].mxu0
      %2405 = vmatprep.mubr.f32.mxu0 0.0
      %2406 = vmatmul.mubr.f32.gmra.mrb[0].mxu0 %v1120
      %v2407 = vpop.f32.mrb[0].mxu0
      %v2408 = vadd.f32 %v436, %v2407
      %v2409 = vpop.f32.mrb[0].mxu0
      %2410 = vmatprep.mubr.f32.mxu0 0.0
      %2411 = vmatmul.mubr.f32.gmra.mrb[0].mxu0 %v1123
      %v2412 = vpop.f32.mrb[0].mxu0
      %v2413 = vadd.f32 %v436, %v2412
      %v2414 = vpop.f32.mrb[0].mxu0
      %2415 = vmatprep.mubr.f32.mxu0 0.0
      %2416 = vmatmul.mubr.f32.gmra.mrb[0].mxu0 %v1126
      %v2417 = vpop.f32.mrb[0].mxu0
      %v2418 = vadd.f32 %v436, %v2417
      %v2419 = vpop.f32.mrb[0].mxu0
      %2420 = vmatprep.mubr.f32.mxu0 0.0
      %2421 = vmatmul.mubr.f32.gmra.mrb[0].mxu0 %v1129
      %v2422 = vpop.f32.mrb[0].mxu0
      %v2423 = vadd.f32 %v436, %v2422
      %v2424 = vpop.f32.mrb[0].mxu0
      %2425 = vmatprep.mubr.f32.mxu0 0.0
      %2426 = vmatmul.mubr.f32.gmra.mrb[0].mxu0 %v1132
      %v2427 = vpop.f32.mrb[0].mxu0
      %v2428 = vadd.f32 %v436, %v2427
      %v2429 = vpop.f32.mrb[0].mxu0
      %2430 = vmatprep.mubr.f32.mxu0 0.0
      %2431 = vmatmul.mubr.f32.gmra.mrb[0].mxu0 %v1135
      %v2432 = vpop.f32.mrb[0].mxu0
      %v2433 = vadd.f32 %v436, %v2432
      %v2434 = vpop.f32.mrb[0].mxu0
      %2435 = vmatprep.mubr.f32.mxu0 0.0
      %2436 = vmatmul.mubr.f32.gmra.mrb[0].mxu0 %v1138
      %v2437 = vpop.f32.mrb[0].mxu0
      %v2438 = vadd.f32 %v436, %v2437
      %v2439 = vpop.f32.mrb[0].mxu0
      %2440 = vmatprep.mubr.f32.mxu0 0.0
      %2441 = vmatmul.mubr.f32.gmra.mrb[0].mxu0 %v1141
      %v2442 = vpop.f32.mrb[0].mxu0
      %v2443 = vadd.f32 %v436, %v2442
      %v2444 = vpop.f32.mrb[0].mxu0
      %2445 = vmatprep.mubr.f32.mxu0 0.0
      %2446 = vmatmul.mubr.f32.gmra.mrb[0].mxu0 %v1144
      %v2447 = vpop.f32.mrb[0].mxu0
      %v2448 = vadd.f32 %v436, %v2447
      %v2449 = vpop.f32.mrb[0].mxu0
      %2450 = vmatprep.mubr.f32.mxu0 0.0
      %2451 = vmatmul.mubr.f32.gmra.mrb[0].mxu0 %v1147
      %v2452 = vpop.f32.mrb[0].mxu0
      %v2453 = vadd.f32 %v436, %v2452
      %v2454 = vpop.f32.mrb[0].mxu0
      %2455 = vmatprep.mubr.f32.mxu0 0.0
      %2456 = vmatmul.mubr.f32.gmra.mrb[0].mxu0 %v1150
      %v2457 = vpop.f32.mrb[0].mxu0
      %v2458 = vadd.f32 %v436, %v2457
      %v2459 = vpop.f32.mrb[0].mxu0
      %2460 = vmatprep.mubr.f32.mxu0 0.0
      %2461 = vmatmul.mubr.f32.gmra.mrb[0].mxu0 %v1153
      %v2462 = vpop.f32.mrb[0].mxu0
      %v2463 = vadd.f32 %v436, %v2462
      %v2464 = vpop.f32.mrb[0].mxu0
      %2465 = vmatprep.mubr.f32.mxu0 0.0
      %2466 = vmatmul.mubr.f32.gmra.mrb[0].mxu0 %v1156
      %v2467 = vpop.f32.mrb[0].mxu0
      %v2468 = vadd.f32 %v436, %v2467
      %v2469 = vpop.f32.mrb[0].mxu0
      %2470 = vmatprep.mubr.f32.mxu0 0.0
      %2471 = vmatmul.mubr.f32.gmra.mrb[0].mxu0 %v1159
      %v2472 = vpop.f32.mrb[0].mxu0
      %v2473 = vadd.f32 %v436, %v2472
      %v2474 = vpop.f32.mrb[0].mxu0
      %2475 = vmatprep.mubr.f32.mxu0 0.0
      %2476 = vmatmul.mubr.f32.gmra.mrb[0].mxu0 %v1162
      %v2477 = vpop.f32.mrb[0].mxu0
      %v2478 = vadd.f32 %v436, %v2477
      %v2479 = vpop.f32.mrb[0].mxu0
      %2480 = vmatprep.mubr.f32.mxu0 0.0
      %2481 = vmatmul.mubr.f32.gmra.mrb[0].mxu0 %v1165
      %v2482 = vpop.f32.mrb[0].mxu0
      %v2483 = vadd.f32 %v436, %v2482
      %v2484 = vpop.f32.mrb[0].mxu0
      %2485 = vmatprep.mubr.f32.mxu0 0.0
      %2486 = vmatmul.mubr.f32.gmra.mrb[0].mxu0 %v1168
      %v2487 = vpop.f32.mrb[0].mxu0
      %v2488 = vadd.f32 %v436, %v2487
      %v2489 = vpop.f32.mrb[0].mxu0
      %2490 = vmatprep.mubr.f32.mxu0 0.0
      %2491 = vmatmul.mubr.f32.gmra.mrb[0].mxu0 %v1171
      %v2492 = vpop.f32.mrb[0].mxu0
      %v2493 = vadd.f32 %v436, %v2492
      %v2494 = vpop.f32.mrb[0].mxu0
      %2495 = vmatprep.mubr.f32.mxu0 0.0
      %2496 = vmatmul.mubr.f32.gmra.mrb[0].mxu0 %v1174
      %v2497 = vpop.f32.mrb[0].mxu0
      %v2498 = vadd.f32 %v436, %v2497
      %v2499 = vpop.f32.mrb[0].mxu0
      %2500 = vmatprep.mubr.f32.mxu0 0.0
      %2501 = vmatmul.mubr.f32.gmra.mrb[0].mxu0 %v1177
      %v2502 = vpop.f32.mrb[0].mxu0
      %v2503 = vadd.f32 %v436, %v2502
      %v2504 = vpop.f32.mrb[0].mxu0
      %2505 = vmatprep.mubr.f32.mxu0 0.0
      %2506 = vmatmul.mubr.f32.gmra.mrb[0].mxu0 %v1180
      %v2507 = vpop.f32.mrb[0].mxu0
      %v2508 = vadd.f32 %v436, %v2507
      %v2509 = vpop.f32.mrb[0].mxu0
      %2510 = vmatprep.mubr.f32.mxu0 0.0
      %2511 = vmatmul.mubr.f32.gmra.mrb[0].mxu0 %v1183
      %v2512 = vpop.f32.mrb[0].mxu0
      %v2513 = vadd.f32 %v436, %v2512
      %v2514 = vpop.f32.mrb[0].mxu0
      %2515 = vmatprep.mubr.f32.mxu0 0.0
      %2516 = vmatmul.mubr.f32.gmra.mrb[0].mxu0 %v1186
      %v2517 = vpop.f32.mrb[0].mxu0
      %v2518 = vadd.f32 %v436, %v2517
      %v2519 = vpop.f32.mrb[0].mxu0
      %2520 = vmatprep.mubr.f32.mxu0 0.0
      %2521 = vmatmul.mubr.f32.gmra.mrb[0].mxu0 %v1189
      %v2522 = vpop.f32.mrb[0].mxu0
      %v2523 = vadd.f32 %v436, %v2522
      %v2524 = vpop.f32.mrb[0].mxu0
      %2525 = vmatprep.mubr.f32.mxu0 0.0
      %2526 = vmatmul.mubr.f32.gmra.mrb[0].mxu0 %v1192
      %v2527 = vpop.f32.mrb[0].mxu0
      %v2528 = vadd.f32 %v436, %v2527
      %v2529 = vpop.f32.mrb[0].mxu0
      %2530 = vmatprep.mubr.f32.mxu0 0.0
      %2531 = vmatmul.mubr.f32.gmra.mrb[0].mxu0 %v1195
      %v2532 = vpop.f32.mrb[0].mxu0
      %v2533 = vadd.f32 %v436, %v2532
      %v2534 = vpop.f32.mrb[0].mxu0
      %2535 = vmatprep.mubr.f32.mxu0 0.0
      %2536 = vmatmul.mubr.f32.gmra.mrb[0].mxu0 %v1198
      %v2537 = vpop.f32.mrb[0].mxu0
      %v2538 = vadd.f32 %v436, %v2537
      %v2539 = vpop.f32.mrb[0].mxu0
      %2540 = vmatprep.mubr.f32.mxu0 0.0
      %2541 = vmatmul.mubr.f32.gmra.mrb[0].mxu0 %v1201
      %v2542 = vpop.f32.mrb[0].mxu0
      %v2543 = vadd.f32 %v436, %v2542
      %v2544 = vpop.f32.mrb[0].mxu0
      %2545 = vmatprep.mubr.f32.mxu0 0.0
      %2546 = vmatmul.mubr.f32.gmra.mrb[0].mxu0 %v1204
      %v2547 = vpop.f32.mrb[0].mxu0
      %v2548 = vadd.f32 %v436, %v2547
      %v2549 = vpop.f32.mrb[0].mxu0
      %2550 = vdwg.mxu0
      %v2551 = vxor.u32 %v1273, 2147483648
      %v2552 = vxor.u32 %v1278, 2147483648
      %v2553 = vxor.u32 %v1283, 2147483648
      %v2554 = vxor.u32 %v1288, 2147483648
      %v2555 = vxor.u32 %v1293, 2147483648
      %v2556 = vxor.u32 %v1298, 2147483648
      %v2557 = vxor.u32 %v1303, 2147483648
      %v2558 = vxor.u32 %v1308, 2147483648
      %v2559 = vxor.u32 %v1313, 2147483648
      %v2560 = vxor.u32 %v1318, 2147483648
      %v2561 = vxor.u32 %v1323, 2147483648
      %v2562 = vxor.u32 %v1328, 2147483648
      %v2563 = vxor.u32 %v1333, 2147483648
      %v2564 = vxor.u32 %v1338, 2147483648
      %v2565 = vxor.u32 %v1343, 2147483648
      %v2566 = vxor.u32 %v1348, 2147483648
      %v2567 = vxor.u32 %v1353, 2147483648
      %v2568 = vxor.u32 %v1358, 2147483648
      %v2569 = vxor.u32 %v1363, 2147483648
      %v2570 = vxor.u32 %v1368, 2147483648
      %v2571 = vxor.u32 %v1373, 2147483648
      %v2572 = vxor.u32 %v1378, 2147483648
      %v2573 = vxor.u32 %v1383, 2147483648
      %v2574 = vxor.u32 %v1388, 2147483648
      %v2575 = vxor.u32 %v1393, 2147483648
      %v2576 = vxor.u32 %v1398, 2147483648
      %v2577 = vxor.u32 %v1403, 2147483648
      %v2578 = vxor.u32 %v1408, 2147483648
      %v2579 = vxor.u32 %v1413, 2147483648
      %v2580 = vxor.u32 %v1418, 2147483648
      %v2581 = vxor.u32 %v1423, 2147483648
      %v2582 = vxor.u32 %v1428, 2147483648
      %v2583 = vxor.u32 %v1433, 2147483648
      %v2584 = vxor.u32 %v1438, 2147483648
      %v2585 = vxor.u32 %v1443, 2147483648
      %v2586 = vxor.u32 %v1448, 2147483648
      %v2587 = vxor.u32 %v1453, 2147483648
      %v2588 = vxor.u32 %v1458, 2147483648
      %v2589 = vxor.u32 %v1463, 2147483648
      %v2590 = vxor.u32 %v1468, 2147483648
      %v2591 = vxor.u32 %v1473, 2147483648
      %v2592 = vxor.u32 %v1478, 2147483648
      %v2593 = vxor.u32 %v1483, 2147483648
      %v2594 = vxor.u32 %v1488, 2147483648
      %v2595 = vxor.u32 %v1493, 2147483648
      %v2596 = vxor.u32 %v1498, 2147483648
      %v2597 = vxor.u32 %v1503, 2147483648
      %v2598 = vxor.u32 %v1508, 2147483648
      %v2599 = vxor.u32 %v1513, 2147483648
      %v2600 = vxor.u32 %v1518, 2147483648
      %v2601 = vxor.u32 %v1523, 2147483648
      %v2602 = vxor.u32 %v1528, 2147483648
      %v2603 = vxor.u32 %v1533, 2147483648
      %v2604 = vxor.u32 %v1538, 2147483648
      %v2605 = vxor.u32 %v1543, 2147483648
      %v2606 = vxor.u32 %v1548, 2147483648
      %v2607 = vxor.u32 %v1553, 2147483648
      %v2608 = vxor.u32 %v1558, 2147483648
      %v2609 = vxor.u32 %v1563, 2147483648
      %v2610 = vxor.u32 %v1568, 2147483648
      %v2611 = vxor.u32 %v1573, 2147483648
      %v2612 = vxor.u32 %v1578, 2147483648
      %v2613 = vxor.u32 %v1583, 2147483648
      %v2614 = vxor.u32 %v1588, 2147483648
      %v2615 = vxor.u32 %v1593, 2147483648
      %v2616 = vxor.u32 %v1598, 2147483648
      %v2617 = vxor.u32 %v1603, 2147483648
      %v2618 = vxor.u32 %v1608, 2147483648
      %v2619 = vxor.u32 %v1613, 2147483648
      %v2620 = vxor.u32 %v1618, 2147483648
      %v2621 = vxor.u32 %v1623, 2147483648
      %v2622 = vxor.u32 %v1628, 2147483648
      %v2623 = vxor.u32 %v1633, 2147483648
      %v2624 = vxor.u32 %v1638, 2147483648
      %v2625 = vxor.u32 %v1643, 2147483648
      %v2626 = vxor.u32 %v1648, 2147483648
      %v2627 = vxor.u32 %v1653, 2147483648
      %v2628 = vxor.u32 %v1658, 2147483648
      %v2629 = vxor.u32 %v1663, 2147483648
      %v2630 = vxor.u32 %v1668, 2147483648
      %v2631 = vxor.u32 %v1673, 2147483648
      %v2632 = vxor.u32 %v1678, 2147483648
      %v2633 = vxor.u32 %v1683, 2147483648
      %v2634 = vxor.u32 %v1688, 2147483648
      %v2635 = vxor.u32 %v1693, 2147483648
      %v2636 = vxor.u32 %v1698, 2147483648
      %v2637 = vxor.u32 %v1703, 2147483648
      %v2638 = vxor.u32 %v1708, 2147483648
      %v2639 = vxor.u32 %v1713, 2147483648
      %v2640 = vxor.u32 %v1718, 2147483648
      %v2641 = vxor.u32 %v1723, 2147483648
      %v2642 = vxor.u32 %v1728, 2147483648
      %v2643 = vxor.u32 %v1733, 2147483648
      %v2644 = vxor.u32 %v1738, 2147483648
      %v2645 = vxor.u32 %v1743, 2147483648
      %v2646 = vxor.u32 %v1748, 2147483648
      %v2647 = vxor.u32 %v1753, 2147483648
      %v2648 = vxor.u32 %v1758, 2147483648
      %v2649 = vxor.u32 %v1763, 2147483648
      %v2650 = vxor.u32 %v1768, 2147483648
      %v2651 = vxor.u32 %v1773, 2147483648
      %v2652 = vxor.u32 %v1778, 2147483648
      %v2653 = vxor.u32 %v1783, 2147483648
      %v2654 = vxor.u32 %v1788, 2147483648
      %v2655 = vxor.u32 %v1793, 2147483648
      %v2656 = vxor.u32 %v1798, 2147483648
      %v2657 = vxor.u32 %v1803, 2147483648
      %v2658 = vxor.u32 %v1808, 2147483648
      %v2659 = vxor.u32 %v1813, 2147483648
      %v2660 = vxor.u32 %v1818, 2147483648
      %v2661 = vxor.u32 %v1823, 2147483648
      %v2662 = vxor.u32 %v1828, 2147483648
      %v2663 = vxor.u32 %v1833, 2147483648
      %v2664 = vxor.u32 %v1838, 2147483648
      %v2665 = vxor.u32 %v1843, 2147483648
      %v2666 = vxor.u32 %v1848, 2147483648
      %v2667 = vxor.u32 %v1853, 2147483648
      %v2668 = vxor.u32 %v1858, 2147483648
      %v2669 = vxor.u32 %v1863, 2147483648
      %v2670 = vxor.u32 %v1868, 2147483648
      %v2671 = vxor.u32 %v1873, 2147483648
      %v2672 = vxor.u32 %v1878, 2147483648
      %v2673 = vxor.u32 %v1883, 2147483648
      %v2674 = vxor.u32 %v1888, 2147483648
      %v2675 = vxor.u32 %v1893, 2147483648
      %v2676 = vxor.u32 %v1898, 2147483648
      %v2677 = vxor.u32 %v1903, 2147483648
      %v2678 = vxor.u32 %v1908, 2147483648
      %v2679 = vxor.u32 %v1913, 2147483648
      %v2680 = vxor.u32 %v1918, 2147483648
      %v2681 = vxor.u32 %v1923, 2147483648
      %v2682 = vxor.u32 %v1928, 2147483648
      %v2683 = vxor.u32 %v1933, 2147483648
      %v2684 = vxor.u32 %v1938, 2147483648
      %v2685 = vxor.u32 %v1943, 2147483648
      %v2686 = vxor.u32 %v1948, 2147483648
      %v2687 = vxor.u32 %v1953, 2147483648
      %v2688 = vxor.u32 %v1958, 2147483648
      %v2689 = vxor.u32 %v1963, 2147483648
      %v2690 = vxor.u32 %v1968, 2147483648
      %v2691 = vxor.u32 %v1973, 2147483648
      %v2692 = vxor.u32 %v1978, 2147483648
      %v2693 = vxor.u32 %v1983, 2147483648
      %v2694 = vxor.u32 %v1988, 2147483648
      %v2695 = vxor.u32 %v1993, 2147483648
      %v2696 = vxor.u32 %v1998, 2147483648
      %v2697 = vxor.u32 %v2003, 2147483648
      %v2698 = vxor.u32 %v2008, 2147483648
      %v2699 = vxor.u32 %v2013, 2147483648
      %v2700 = vxor.u32 %v2018, 2147483648
      %v2701 = vxor.u32 %v2023, 2147483648
      %v2702 = vxor.u32 %v2028, 2147483648
      %v2703 = vxor.u32 %v2033, 2147483648
      %v2704 = vxor.u32 %v2038, 2147483648
      %v2705 = vxor.u32 %v2043, 2147483648
      %v2706 = vxor.u32 %v2048, 2147483648
      %v2707 = vxor.u32 %v2053, 2147483648
      %v2708 = vxor.u32 %v2058, 2147483648
      %v2709 = vxor.u32 %v2063, 2147483648
      %v2710 = vxor.u32 %v2068, 2147483648
      %v2711 = vxor.u32 %v2073, 2147483648
      %v2712 = vxor.u32 %v2078, 2147483648
      %v2713 = vxor.u32 %v2083, 2147483648
      %v2714 = vxor.u32 %v2088, 2147483648
      %v2715 = vxor.u32 %v2093, 2147483648
      %v2716 = vxor.u32 %v2098, 2147483648
      %v2717 = vxor.u32 %v2103, 2147483648
      %v2718 = vxor.u32 %v2108, 2147483648
      %v2719 = vxor.u32 %v2113, 2147483648
      %v2720 = vxor.u32 %v2118, 2147483648
      %v2721 = vxor.u32 %v2123, 2147483648
      %v2722 = vxor.u32 %v2128, 2147483648
      %v2723 = vxor.u32 %v2133, 2147483648
      %v2724 = vxor.u32 %v2138, 2147483648
      %v2725 = vxor.u32 %v2143, 2147483648
      %v2726 = vxor.u32 %v2148, 2147483648
      %v2727 = vxor.u32 %v2153, 2147483648
      %v2728 = vxor.u32 %v2158, 2147483648
      %v2729 = vxor.u32 %v2163, 2147483648
      %v2730 = vxor.u32 %v2168, 2147483648
      %v2731 = vxor.u32 %v2173, 2147483648
      %v2732 = vxor.u32 %v2178, 2147483648
      %v2733 = vxor.u32 %v2183, 2147483648
      %v2734 = vxor.u32 %v2188, 2147483648
      %v2735 = vxor.u32 %v2193, 2147483648
      %v2736 = vxor.u32 %v2198, 2147483648
      %v2737 = vxor.u32 %v2203, 2147483648
      %v2738 = vxor.u32 %v2208, 2147483648
      %v2739 = vxor.u32 %v2213, 2147483648
      %v2740 = vxor.u32 %v2218, 2147483648
      %v2741 = vxor.u32 %v2223, 2147483648
      %v2742 = vxor.u32 %v2228, 2147483648
      %v2743 = vxor.u32 %v2233, 2147483648
      %v2744 = vxor.u32 %v2238, 2147483648
      %v2745 = vxor.u32 %v2243, 2147483648
      %v2746 = vxor.u32 %v2248, 2147483648
      %v2747 = vxor.u32 %v2253, 2147483648
      %v2748 = vxor.u32 %v2258, 2147483648
      %v2749 = vxor.u32 %v2263, 2147483648
      %v2750 = vxor.u32 %v2268, 2147483648
      %v2751 = vxor.u32 %v2273, 2147483648
      %v2752 = vxor.u32 %v2278, 2147483648
      %v2753 = vxor.u32 %v2283, 2147483648
      %v2754 = vxor.u32 %v2288, 2147483648
      %v2755 = vxor.u32 %v2293, 2147483648
      %v2756 = vxor.u32 %v2298, 2147483648
      %v2757 = vxor.u32 %v2303, 2147483648
      %v2758 = vxor.u32 %v2308, 2147483648
      %v2759 = vxor.u32 %v2313, 2147483648
      %v2760 = vxor.u32 %v2318, 2147483648
      %v2761 = vxor.u32 %v2323, 2147483648
      %v2762 = vxor.u32 %v2328, 2147483648
      %v2763 = vxor.u32 %v2333, 2147483648
      %v2764 = vxor.u32 %v2338, 2147483648
      %v2765 = vxor.u32 %v2343, 2147483648
      %v2766 = vxor.u32 %v2348, 2147483648
      %v2767 = vxor.u32 %v2353, 2147483648
      %v2768 = vxor.u32 %v2358, 2147483648
      %v2769 = vxor.u32 %v2363, 2147483648
      %v2770 = vxor.u32 %v2368, 2147483648
      %v2771 = vxor.u32 %v2373, 2147483648
      %v2772 = vxor.u32 %v2378, 2147483648
      %v2773 = vxor.u32 %v2383, 2147483648
      %v2774 = vxor.u32 %v2388, 2147483648
      %v2775 = vxor.u32 %v2393, 2147483648
      %v2776 = vxor.u32 %v2398, 2147483648
      %v2777 = vxor.u32 %v2403, 2147483648
      %v2778 = vxor.u32 %v2408, 2147483648
      %v2779 = vxor.u32 %v2413, 2147483648
      %v2780 = vxor.u32 %v2418, 2147483648
      %v2781 = vxor.u32 %v2423, 2147483648
      %v2782 = vxor.u32 %v2428, 2147483648
      %v2783 = vxor.u32 %v2433, 2147483648
      %v2784 = vxor.u32 %v2438, 2147483648
      %v2785 = vxor.u32 %v2443, 2147483648
      %v2786 = vxor.u32 %v2448, 2147483648
      %v2787 = vxor.u32 %v2453, 2147483648
      %v2788 = vxor.u32 %v2458, 2147483648
      %v2789 = vxor.u32 %v2463, 2147483648
      %v2790 = vxor.u32 %v2468, 2147483648
      %v2791 = vxor.u32 %v2473, 2147483648
      %v2792 = vxor.u32 %v2478, 2147483648
      %v2793 = vxor.u32 %v2483, 2147483648
      %v2794 = vxor.u32 %v2488, 2147483648
      %v2795 = vxor.u32 %v2493, 2147483648
      %v2796 = vxor.u32 %v2498, 2147483648
      %v2797 = vxor.u32 %v2503, 2147483648
      %v2798 = vxor.u32 %v2508, 2147483648
      %v2799 = vxor.u32 %v2513, 2147483648
      %v2800 = vxor.u32 %v2518, 2147483648
      %v2801 = vxor.u32 %v2523, 2147483648
      %v2802 = vxor.u32 %v2528, 2147483648
      %v2803 = vxor.u32 %v2533, 2147483648
      %v2804 = vxor.u32 %v2538, 2147483648
      %v2805 = vxor.u32 %v2543, 2147483648
      %v2806 = vxor.u32 %v2548, 2147483648
      %v2807 = vmul.f32 %v2551, 1.442695
      %v2808 = vpow.pop %v2807
      %v2809 = vmul.f32 %v2552, 1.442695
      %v2810 = vpow.pop %v2809
      %v2811 = vmul.f32 %v2553, 1.442695
      %v2812 = vpow.pop %v2811
      %v2813 = vmul.f32 %v2554, 1.442695
      %v2814 = vpow.pop %v2813
      %v2815 = vmul.f32 %v2555, 1.442695
      %v2816 = vpow.pop %v2815
      %v2817 = vmul.f32 %v2556, 1.442695
      %v2818 = vpow.pop %v2817
      %v2819 = vmul.f32 %v2557, 1.442695
      %v2820 = vpow.pop %v2819
      %v2821 = vmul.f32 %v2558, 1.442695
      %v2822 = vpow.pop %v2821
      %v2823 = vmul.f32 %v2559, 1.442695
      %v2824 = vpow.pop %v2823
      %v2825 = vmul.f32 %v2560, 1.442695
      %v2826 = vpow.pop %v2825
      %v2827 = vmul.f32 %v2561, 1.442695
      %v2828 = vpow.pop %v2827
      %v2829 = vmul.f32 %v2562, 1.442695
      %v2830 = vpow.pop %v2829
      %v2831 = vmul.f32 %v2563, 1.442695
      %v2832 = vpow.pop %v2831
      %v2833 = vmul.f32 %v2564, 1.442695
      %v2834 = vpow.pop %v2833
      %v2835 = vmul.f32 %v2565, 1.442695
      %v2836 = vpow.pop %v2835
      %v2837 = vmul.f32 %v2566, 1.442695
      %v2838 = vpow.pop %v2837
      %v2839 = vmul.f32 %v2567, 1.442695
      %v2840 = vpow.pop %v2839
      %v2841 = vmul.f32 %v2568, 1.442695
      %v2842 = vpow.pop %v2841
      %v2843 = vmul.f32 %v2569, 1.442695
      %v2844 = vpow.pop %v2843
      %v2845 = vmul.f32 %v2570, 1.442695
      %v2846 = vpow.pop %v2845
      %v2847 = vmul.f32 %v2571, 1.442695
      %v2848 = vpow.pop %v2847
      %v2849 = vmul.f32 %v2572, 1.442695
      %v2850 = vpow.pop %v2849
      %v2851 = vmul.f32 %v2573, 1.442695
      %v2852 = vpow.pop %v2851
      %v2853 = vmul.f32 %v2574, 1.442695
      %v2854 = vpow.pop %v2853
      %v2855 = vmul.f32 %v2575, 1.442695
      %v2856 = vpow.pop %v2855
      %v2857 = vmul.f32 %v2576, 1.442695
      %v2858 = vpow.pop %v2857
      %v2859 = vmul.f32 %v2577, 1.442695
      %v2860 = vpow.pop %v2859
      %v2861 = vmul.f32 %v2578, 1.442695
      %v2862 = vpow.pop %v2861
      %v2863 = vmul.f32 %v2579, 1.442695
      %v2864 = vpow.pop %v2863
      %v2865 = vmul.f32 %v2580, 1.442695
      %v2866 = vpow.pop %v2865
      %v2867 = vmul.f32 %v2581, 1.442695
      %v2868 = vpow.pop %v2867
      %v2869 = vmul.f32 %v2582, 1.442695
      %v2870 = vpow.pop %v2869
      %v2871 = vmul.f32 %v2583, 1.442695
      %v2872 = vpow.pop %v2871
      %v2873 = vmul.f32 %v2584, 1.442695
      %v2874 = vpow.pop %v2873
      %v2875 = vmul.f32 %v2585, 1.442695
      %v2876 = vpow.pop %v2875
      %v2877 = vmul.f32 %v2586, 1.442695
      %v2878 = vpow.pop %v2877
      %v2879 = vmul.f32 %v2587, 1.442695
      %v2880 = vpow.pop %v2879
      %v2881 = vmul.f32 %v2588, 1.442695
      %v2882 = vpow.pop %v2881
      %v2883 = vmul.f32 %v2589, 1.442695
      %v2884 = vpow.pop %v2883
      %v2885 = vmul.f32 %v2590, 1.442695
      %v2886 = vpow.pop %v2885
      %v2887 = vmul.f32 %v2591, 1.442695
      %v2888 = vpow.pop %v2887
      %v2889 = vmul.f32 %v2592, 1.442695
      %v2890 = vpow.pop %v2889
      %v2891 = vmul.f32 %v2593, 1.442695
      %v2892 = vpow.pop %v2891
      %v2893 = vmul.f32 %v2594, 1.442695
      %v2894 = vpow.pop %v2893
      %v2895 = vmul.f32 %v2595, 1.442695
      %v2896 = vpow.pop %v2895
      %v2897 = vmul.f32 %v2596, 1.442695
      %v2898 = vpow.pop %v2897
      %v2899 = vmul.f32 %v2597, 1.442695
      %v2900 = vpow.pop %v2899
      %v2901 = vmul.f32 %v2598, 1.442695
      %v2902 = vpow.pop %v2901
      %v2903 = vmul.f32 %v2599, 1.442695
      %v2904 = vpow.pop %v2903
      %v2905 = vmul.f32 %v2600, 1.442695
      %v2906 = vpow.pop %v2905
      %v2907 = vmul.f32 %v2601, 1.442695
      %v2908 = vpow.pop %v2907
      %v2909 = vmul.f32 %v2602, 1.442695
      %v2910 = vpow.pop %v2909
      %v2911 = vmul.f32 %v2603, 1.442695
      %v2912 = vpow.pop %v2911
      %v2913 = vmul.f32 %v2604, 1.442695
      %v2914 = vpow.pop %v2913
      %v2915 = vmul.f32 %v2605, 1.442695
      %v2916 = vpow.pop %v2915
      %v2917 = vmul.f32 %v2606, 1.442695
      %v2918 = vpow.pop %v2917
      %v2919 = vmul.f32 %v2607, 1.442695
      %v2920 = vpow.pop %v2919
      %v2921 = vmul.f32 %v2608, 1.442695
      %v2922 = vpow.pop %v2921
      %v2923 = vmul.f32 %v2609, 1.442695
      %v2924 = vpow.pop %v2923
      %v2925 = vmul.f32 %v2610, 1.442695
      %v2926 = vpow.pop %v2925
      %v2927 = vmul.f32 %v2611, 1.442695
      %v2928 = vpow.pop %v2927
      %v2929 = vmul.f32 %v2612, 1.442695
      %v2930 = vpow.pop %v2929
      %v2931 = vmul.f32 %v2613, 1.442695
      %v2932 = vpow.pop %v2931
      %v2933 = vmul.f32 %v2614, 1.442695
      %v2934 = vpow.pop %v2933
      %v2935 = vmul.f32 %v2615, 1.442695
      %v2936 = vpow.pop %v2935
      %v2937 = vmul.f32 %v2616, 1.442695
      %v2938 = vpow.pop %v2937
      %v2939 = vmul.f32 %v2617, 1.442695
      %v2940 = vpow.pop %v2939
      %v2941 = vmul.f32 %v2618, 1.442695
      %v2942 = vpow.pop %v2941
      %v2943 = vmul.f32 %v2619, 1.442695
      %v2944 = vpow.pop %v2943
      %v2945 = vmul.f32 %v2620, 1.442695
      %v2946 = vpow.pop %v2945
      %v2947 = vmul.f32 %v2621, 1.442695
      %v2948 = vpow.pop %v2947
      %v2949 = vmul.f32 %v2622, 1.442695
      %v2950 = vpow.pop %v2949
      %v2951 = vmul.f32 %v2623, 1.442695
      %v2952 = vpow.pop %v2951
      %v2953 = vmul.f32 %v2624, 1.442695
      %v2954 = vpow.pop %v2953
      %v2955 = vmul.f32 %v2625, 1.442695
      %v2956 = vpow.pop %v2955
      %v2957 = vmul.f32 %v2626, 1.442695
      %v2958 = vpow.pop %v2957
      %v2959 = vmul.f32 %v2627, 1.442695
      %v2960 = vpow.pop %v2959
      %v2961 = vmul.f32 %v2628, 1.442695
      %v2962 = vpow.pop %v2961
      %v2963 = vmul.f32 %v2629, 1.442695
      %v2964 = vpow.pop %v2963
      %v2965 = vmul.f32 %v2630, 1.442695
      %v2966 = vpow.pop %v2965
      %v2967 = vmul.f32 %v2631, 1.442695
      %v2968 = vpow.pop %v2967
      %v2969 = vmul.f32 %v2632, 1.442695
      %v2970 = vpow.pop %v2969
      %v2971 = vmul.f32 %v2633, 1.442695
      %v2972 = vpow.pop %v2971
      %v2973 = vmul.f32 %v2634, 1.442695
      %v2974 = vpow.pop %v2973
      %v2975 = vmul.f32 %v2635, 1.442695
      %v2976 = vpow.pop %v2975
      %v2977 = vmul.f32 %v2636, 1.442695
      %v2978 = vpow.pop %v2977
      %v2979 = vmul.f32 %v2637, 1.442695
      %v2980 = vpow.pop %v2979
      %v2981 = vmul.f32 %v2638, 1.442695
      %v2982 = vpow.pop %v2981
      %v2983 = vmul.f32 %v2639, 1.442695
      %v2984 = vpow.pop %v2983
      %v2985 = vmul.f32 %v2640, 1.442695
      %v2986 = vpow.pop %v2985
      %v2987 = vmul.f32 %v2641, 1.442695
      %v2988 = vpow.pop %v2987
      %v2989 = vmul.f32 %v2642, 1.442695
      %v2990 = vpow.pop %v2989
      %v2991 = vmul.f32 %v2643, 1.442695
      %v2992 = vpow.pop %v2991
      %v2993 = vmul.f32 %v2644, 1.442695
      %v2994 = vpow.pop %v2993
      %v2995 = vmul.f32 %v2645, 1.442695
      %v2996 = vpow.pop %v2995
      %v2997 = vmul.f32 %v2646, 1.442695
      %v2998 = vpow.pop %v2997
      %v2999 = vmul.f32 %v2647, 1.442695
      %v3000 = vpow.pop %v2999
      %v3001 = vmul.f32 %v2648, 1.442695
      %v3002 = vpow.pop %v3001
      %v3003 = vmul.f32 %v2649, 1.442695
      %v3004 = vpow.pop %v3003
      %v3005 = vmul.f32 %v2650, 1.442695
      %v3006 = vpow.pop %v3005
      %v3007 = vmul.f32 %v2651, 1.442695
      %v3008 = vpow.pop %v3007
      %v3009 = vmul.f32 %v2652, 1.442695
      %v3010 = vpow.pop %v3009
      %v3011 = vmul.f32 %v2653, 1.442695
      %v3012 = vpow.pop %v3011
      %v3013 = vmul.f32 %v2654, 1.442695
      %v3014 = vpow.pop %v3013
      %v3015 = vmul.f32 %v2655, 1.442695
      %v3016 = vpow.pop %v3015
      %v3017 = vmul.f32 %v2656, 1.442695
      %v3018 = vpow.pop %v3017
      %v3019 = vmul.f32 %v2657, 1.442695
      %v3020 = vpow.pop %v3019
      %v3021 = vmul.f32 %v2658, 1.442695
      %v3022 = vpow.pop %v3021
      %v3023 = vmul.f32 %v2659, 1.442695
      %v3024 = vpow.pop %v3023
      %v3025 = vmul.f32 %v2660, 1.442695
      %v3026 = vpow.pop %v3025
      %v3027 = vmul.f32 %v2661, 1.442695
      %v3028 = vpow.pop %v3027
      %v3029 = vmul.f32 %v2662, 1.442695
      %v3030 = vpow.pop %v3029
      %v3031 = vmul.f32 %v2663, 1.442695
      %v3032 = vpow.pop %v3031
      %v3033 = vmul.f32 %v2664, 1.442695
      %v3034 = vpow.pop %v3033
      %v3035 = vmul.f32 %v2665, 1.442695
      %v3036 = vpow.pop %v3035
      %v3037 = vmul.f32 %v2666, 1.442695
      %v3038 = vpow.pop %v3037
      %v3039 = vmul.f32 %v2667, 1.442695
      %v3040 = vpow.pop %v3039
      %v3041 = vmul.f32 %v2668, 1.442695
      %v3042 = vpow.pop %v3041
      %v3043 = vmul.f32 %v2669, 1.442695
      %v3044 = vpow.pop %v3043
      %v3045 = vmul.f32 %v2670, 1.442695
      %v3046 = vpow.pop %v3045
      %v3047 = vmul.f32 %v2671, 1.442695
      %v3048 = vpow.pop %v3047
      %v3049 = vmul.f32 %v2672, 1.442695
      %v3050 = vpow.pop %v3049
      %v3051 = vmul.f32 %v2673, 1.442695
      %v3052 = vpow.pop %v3051
      %v3053 = vmul.f32 %v2674, 1.442695
      %v3054 = vpow.pop %v3053
      %v3055 = vmul.f32 %v2675, 1.442695
      %v3056 = vpow.pop %v3055
      %v3057 = vmul.f32 %v2676, 1.442695
      %v3058 = vpow.pop %v3057
      %v3059 = vmul.f32 %v2677, 1.442695
      %v3060 = vpow.pop %v3059
      %v3061 = vmul.f32 %v2678, 1.442695
      %v3062 = vpow.pop %v3061
      %v3063 = vmul.f32 %v2679, 1.442695
      %v3064 = vpow.pop %v3063
      %v3065 = vmul.f32 %v2680, 1.442695
      %v3066 = vpow.pop %v3065
      %v3067 = vmul.f32 %v2681, 1.442695
      %v3068 = vpow.pop %v3067
      %v3069 = vmul.f32 %v2682, 1.442695
      %v3070 = vpow.pop %v3069
      %v3071 = vmul.f32 %v2683, 1.442695
      %v3072 = vpow.pop %v3071
      %v3073 = vmul.f32 %v2684, 1.442695
      %v3074 = vpow.pop %v3073
      %v3075 = vmul.f32 %v2685, 1.442695
      %v3076 = vpow.pop %v3075
      %v3077 = vmul.f32 %v2686, 1.442695
      %v3078 = vpow.pop %v3077
      %v3079 = vmul.f32 %v2687, 1.442695
      %v3080 = vpow.pop %v3079
      %v3081 = vmul.f32 %v2688, 1.442695
      %v3082 = vpow.pop %v3081
      %v3083 = vmul.f32 %v2689, 1.442695
      %v3084 = vpow.pop %v3083
      %v3085 = vmul.f32 %v2690, 1.442695
      %v3086 = vpow.pop %v3085
      %v3087 = vmul.f32 %v2691, 1.442695
      %v3088 = vpow.pop %v3087
      %v3089 = vmul.f32 %v2692, 1.442695
      %v3090 = vpow.pop %v3089
      %v3091 = vmul.f32 %v2693, 1.442695
      %v3092 = vpow.pop %v3091
      %v3093 = vmul.f32 %v2694, 1.442695
      %v3094 = vpow.pop %v3093
      %v3095 = vmul.f32 %v2695, 1.442695
      %v3096 = vpow.pop %v3095
      %v3097 = vmul.f32 %v2696, 1.442695
      %v3098 = vpow.pop %v3097
      %v3099 = vmul.f32 %v2697, 1.442695
      %v3100 = vpow.pop %v3099
      %v3101 = vmul.f32 %v2698, 1.442695
      %v3102 = vpow.pop %v3101
      %v3103 = vmul.f32 %v2699, 1.442695
      %v3104 = vpow.pop %v3103
      %v3105 = vmul.f32 %v2700, 1.442695
      %v3106 = vpow.pop %v3105
      %v3107 = vmul.f32 %v2701, 1.442695
      %v3108 = vpow.pop %v3107
      %v3109 = vmul.f32 %v2702, 1.442695
      %v3110 = vpow.pop %v3109
      %v3111 = vmul.f32 %v2703, 1.442695
      %v3112 = vpow.pop %v3111
      %v3113 = vmul.f32 %v2704, 1.442695
      %v3114 = vpow.pop %v3113
      %v3115 = vmul.f32 %v2705, 1.442695
      %v3116 = vpow.pop %v3115
      %v3117 = vmul.f32 %v2706, 1.442695
      %v3118 = vpow.pop %v3117
      %v3119 = vmul.f32 %v2707, 1.442695
      %v3120 = vpow.pop %v3119
      %v3121 = vmul.f32 %v2708, 1.442695
      %v3122 = vpow.pop %v3121
      %v3123 = vmul.f32 %v2709, 1.442695
      %v3124 = vpow.pop %v3123
      %v3125 = vmul.f32 %v2710, 1.442695
      %v3126 = vpow.pop %v3125
      %v3127 = vmul.f32 %v2711, 1.442695
      %v3128 = vpow.pop %v3127
      %v3129 = vmul.f32 %v2712, 1.442695
      %v3130 = vpow.pop %v3129
      %v3131 = vmul.f32 %v2713, 1.442695
      %v3132 = vpow.pop %v3131
      %v3133 = vmul.f32 %v2714, 1.442695
      %v3134 = vpow.pop %v3133
      %v3135 = vmul.f32 %v2715, 1.442695
      %v3136 = vpow.pop %v3135
      %v3137 = vmul.f32 %v2716, 1.442695
      %v3138 = vpow.pop %v3137
      %v3139 = vmul.f32 %v2717, 1.442695
      %v3140 = vpow.pop %v3139
      %v3141 = vmul.f32 %v2718, 1.442695
      %v3142 = vpow.pop %v3141
      %v3143 = vmul.f32 %v2719, 1.442695
      %v3144 = vpow.pop %v3143
      %v3145 = vmul.f32 %v2720, 1.442695
      %v3146 = vpow.pop %v3145
      %v3147 = vmul.f32 %v2721, 1.442695
      %v3148 = vpow.pop %v3147
      %v3149 = vmul.f32 %v2722, 1.442695
      %v3150 = vpow.pop %v3149
      %v3151 = vmul.f32 %v2723, 1.442695
      %v3152 = vpow.pop %v3151
      %v3153 = vmul.f32 %v2724, 1.442695
      %v3154 = vpow.pop %v3153
      %v3155 = vmul.f32 %v2725, 1.442695
      %v3156 = vpow.pop %v3155
      %v3157 = vmul.f32 %v2726, 1.442695
      %v3158 = vpow.pop %v3157
      %v3159 = vmul.f32 %v2727, 1.442695
      %v3160 = vpow.pop %v3159
      %v3161 = vmul.f32 %v2728, 1.442695
      %v3162 = vpow.pop %v3161
      %v3163 = vmul.f32 %v2729, 1.442695
      %v3164 = vpow.pop %v3163
      %v3165 = vmul.f32 %v2730, 1.442695
      %v3166 = vpow.pop %v3165
      %v3167 = vmul.f32 %v2731, 1.442695
      %v3168 = vpow.pop %v3167
      %v3169 = vmul.f32 %v2732, 1.442695
      %v3170 = vpow.pop %v3169
      %v3171 = vmul.f32 %v2733, 1.442695
      %v3172 = vpow.pop %v3171
      %v3173 = vmul.f32 %v2734, 1.442695
      %v3174 = vpow.pop %v3173
      %v3175 = vmul.f32 %v2735, 1.442695
      %v3176 = vpow.pop %v3175
      %v3177 = vmul.f32 %v2736, 1.442695
      %v3178 = vpow.pop %v3177
      %v3179 = vmul.f32 %v2737, 1.442695
      %v3180 = vpow.pop %v3179
      %v3181 = vmul.f32 %v2738, 1.442695
      %v3182 = vpow.pop %v3181
      %v3183 = vmul.f32 %v2739, 1.442695
      %v3184 = vpow.pop %v3183
      %v3185 = vmul.f32 %v2740, 1.442695
      %v3186 = vpow.pop %v3185
      %v3187 = vmul.f32 %v2741, 1.442695
      %v3188 = vpow.pop %v3187
      %v3189 = vmul.f32 %v2742, 1.442695
      %v3190 = vpow.pop %v3189
      %v3191 = vmul.f32 %v2743, 1.442695
      %v3192 = vpow.pop %v3191
      %v3193 = vmul.f32 %v2744, 1.442695
      %v3194 = vpow.pop %v3193
      %v3195 = vmul.f32 %v2745, 1.442695
      %v3196 = vpow.pop %v3195
      %v3197 = vmul.f32 %v2746, 1.442695
      %v3198 = vpow.pop %v3197
      %v3199 = vmul.f32 %v2747, 1.442695
      %v3200 = vpow.pop %v3199
      %v3201 = vmul.f32 %v2748, 1.442695
      %v3202 = vpow.pop %v3201
      %v3203 = vmul.f32 %v2749, 1.442695
      %v3204 = vpow.pop %v3203
      %v3205 = vmul.f32 %v2750, 1.442695
      %v3206 = vpow.pop %v3205
      %v3207 = vmul.f32 %v2751, 1.442695
      %v3208 = vpow.pop %v3207
      %v3209 = vmul.f32 %v2752, 1.442695
      %v3210 = vpow.pop %v3209
      %v3211 = vmul.f32 %v2753, 1.442695
      %v3212 = vpow.pop %v3211
      %v3213 = vmul.f32 %v2754, 1.442695
      %v3214 = vpow.pop %v3213
      %v3215 = vmul.f32 %v2755, 1.442695
      %v3216 = vpow.pop %v3215
      %v3217 = vmul.f32 %v2756, 1.442695
      %v3218 = vpow.pop %v3217
      %v3219 = vmul.f32 %v2757, 1.442695
      %v3220 = vpow.pop %v3219
      %v3221 = vmul.f32 %v2758, 1.442695
      %v3222 = vpow.pop %v3221
      %v3223 = vmul.f32 %v2759, 1.442695
      %v3224 = vpow.pop %v3223
      %v3225 = vmul.f32 %v2760, 1.442695
      %v3226 = vpow.pop %v3225
      %v3227 = vmul.f32 %v2761, 1.442695
      %v3228 = vpow.pop %v3227
      %v3229 = vmul.f32 %v2762, 1.442695
      %v3230 = vpow.pop %v3229
      %v3231 = vmul.f32 %v2763, 1.442695
      %v3232 = vpow.pop %v3231
      %v3233 = vmul.f32 %v2764, 1.442695
      %v3234 = vpow.pop %v3233
      %v3235 = vmul.f32 %v2765, 1.442695
      %v3236 = vpow.pop %v3235
      %v3237 = vmul.f32 %v2766, 1.442695
      %v3238 = vpow.pop %v3237
      %v3239 = vmul.f32 %v2767, 1.442695
      %v3240 = vpow.pop %v3239
      %v3241 = vmul.f32 %v2768, 1.442695
      %v3242 = vpow.pop %v3241
      %v3243 = vmul.f32 %v2769, 1.442695
      %v3244 = vpow.pop %v3243
      %v3245 = vmul.f32 %v2770, 1.442695
      %v3246 = vpow.pop %v3245
      %v3247 = vmul.f32 %v2771, 1.442695
      %v3248 = vpow.pop %v3247
      %v3249 = vmul.f32 %v2772, 1.442695
      %v3250 = vpow.pop %v3249
      %v3251 = vmul.f32 %v2773, 1.442695
      %v3252 = vpow.pop %v3251
      %v3253 = vmul.f32 %v2774, 1.442695
      %v3254 = vpow.pop %v3253
      %v3255 = vmul.f32 %v2775, 1.442695
      %v3256 = vpow.pop %v3255
      %v3257 = vmul.f32 %v2776, 1.442695
      %v3258 = vpow.pop %v3257
      %v3259 = vmul.f32 %v2777, 1.442695
      %v3260 = vpow.pop %v3259
      %v3261 = vmul.f32 %v2778, 1.442695
      %v3262 = vpow.pop %v3261
      %v3263 = vmul.f32 %v2779, 1.442695
      %v3264 = vpow.pop %v3263
      %v3265 = vmul.f32 %v2780, 1.442695
      %v3266 = vpow.pop %v3265
      %v3267 = vmul.f32 %v2781, 1.442695
      %v3268 = vpow.pop %v3267
      %v3269 = vmul.f32 %v2782, 1.442695
      %v3270 = vpow.pop %v3269
      %v3271 = vmul.f32 %v2783, 1.442695
      %v3272 = vpow.pop %v3271
      %v3273 = vmul.f32 %v2784, 1.442695
      %v3274 = vpow.pop %v3273
      %v3275 = vmul.f32 %v2785, 1.442695
      %v3276 = vpow.pop %v3275
      %v3277 = vmul.f32 %v2786, 1.442695
      %v3278 = vpow.pop %v3277
      %v3279 = vmul.f32 %v2787, 1.442695
      %v3280 = vpow.pop %v3279
      %v3281 = vmul.f32 %v2788, 1.442695
      %v3282 = vpow.pop %v3281
      %v3283 = vmul.f32 %v2789, 1.442695
      %v3284 = vpow.pop %v3283
      %v3285 = vmul.f32 %v2790, 1.442695
      %v3286 = vpow.pop %v3285
      %v3287 = vmul.f32 %v2791, 1.442695
      %v3288 = vpow.pop %v3287
      %v3289 = vmul.f32 %v2792, 1.442695
      %v3290 = vpow.pop %v3289
      %v3291 = vmul.f32 %v2793, 1.442695
      %v3292 = vpow.pop %v3291
      %v3293 = vmul.f32 %v2794, 1.442695
      %v3294 = vpow.pop %v3293
      %v3295 = vmul.f32 %v2795, 1.442695
      %v3296 = vpow.pop %v3295
      %v3297 = vmul.f32 %v2796, 1.442695
      %v3298 = vpow.pop %v3297
      %v3299 = vmul.f32 %v2797, 1.442695
      %v3300 = vpow.pop %v3299
      %v3301 = vmul.f32 %v2798, 1.442695
      %v3302 = vpow.pop %v3301
      %v3303 = vmul.f32 %v2799, 1.442695
      %v3304 = vpow.pop %v3303
      %v3305 = vmul.f32 %v2800, 1.442695
      %v3306 = vpow.pop %v3305
      %v3307 = vmul.f32 %v2801, 1.442695
      %v3308 = vpow.pop %v3307
      %v3309 = vmul.f32 %v2802, 1.442695
      %v3310 = vpow.pop %v3309
      %v3311 = vmul.f32 %v2803, 1.442695
      %v3312 = vpow.pop %v3311
      %v3313 = vmul.f32 %v2804, 1.442695
      %v3314 = vpow.pop %v3313
      %v3315 = vmul.f32 %v2805, 1.442695
      %v3316 = vpow.pop %v3315
      %v3317 = vmul.f32 %v2806, 1.442695
      %v3318 = vpow.pop %v3317
      %v3319 = vadd.f32 %v2808, 1.0
      %v3320 = vadd.f32 %v2810, 1.0
      %v3321 = vadd.f32 %v2812, 1.0
      %v3322 = vadd.f32 %v2814, 1.0
      %v3323 = vadd.f32 %v2816, 1.0
      %v3324 = vadd.f32 %v2818, 1.0
      %v3325 = vadd.f32 %v2820, 1.0
      %v3326 = vadd.f32 %v2822, 1.0
      %v3327 = vadd.f32 %v2824, 1.0
      %v3328 = vadd.f32 %v2826, 1.0
      %v3329 = vadd.f32 %v2828, 1.0
      %v3330 = vadd.f32 %v2830, 1.0
      %v3331 = vadd.f32 %v2832, 1.0
      %v3332 = vadd.f32 %v2834, 1.0
      %v3333 = vadd.f32 %v2836, 1.0
      %v3334 = vadd.f32 %v2838, 1.0
      %v3335 = vadd.f32 %v2840, 1.0
      %v3336 = vadd.f32 %v2842, 1.0
      %v3337 = vadd.f32 %v2844, 1.0
      %v3338 = vadd.f32 %v2846, 1.0
      %v3339 = vadd.f32 %v2848, 1.0
      %v3340 = vadd.f32 %v2850, 1.0
      %v3341 = vadd.f32 %v2852, 1.0
      %v3342 = vadd.f32 %v2854, 1.0
      %v3343 = vadd.f32 %v2856, 1.0
      %v3344 = vadd.f32 %v2858, 1.0
      %v3345 = vadd.f32 %v2860, 1.0
      %v3346 = vadd.f32 %v2862, 1.0
      %v3347 = vadd.f32 %v2864, 1.0
      %v3348 = vadd.f32 %v2866, 1.0
      %v3349 = vadd.f32 %v2868, 1.0
      %v3350 = vadd.f32 %v2870, 1.0
      %v3351 = vadd.f32 %v2872, 1.0
      %v3352 = vadd.f32 %v2874, 1.0
      %v3353 = vadd.f32 %v2876, 1.0
      %v3354 = vadd.f32 %v2878, 1.0
      %v3355 = vadd.f32 %v2880, 1.0
      %v3356 = vadd.f32 %v2882, 1.0
      %v3357 = vadd.f32 %v2884, 1.0
      %v3358 = vadd.f32 %v2886, 1.0
      %v3359 = vadd.f32 %v2888, 1.0
      %v3360 = vadd.f32 %v2890, 1.0
      %v3361 = vadd.f32 %v2892, 1.0
      %v3362 = vadd.f32 %v2894, 1.0
      %v3363 = vadd.f32 %v2896, 1.0
      %v3364 = vadd.f32 %v2898, 1.0
      %v3365 = vadd.f32 %v2900, 1.0
      %v3366 = vadd.f32 %v2902, 1.0
      %v3367 = vadd.f32 %v2904, 1.0
      %v3368 = vadd.f32 %v2906, 1.0
      %v3369 = vadd.f32 %v2908, 1.0
      %v3370 = vadd.f32 %v2910, 1.0
      %v3371 = vadd.f32 %v2912, 1.0
      %v3372 = vadd.f32 %v2914, 1.0
      %v3373 = vadd.f32 %v2916, 1.0
      %v3374 = vadd.f32 %v2918, 1.0
      %v3375 = vadd.f32 %v2920, 1.0
      %v3376 = vadd.f32 %v2922, 1.0
      %v3377 = vadd.f32 %v2924, 1.0
      %v3378 = vadd.f32 %v2926, 1.0
      %v3379 = vadd.f32 %v2928, 1.0
      %v3380 = vadd.f32 %v2930, 1.0
      %v3381 = vadd.f32 %v2932, 1.0
      %v3382 = vadd.f32 %v2934, 1.0
      %v3383 = vadd.f32 %v2936, 1.0
      %v3384 = vadd.f32 %v2938, 1.0
      %v3385 = vadd.f32 %v2940, 1.0
      %v3386 = vadd.f32 %v2942, 1.0
      %v3387 = vadd.f32 %v2944, 1.0
      %v3388 = vadd.f32 %v2946, 1.0
      %v3389 = vadd.f32 %v2948, 1.0
      %v3390 = vadd.f32 %v2950, 1.0
      %v3391 = vadd.f32 %v2952, 1.0
      %v3392 = vadd.f32 %v2954, 1.0
      %v3393 = vadd.f32 %v2956, 1.0
      %v3394 = vadd.f32 %v2958, 1.0
      %v3395 = vadd.f32 %v2960, 1.0
      %v3396 = vadd.f32 %v2962, 1.0
      %v3397 = vadd.f32 %v2964, 1.0
      %v3398 = vadd.f32 %v2966, 1.0
      %v3399 = vadd.f32 %v2968, 1.0
      %v3400 = vadd.f32 %v2970, 1.0
      %v3401 = vadd.f32 %v2972, 1.0
      %v3402 = vadd.f32 %v2974, 1.0
      %v3403 = vadd.f32 %v2976, 1.0
      %v3404 = vadd.f32 %v2978, 1.0
      %v3405 = vadd.f32 %v2980, 1.0
      %v3406 = vadd.f32 %v2982, 1.0
      %v3407 = vadd.f32 %v2984, 1.0
      %v3408 = vadd.f32 %v2986, 1.0
      %v3409 = vadd.f32 %v2988, 1.0
      %v3410 = vadd.f32 %v2990, 1.0
      %v3411 = vadd.f32 %v2992, 1.0
      %v3412 = vadd.f32 %v2994, 1.0
      %v3413 = vadd.f32 %v2996, 1.0
      %v3414 = vadd.f32 %v2998, 1.0
      %v3415 = vadd.f32 %v3000, 1.0
      %v3416 = vadd.f32 %v3002, 1.0
      %v3417 = vadd.f32 %v3004, 1.0
      %v3418 = vadd.f32 %v3006, 1.0
      %v3419 = vadd.f32 %v3008, 1.0
      %v3420 = vadd.f32 %v3010, 1.0
      %v3421 = vadd.f32 %v3012, 1.0
      %v3422 = vadd.f32 %v3014, 1.0
      %v3423 = vadd.f32 %v3016, 1.0
      %v3424 = vadd.f32 %v3018, 1.0
      %v3425 = vadd.f32 %v3020, 1.0
      %v3426 = vadd.f32 %v3022, 1.0
      %v3427 = vadd.f32 %v3024, 1.0
      %v3428 = vadd.f32 %v3026, 1.0
      %v3429 = vadd.f32 %v3028, 1.0
      %v3430 = vadd.f32 %v3030, 1.0
      %v3431 = vadd.f32 %v3032, 1.0
      %v3432 = vadd.f32 %v3034, 1.0
      %v3433 = vadd.f32 %v3036, 1.0
      %v3434 = vadd.f32 %v3038, 1.0
      %v3435 = vadd.f32 %v3040, 1.0
      %v3436 = vadd.f32 %v3042, 1.0
      %v3437 = vadd.f32 %v3044, 1.0
      %v3438 = vadd.f32 %v3046, 1.0
      %v3439 = vadd.f32 %v3048, 1.0
      %v3440 = vadd.f32 %v3050, 1.0
      %v3441 = vadd.f32 %v3052, 1.0
      %v3442 = vadd.f32 %v3054, 1.0
      %v3443 = vadd.f32 %v3056, 1.0
      %v3444 = vadd.f32 %v3058, 1.0
      %v3445 = vadd.f32 %v3060, 1.0
      %v3446 = vadd.f32 %v3062, 1.0
      %v3447 = vadd.f32 %v3064, 1.0
      %v3448 = vadd.f32 %v3066, 1.0
      %v3449 = vadd.f32 %v3068, 1.0
      %v3450 = vadd.f32 %v3070, 1.0
      %v3451 = vadd.f32 %v3072, 1.0
      %v3452 = vadd.f32 %v3074, 1.0
      %v3453 = vadd.f32 %v3076, 1.0
      %v3454 = vadd.f32 %v3078, 1.0
      %v3455 = vadd.f32 %v3080, 1.0
      %v3456 = vadd.f32 %v3082, 1.0
      %v3457 = vadd.f32 %v3084, 1.0
      %v3458 = vadd.f32 %v3086, 1.0
      %v3459 = vadd.f32 %v3088, 1.0
      %v3460 = vadd.f32 %v3090, 1.0
      %v3461 = vadd.f32 %v3092, 1.0
      %v3462 = vadd.f32 %v3094, 1.0
      %v3463 = vadd.f32 %v3096, 1.0
      %v3464 = vadd.f32 %v3098, 1.0
      %v3465 = vadd.f32 %v3100, 1.0
      %v3466 = vadd.f32 %v3102, 1.0
      %v3467 = vadd.f32 %v3104, 1.0
      %v3468 = vadd.f32 %v3106, 1.0
      %v3469 = vadd.f32 %v3108, 1.0
      %v3470 = vadd.f32 %v3110, 1.0
      %v3471 = vadd.f32 %v3112, 1.0
      %v3472 = vadd.f32 %v3114, 1.0
      %v3473 = vadd.f32 %v3116, 1.0
      %v3474 = vadd.f32 %v3118, 1.0
      %v3475 = vadd.f32 %v3120, 1.0
      %v3476 = vadd.f32 %v3122, 1.0
      %v3477 = vadd.f32 %v3124, 1.0
      %v3478 = vadd.f32 %v3126, 1.0
      %v3479 = vadd.f32 %v3128, 1.0
      %v3480 = vadd.f32 %v3130, 1.0
      %v3481 = vadd.f32 %v3132, 1.0
      %v3482 = vadd.f32 %v3134, 1.0
      %v3483 = vadd.f32 %v3136, 1.0
      %v3484 = vadd.f32 %v3138, 1.0
      %v3485 = vadd.f32 %v3140, 1.0
      %v3486 = vadd.f32 %v3142, 1.0
      %v3487 = vadd.f32 %v3144, 1.0
      %v3488 = vadd.f32 %v3146, 1.0
      %v3489 = vadd.f32 %v3148, 1.0
      %v3490 = vadd.f32 %v3150, 1.0
      %v3491 = vadd.f32 %v3152, 1.0
      %v3492 = vadd.f32 %v3154, 1.0
      %v3493 = vadd.f32 %v3156, 1.0
      %v3494 = vadd.f32 %v3158, 1.0
      %v3495 = vadd.f32 %v3160, 1.0
      %v3496 = vadd.f32 %v3162, 1.0
      %v3497 = vadd.f32 %v3164, 1.0
      %v3498 = vadd.f32 %v3166, 1.0
      %v3499 = vadd.f32 %v3168, 1.0
      %v3500 = vadd.f32 %v3170, 1.0
      %v3501 = vadd.f32 %v3172, 1.0
      %v3502 = vadd.f32 %v3174, 1.0
      %v3503 = vadd.f32 %v3176, 1.0
      %v3504 = vadd.f32 %v3178, 1.0
      %v3505 = vadd.f32 %v3180, 1.0
      %v3506 = vadd.f32 %v3182, 1.0
      %v3507 = vadd.f32 %v3184, 1.0
      %v3508 = vadd.f32 %v3186, 1.0
      %v3509 = vadd.f32 %v3188, 1.0
      %v3510 = vadd.f32 %v3190, 1.0
      %v3511 = vadd.f32 %v3192, 1.0
      %v3512 = vadd.f32 %v3194, 1.0
      %v3513 = vadd.f32 %v3196, 1.0
      %v3514 = vadd.f32 %v3198, 1.0
      %v3515 = vadd.f32 %v3200, 1.0
      %v3516 = vadd.f32 %v3202, 1.0
      %v3517 = vadd.f32 %v3204, 1.0
      %v3518 = vadd.f32 %v3206, 1.0
      %v3519 = vadd.f32 %v3208, 1.0
      %v3520 = vadd.f32 %v3210, 1.0
      %v3521 = vadd.f32 %v3212, 1.0
      %v3522 = vadd.f32 %v3214, 1.0
      %v3523 = vadd.f32 %v3216, 1.0
      %v3524 = vadd.f32 %v3218, 1.0
      %v3525 = vadd.f32 %v3220, 1.0
      %v3526 = vadd.f32 %v3222, 1.0
      %v3527 = vadd.f32 %v3224, 1.0
      %v3528 = vadd.f32 %v3226, 1.0
      %v3529 = vadd.f32 %v3228, 1.0
      %v3530 = vadd.f32 %v3230, 1.0
      %v3531 = vadd.f32 %v3232, 1.0
      %v3532 = vadd.f32 %v3234, 1.0
      %v3533 = vadd.f32 %v3236, 1.0
      %v3534 = vadd.f32 %v3238, 1.0
      %v3535 = vadd.f32 %v3240, 1.0
      %v3536 = vadd.f32 %v3242, 1.0
      %v3537 = vadd.f32 %v3244, 1.0
      %v3538 = vadd.f32 %v3246, 1.0
      %v3539 = vadd.f32 %v3248, 1.0
      %v3540 = vadd.f32 %v3250, 1.0
      %v3541 = vadd.f32 %v3252, 1.0
      %v3542 = vadd.f32 %v3254, 1.0
      %v3543 = vadd.f32 %v3256, 1.0
      %v3544 = vadd.f32 %v3258, 1.0
      %v3545 = vadd.f32 %v3260, 1.0
      %v3546 = vadd.f32 %v3262, 1.0
      %v3547 = vadd.f32 %v3264, 1.0
      %v3548 = vadd.f32 %v3266, 1.0
      %v3549 = vadd.f32 %v3268, 1.0
      %v3550 = vadd.f32 %v3270, 1.0
      %v3551 = vadd.f32 %v3272, 1.0
      %v3552 = vadd.f32 %v3274, 1.0
      %v3553 = vadd.f32 %v3276, 1.0
      %v3554 = vadd.f32 %v3278, 1.0
      %v3555 = vadd.f32 %v3280, 1.0
      %v3556 = vadd.f32 %v3282, 1.0
      %v3557 = vadd.f32 %v3284, 1.0
      %v3558 = vadd.f32 %v3286, 1.0
      %v3559 = vadd.f32 %v3288, 1.0
      %v3560 = vadd.f32 %v3290, 1.0
      %v3561 = vadd.f32 %v3292, 1.0
      %v3562 = vadd.f32 %v3294, 1.0
      %v3563 = vadd.f32 %v3296, 1.0
      %v3564 = vadd.f32 %v3298, 1.0
      %v3565 = vadd.f32 %v3300, 1.0
      %v3566 = vadd.f32 %v3302, 1.0
      %v3567 = vadd.f32 %v3304, 1.0
      %v3568 = vadd.f32 %v3306, 1.0
      %v3569 = vadd.f32 %v3308, 1.0
      %v3570 = vadd.f32 %v3310, 1.0
      %v3571 = vadd.f32 %v3312, 1.0
      %v3572 = vadd.f32 %v3314, 1.0
      %v3573 = vadd.f32 %v3316, 1.0
      %v3574 = vadd.f32 %v3318, 1.0
      %v3575 = vrcp.pop %v3319
      %v3576 = vmul.f32 1.0, %v3575
      %v3577 = vrcp.pop %v3320
      %v3578 = vmul.f32 1.0, %v3577
      %v3579 = vrcp.pop %v3321
      %v3580 = vmul.f32 1.0, %v3579
      %v3581 = vrcp.pop %v3322
      %v3582 = vmul.f32 1.0, %v3581
      %v3583 = vrcp.pop %v3323
      %v3584 = vmul.f32 1.0, %v3583
      %v3585 = vrcp.pop %v3324
      %v3586 = vmul.f32 1.0, %v3585
      %v3587 = vrcp.pop %v3325
      %v3588 = vmul.f32 1.0, %v3587
      %v3589 = vrcp.pop %v3326
      %v3590 = vmul.f32 1.0, %v3589
      %v3591 = vrcp.pop %v3327
      %v3592 = vmul.f32 1.0, %v3591
      %v3593 = vrcp.pop %v3328
      %v3594 = vmul.f32 1.0, %v3593
      %v3595 = vrcp.pop %v3329
      %v3596 = vmul.f32 1.0, %v3595
      %v3597 = vrcp.pop %v3330
      %v3598 = vmul.f32 1.0, %v3597
      %v3599 = vrcp.pop %v3331
      %v3600 = vmul.f32 1.0, %v3599
      %v3601 = vrcp.pop %v3332
      %v3602 = vmul.f32 1.0, %v3601
      %v3603 = vrcp.pop %v3333
      %v3604 = vmul.f32 1.0, %v3603
      %v3605 = vrcp.pop %v3334
      %v3606 = vmul.f32 1.0, %v3605
      %v3607 = vrcp.pop %v3335
      %v3608 = vmul.f32 1.0, %v3607
      %v3609 = vrcp.pop %v3336
      %v3610 = vmul.f32 1.0, %v3609
      %v3611 = vrcp.pop %v3337
      %v3612 = vmul.f32 1.0, %v3611
      %v3613 = vrcp.pop %v3338
      %v3614 = vmul.f32 1.0, %v3613
      %v3615 = vrcp.pop %v3339
      %v3616 = vmul.f32 1.0, %v3615
      %v3617 = vrcp.pop %v3340
      %v3618 = vmul.f32 1.0, %v3617
      %v3619 = vrcp.pop %v3341
      %v3620 = vmul.f32 1.0, %v3619
      %v3621 = vrcp.pop %v3342
      %v3622 = vmul.f32 1.0, %v3621
      %v3623 = vrcp.pop %v3343
      %v3624 = vmul.f32 1.0, %v3623
      %v3625 = vrcp.pop %v3344
      %v3626 = vmul.f32 1.0, %v3625
      %v3627 = vrcp.pop %v3345
      %v3628 = vmul.f32 1.0, %v3627
      %v3629 = vrcp.pop %v3346
      %v3630 = vmul.f32 1.0, %v3629
      %v3631 = vrcp.pop %v3347
      %v3632 = vmul.f32 1.0, %v3631
      %v3633 = vrcp.pop %v3348
      %v3634 = vmul.f32 1.0, %v3633
      %v3635 = vrcp.pop %v3349
      %v3636 = vmul.f32 1.0, %v3635
      %v3637 = vrcp.pop %v3350
      %v3638 = vmul.f32 1.0, %v3637
      %v3639 = vrcp.pop %v3351
      %v3640 = vmul.f32 1.0, %v3639
      %v3641 = vrcp.pop %v3352
      %v3642 = vmul.f32 1.0, %v3641
      %v3643 = vrcp.pop %v3353
      %v3644 = vmul.f32 1.0, %v3643
      %v3645 = vrcp.pop %v3354
      %v3646 = vmul.f32 1.0, %v3645
      %v3647 = vrcp.pop %v3355
      %v3648 = vmul.f32 1.0, %v3647
      %v3649 = vrcp.pop %v3356
      %v3650 = vmul.f32 1.0, %v3649
      %v3651 = vrcp.pop %v3357
      %v3652 = vmul.f32 1.0, %v3651
      %v3653 = vrcp.pop %v3358
      %v3654 = vmul.f32 1.0, %v3653
      %v3655 = vrcp.pop %v3359
      %v3656 = vmul.f32 1.0, %v3655
      %v3657 = vrcp.pop %v3360
      %v3658 = vmul.f32 1.0, %v3657
      %v3659 = vrcp.pop %v3361
      %v3660 = vmul.f32 1.0, %v3659
      %v3661 = vrcp.pop %v3362
      %v3662 = vmul.f32 1.0, %v3661
      %v3663 = vrcp.pop %v3363
      %v3664 = vmul.f32 1.0, %v3663
      %v3665 = vrcp.pop %v3364
      %v3666 = vmul.f32 1.0, %v3665
      %v3667 = vrcp.pop %v3365
      %v3668 = vmul.f32 1.0, %v3667
      %v3669 = vrcp.pop %v3366
      %v3670 = vmul.f32 1.0, %v3669
      %v3671 = vrcp.pop %v3367
      %v3672 = vmul.f32 1.0, %v3671
      %v3673 = vrcp.pop %v3368
      %v3674 = vmul.f32 1.0, %v3673
      %v3675 = vrcp.pop %v3369
      %v3676 = vmul.f32 1.0, %v3675
      %v3677 = vrcp.pop %v3370
      %v3678 = vmul.f32 1.0, %v3677
      %v3679 = vrcp.pop %v3371
      %v3680 = vmul.f32 1.0, %v3679
      %v3681 = vrcp.pop %v3372
      %v3682 = vmul.f32 1.0, %v3681
      %v3683 = vrcp.pop %v3373
      %v3684 = vmul.f32 1.0, %v3683
      %v3685 = vrcp.pop %v3374
      %v3686 = vmul.f32 1.0, %v3685
      %v3687 = vrcp.pop %v3375
      %v3688 = vmul.f32 1.0, %v3687
      %v3689 = vrcp.pop %v3376
      %v3690 = vmul.f32 1.0, %v3689
      %v3691 = vrcp.pop %v3377
      %v3692 = vmul.f32 1.0, %v3691
      %v3693 = vrcp.pop %v3378
      %v3694 = vmul.f32 1.0, %v3693
      %v3695 = vrcp.pop %v3379
      %v3696 = vmul.f32 1.0, %v3695
      %v3697 = vrcp.pop %v3380
      %v3698 = vmul.f32 1.0, %v3697
      %v3699 = vrcp.pop %v3381
      %v3700 = vmul.f32 1.0, %v3699
      %v3701 = vrcp.pop %v3382
      %v3702 = vmul.f32 1.0, %v3701
      %v3703 = vrcp.pop %v3383
      %v3704 = vmul.f32 1.0, %v3703
      %v3705 = vrcp.pop %v3384
      %v3706 = vmul.f32 1.0, %v3705
      %v3707 = vrcp.pop %v3385
      %v3708 = vmul.f32 1.0, %v3707
      %v3709 = vrcp.pop %v3386
      %v3710 = vmul.f32 1.0, %v3709
      %v3711 = vrcp.pop %v3387
      %v3712 = vmul.f32 1.0, %v3711
      %v3713 = vrcp.pop %v3388
      %v3714 = vmul.f32 1.0, %v3713
      %v3715 = vrcp.pop %v3389
      %v3716 = vmul.f32 1.0, %v3715
      %v3717 = vrcp.pop %v3390
      %v3718 = vmul.f32 1.0, %v3717
      %v3719 = vrcp.pop %v3391
      %v3720 = vmul.f32 1.0, %v3719
      %v3721 = vrcp.pop %v3392
      %v3722 = vmul.f32 1.0, %v3721
      %v3723 = vrcp.pop %v3393
      %v3724 = vmul.f32 1.0, %v3723
      %v3725 = vrcp.pop %v3394
      %v3726 = vmul.f32 1.0, %v3725
      %v3727 = vrcp.pop %v3395
      %v3728 = vmul.f32 1.0, %v3727
      %v3729 = vrcp.pop %v3396
      %v3730 = vmul.f32 1.0, %v3729
      %v3731 = vrcp.pop %v3397
      %v3732 = vmul.f32 1.0, %v3731
      %v3733 = vrcp.pop %v3398
      %v3734 = vmul.f32 1.0, %v3733
      %v3735 = vrcp.pop %v3399
      %v3736 = vmul.f32 1.0, %v3735
      %v3737 = vrcp.pop %v3400
      %v3738 = vmul.f32 1.0, %v3737
      %v3739 = vrcp.pop %v3401
      %v3740 = vmul.f32 1.0, %v3739
      %v3741 = vrcp.pop %v3402
      %v3742 = vmul.f32 1.0, %v3741
      %v3743 = vrcp.pop %v3403
      %v3744 = vmul.f32 1.0, %v3743
      %v3745 = vrcp.pop %v3404
      %v3746 = vmul.f32 1.0, %v3745
      %v3747 = vrcp.pop %v3405
      %v3748 = vmul.f32 1.0, %v3747
      %v3749 = vrcp.pop %v3406
      %v3750 = vmul.f32 1.0, %v3749
      %v3751 = vrcp.pop %v3407
      %v3752 = vmul.f32 1.0, %v3751
      %v3753 = vrcp.pop %v3408
      %v3754 = vmul.f32 1.0, %v3753
      %v3755 = vrcp.pop %v3409
      %v3756 = vmul.f32 1.0, %v3755
      %v3757 = vrcp.pop %v3410
      %v3758 = vmul.f32 1.0, %v3757
      %v3759 = vrcp.pop %v3411
      %v3760 = vmul.f32 1.0, %v3759
      %v3761 = vrcp.pop %v3412
      %v3762 = vmul.f32 1.0, %v3761
      %v3763 = vrcp.pop %v3413
      %v3764 = vmul.f32 1.0, %v3763
      %v3765 = vrcp.pop %v3414
      %v3766 = vmul.f32 1.0, %v3765
      %v3767 = vrcp.pop %v3415
      %v3768 = vmul.f32 1.0, %v3767
      %v3769 = vrcp.pop %v3416
      %v3770 = vmul.f32 1.0, %v3769
      %v3771 = vrcp.pop %v3417
      %v3772 = vmul.f32 1.0, %v3771
      %v3773 = vrcp.pop %v3418
      %v3774 = vmul.f32 1.0, %v3773
      %v3775 = vrcp.pop %v3419
      %v3776 = vmul.f32 1.0, %v3775
      %v3777 = vrcp.pop %v3420
      %v3778 = vmul.f32 1.0, %v3777
      %v3779 = vrcp.pop %v3421
      %v3780 = vmul.f32 1.0, %v3779
      %v3781 = vrcp.pop %v3422
      %v3782 = vmul.f32 1.0, %v3781
      %v3783 = vrcp.pop %v3423
      %v3784 = vmul.f32 1.0, %v3783
      %v3785 = vrcp.pop %v3424
      %v3786 = vmul.f32 1.0, %v3785
      %v3787 = vrcp.pop %v3425
      %v3788 = vmul.f32 1.0, %v3787
      %v3789 = vrcp.pop %v3426
      %v3790 = vmul.f32 1.0, %v3789
      %v3791 = vrcp.pop %v3427
      %v3792 = vmul.f32 1.0, %v3791
      %v3793 = vrcp.pop %v3428
      %v3794 = vmul.f32 1.0, %v3793
      %v3795 = vrcp.pop %v3429
      %v3796 = vmul.f32 1.0, %v3795
      %v3797 = vrcp.pop %v3430
      %v3798 = vmul.f32 1.0, %v3797
      %v3799 = vrcp.pop %v3431
      %v3800 = vmul.f32 1.0, %v3799
      %v3801 = vrcp.pop %v3432
      %v3802 = vmul.f32 1.0, %v3801
      %v3803 = vrcp.pop %v3433
      %v3804 = vmul.f32 1.0, %v3803
      %v3805 = vrcp.pop %v3434
      %v3806 = vmul.f32 1.0, %v3805
      %v3807 = vrcp.pop %v3435
      %v3808 = vmul.f32 1.0, %v3807
      %v3809 = vrcp.pop %v3436
      %v3810 = vmul.f32 1.0, %v3809
      %v3811 = vrcp.pop %v3437
      %v3812 = vmul.f32 1.0, %v3811
      %v3813 = vrcp.pop %v3438
      %v3814 = vmul.f32 1.0, %v3813
      %v3815 = vrcp.pop %v3439
      %v3816 = vmul.f32 1.0, %v3815
      %v3817 = vrcp.pop %v3440
      %v3818 = vmul.f32 1.0, %v3817
      %v3819 = vrcp.pop %v3441
      %v3820 = vmul.f32 1.0, %v3819
      %v3821 = vrcp.pop %v3442
      %v3822 = vmul.f32 1.0, %v3821
      %v3823 = vrcp.pop %v3443
      %v3824 = vmul.f32 1.0, %v3823
      %v3825 = vrcp.pop %v3444
      %v3826 = vmul.f32 1.0, %v3825
      %v3827 = vrcp.pop %v3445
      %v3828 = vmul.f32 1.0, %v3827
      %v3829 = vrcp.pop %v3446
      %v3830 = vmul.f32 1.0, %v3829
      %v3831 = vrcp.pop %v3447
      %v3832 = vmul.f32 1.0, %v3831
      %v3833 = vrcp.pop %v3448
      %v3834 = vmul.f32 1.0, %v3833
      %v3835 = vrcp.pop %v3449
      %v3836 = vmul.f32 1.0, %v3835
      %v3837 = vrcp.pop %v3450
      %v3838 = vmul.f32 1.0, %v3837
      %v3839 = vrcp.pop %v3451
      %v3840 = vmul.f32 1.0, %v3839
      %v3841 = vrcp.pop %v3452
      %v3842 = vmul.f32 1.0, %v3841
      %v3843 = vrcp.pop %v3453
      %v3844 = vmul.f32 1.0, %v3843
      %v3845 = vrcp.pop %v3454
      %v3846 = vmul.f32 1.0, %v3845
      %v3847 = vrcp.pop %v3455
      %v3848 = vmul.f32 1.0, %v3847
      %v3849 = vrcp.pop %v3456
      %v3850 = vmul.f32 1.0, %v3849
      %v3851 = vrcp.pop %v3457
      %v3852 = vmul.f32 1.0, %v3851
      %v3853 = vrcp.pop %v3458
      %v3854 = vmul.f32 1.0, %v3853
      %v3855 = vrcp.pop %v3459
      %v3856 = vmul.f32 1.0, %v3855
      %v3857 = vrcp.pop %v3460
      %v3858 = vmul.f32 1.0, %v3857
      %v3859 = vrcp.pop %v3461
      %v3860 = vmul.f32 1.0, %v3859
      %v3861 = vrcp.pop %v3462
      %v3862 = vmul.f32 1.0, %v3861
      %v3863 = vrcp.pop %v3463
      %v3864 = vmul.f32 1.0, %v3863
      %v3865 = vrcp.pop %v3464
      %v3866 = vmul.f32 1.0, %v3865
      %v3867 = vrcp.pop %v3465
      %v3868 = vmul.f32 1.0, %v3867
      %v3869 = vrcp.pop %v3466
      %v3870 = vmul.f32 1.0, %v3869
      %v3871 = vrcp.pop %v3467
      %v3872 = vmul.f32 1.0, %v3871
      %v3873 = vrcp.pop %v3468
      %v3874 = vmul.f32 1.0, %v3873
      %v3875 = vrcp.pop %v3469
      %v3876 = vmul.f32 1.0, %v3875
      %v3877 = vrcp.pop %v3470
      %v3878 = vmul.f32 1.0, %v3877
      %v3879 = vrcp.pop %v3471
      %v3880 = vmul.f32 1.0, %v3879
      %v3881 = vrcp.pop %v3472
      %v3882 = vmul.f32 1.0, %v3881
      %v3883 = vrcp.pop %v3473
      %v3884 = vmul.f32 1.0, %v3883
      %v3885 = vrcp.pop %v3474
      %v3886 = vmul.f32 1.0, %v3885
      %v3887 = vrcp.pop %v3475
      %v3888 = vmul.f32 1.0, %v3887
      %v3889 = vrcp.pop %v3476
      %v3890 = vmul.f32 1.0, %v3889
      %v3891 = vrcp.pop %v3477
      %v3892 = vmul.f32 1.0, %v3891
      %v3893 = vrcp.pop %v3478
      %v3894 = vmul.f32 1.0, %v3893
      %v3895 = vrcp.pop %v3479
      %v3896 = vmul.f32 1.0, %v3895
      %v3897 = vrcp.pop %v3480
      %v3898 = vmul.f32 1.0, %v3897
      %v3899 = vrcp.pop %v3481
      %v3900 = vmul.f32 1.0, %v3899
      %v3901 = vrcp.pop %v3482
      %v3902 = vmul.f32 1.0, %v3901
      %v3903 = vrcp.pop %v3483
      %v3904 = vmul.f32 1.0, %v3903
      %v3905 = vrcp.pop %v3484
      %v3906 = vmul.f32 1.0, %v3905
      %v3907 = vrcp.pop %v3485
      %v3908 = vmul.f32 1.0, %v3907
      %v3909 = vrcp.pop %v3486
      %v3910 = vmul.f32 1.0, %v3909
      %v3911 = vrcp.pop %v3487
      %v3912 = vmul.f32 1.0, %v3911
      %v3913 = vrcp.pop %v3488
      %v3914 = vmul.f32 1.0, %v3913
      %v3915 = vrcp.pop %v3489
      %v3916 = vmul.f32 1.0, %v3915
      %v3917 = vrcp.pop %v3490
      %v3918 = vmul.f32 1.0, %v3917
      %v3919 = vrcp.pop %v3491
      %v3920 = vmul.f32 1.0, %v3919
      %v3921 = vrcp.pop %v3492
      %v3922 = vmul.f32 1.0, %v3921
      %v3923 = vrcp.pop %v3493
      %v3924 = vmul.f32 1.0, %v3923
      %v3925 = vrcp.pop %v3494
      %v3926 = vmul.f32 1.0, %v3925
      %v3927 = vrcp.pop %v3495
      %v3928 = vmul.f32 1.0, %v3927
      %v3929 = vrcp.pop %v3496
      %v3930 = vmul.f32 1.0, %v3929
      %v3931 = vrcp.pop %v3497
      %v3932 = vmul.f32 1.0, %v3931
      %v3933 = vrcp.pop %v3498
      %v3934 = vmul.f32 1.0, %v3933
      %v3935 = vrcp.pop %v3499
      %v3936 = vmul.f32 1.0, %v3935
      %v3937 = vrcp.pop %v3500
      %v3938 = vmul.f32 1.0, %v3937
      %v3939 = vrcp.pop %v3501
      %v3940 = vmul.f32 1.0, %v3939
      %v3941 = vrcp.pop %v3502
      %v3942 = vmul.f32 1.0, %v3941
      %v3943 = vrcp.pop %v3503
      %v3944 = vmul.f32 1.0, %v3943
      %v3945 = vrcp.pop %v3504
      %v3946 = vmul.f32 1.0, %v3945
      %v3947 = vrcp.pop %v3505
      %v3948 = vmul.f32 1.0, %v3947
      %v3949 = vrcp.pop %v3506
      %v3950 = vmul.f32 1.0, %v3949
      %v3951 = vrcp.pop %v3507
      %v3952 = vmul.f32 1.0, %v3951
      %v3953 = vrcp.pop %v3508
      %v3954 = vmul.f32 1.0, %v3953
      %v3955 = vrcp.pop %v3509
      %v3956 = vmul.f32 1.0, %v3955
      %v3957 = vrcp.pop %v3510
      %v3958 = vmul.f32 1.0, %v3957
      %v3959 = vrcp.pop %v3511
      %v3960 = vmul.f32 1.0, %v3959
      %v3961 = vrcp.pop %v3512
      %v3962 = vmul.f32 1.0, %v3961
      %v3963 = vrcp.pop %v3513
      %v3964 = vmul.f32 1.0, %v3963
      %v3965 = vrcp.pop %v3514
      %v3966 = vmul.f32 1.0, %v3965
      %v3967 = vrcp.pop %v3515
      %v3968 = vmul.f32 1.0, %v3967
      %v3969 = vrcp.pop %v3516
      %v3970 = vmul.f32 1.0, %v3969
      %v3971 = vrcp.pop %v3517
      %v3972 = vmul.f32 1.0, %v3971
      %v3973 = vrcp.pop %v3518
      %v3974 = vmul.f32 1.0, %v3973
      %v3975 = vrcp.pop %v3519
      %v3976 = vmul.f32 1.0, %v3975
      %v3977 = vrcp.pop %v3520
      %v3978 = vmul.f32 1.0, %v3977
      %v3979 = vrcp.pop %v3521
      %v3980 = vmul.f32 1.0, %v3979
      %v3981 = vrcp.pop %v3522
      %v3982 = vmul.f32 1.0, %v3981
      %v3983 = vrcp.pop %v3523
      %v3984 = vmul.f32 1.0, %v3983
      %v3985 = vrcp.pop %v3524
      %v3986 = vmul.f32 1.0, %v3985
      %v3987 = vrcp.pop %v3525
      %v3988 = vmul.f32 1.0, %v3987
      %v3989 = vrcp.pop %v3526
      %v3990 = vmul.f32 1.0, %v3989
      %v3991 = vrcp.pop %v3527
      %v3992 = vmul.f32 1.0, %v3991
      %v3993 = vrcp.pop %v3528
      %v3994 = vmul.f32 1.0, %v3993
      %v3995 = vrcp.pop %v3529
      %v3996 = vmul.f32 1.0, %v3995
      %v3997 = vrcp.pop %v3530
      %v3998 = vmul.f32 1.0, %v3997
      %v3999 = vrcp.pop %v3531
      %v4000 = vmul.f32 1.0, %v3999
      %v4001 = vrcp.pop %v3532
      %v4002 = vmul.f32 1.0, %v4001
      %v4003 = vrcp.pop %v3533
      %v4004 = vmul.f32 1.0, %v4003
      %v4005 = vrcp.pop %v3534
      %v4006 = vmul.f32 1.0, %v4005
      %v4007 = vrcp.pop %v3535
      %v4008 = vmul.f32 1.0, %v4007
      %v4009 = vrcp.pop %v3536
      %v4010 = vmul.f32 1.0, %v4009
      %v4011 = vrcp.pop %v3537
      %v4012 = vmul.f32 1.0, %v4011
      %v4013 = vrcp.pop %v3538
      %v4014 = vmul.f32 1.0, %v4013
      %v4015 = vrcp.pop %v3539
      %v4016 = vmul.f32 1.0, %v4015
      %v4017 = vrcp.pop %v3540
      %v4018 = vmul.f32 1.0, %v4017
      %v4019 = vrcp.pop %v3541
      %v4020 = vmul.f32 1.0, %v4019
      %v4021 = vrcp.pop %v3542
      %v4022 = vmul.f32 1.0, %v4021
      %v4023 = vrcp.pop %v3543
      %v4024 = vmul.f32 1.0, %v4023
      %v4025 = vrcp.pop %v3544
      %v4026 = vmul.f32 1.0, %v4025
      %v4027 = vrcp.pop %v3545
      %v4028 = vmul.f32 1.0, %v4027
      %v4029 = vrcp.pop %v3546
      %v4030 = vmul.f32 1.0, %v4029
      %v4031 = vrcp.pop %v3547
      %v4032 = vmul.f32 1.0, %v4031
      %v4033 = vrcp.pop %v3548
      %v4034 = vmul.f32 1.0, %v4033
      %v4035 = vrcp.pop %v3549
      %v4036 = vmul.f32 1.0, %v4035
      %v4037 = vrcp.pop %v3550
      %v4038 = vmul.f32 1.0, %v4037
      %v4039 = vrcp.pop %v3551
      %v4040 = vmul.f32 1.0, %v4039
      %v4041 = vrcp.pop %v3552
      %v4042 = vmul.f32 1.0, %v4041
      %v4043 = vrcp.pop %v3553
      %v4044 = vmul.f32 1.0, %v4043
      %v4045 = vrcp.pop %v3554
      %v4046 = vmul.f32 1.0, %v4045
      %v4047 = vrcp.pop %v3555
      %v4048 = vmul.f32 1.0, %v4047
      %v4049 = vrcp.pop %v3556
      %v4050 = vmul.f32 1.0, %v4049
      %v4051 = vrcp.pop %v3557
      %v4052 = vmul.f32 1.0, %v4051
      %v4053 = vrcp.pop %v3558
      %v4054 = vmul.f32 1.0, %v4053
      %v4055 = vrcp.pop %v3559
      %v4056 = vmul.f32 1.0, %v4055
      %v4057 = vrcp.pop %v3560
      %v4058 = vmul.f32 1.0, %v4057
      %v4059 = vrcp.pop %v3561
      %v4060 = vmul.f32 1.0, %v4059
      %v4061 = vrcp.pop %v3562
      %v4062 = vmul.f32 1.0, %v4061
      %v4063 = vrcp.pop %v3563
      %v4064 = vmul.f32 1.0, %v4063
      %v4065 = vrcp.pop %v3564
      %v4066 = vmul.f32 1.0, %v4065
      %v4067 = vrcp.pop %v3565
      %v4068 = vmul.f32 1.0, %v4067
      %v4069 = vrcp.pop %v3566
      %v4070 = vmul.f32 1.0, %v4069
      %v4071 = vrcp.pop %v3567
      %v4072 = vmul.f32 1.0, %v4071
      %v4073 = vrcp.pop %v3568
      %v4074 = vmul.f32 1.0, %v4073
      %v4075 = vrcp.pop %v3569
      %v4076 = vmul.f32 1.0, %v4075
      %v4077 = vrcp.pop %v3570
      %v4078 = vmul.f32 1.0, %v4077
      %v4079 = vrcp.pop %v3571
      %v4080 = vmul.f32 1.0, %v4079
      %v4081 = vrcp.pop %v3572
      %v4082 = vmul.f32 1.0, %v4081
      %v4083 = vrcp.pop %v3573
      %v4084 = vmul.f32 1.0, %v4083
      %v4085 = vrcp.pop %v3574
      %v4086 = vmul.f32 1.0, %v4085
      %vm4087 = vcmask 7168
      %4088 = vst.msk [vmem:[%s173] sm:$0xff] %vm4087, %v3576
      %4089 = vst.msk [vmem:[%s173 + $0x8] sm:$0xff] %vm4087, %v3578
      %4090 = vst.msk [vmem:[%s173 + $0x10] sm:$0xff] %vm4087, %v3580
      %4091 = vst.msk [vmem:[%s173 + $0x18] sm:$0xff] %vm4087, %v3582
      %4092 = vst.msk [vmem:[%s173 + $0x20] sm:$0xff] %vm4087, %v3584
      %4093 = vst.msk [vmem:[%s173 + $0x28] sm:$0xff] %vm4087, %v3586
      %4094 = vst.msk [vmem:[%s173 + $0x30] sm:$0xff] %vm4087, %v3588
      %4095 = vst.msk [vmem:[%s173 + $0x38] sm:$0xff] %vm4087, %v3590
      %4096 = vst.msk [vmem:[%s173 + $0x40] sm:$0xff] %vm4087, %v3592
      %4097 = vst.msk [vmem:[%s173 + $0x48] sm:$0xff] %vm4087, %v3594
      %4098 = vst.msk [vmem:[%s173 + $0x50] sm:$0xff] %vm4087, %v3596
      %4099 = vst.msk [vmem:[%s173 + $0x58] sm:$0xff] %vm4087, %v3598
      %4100 = vst.msk [vmem:[%s173 + $0x60] sm:$0xff] %vm4087, %v3600
      %4101 = vst.msk [vmem:[%s173 + $0x68] sm:$0xff] %vm4087, %v3602
      %4102 = vst.msk [vmem:[%s173 + $0x70] sm:$0xff] %vm4087, %v3604
      %4103 = vst.msk [vmem:[%s173 + $0x78] sm:$0xff] %vm4087, %v3606
      %4104 = vst.msk [vmem:[%s173 + $0x80] sm:$0xff] %vm4087, %v3608
      %4105 = vst.msk [vmem:[%s173 + $0x88] sm:$0xff] %vm4087, %v3610
      %4106 = vst.msk [vmem:[%s173 + $0x90] sm:$0xff] %vm4087, %v3612
      %4107 = vst.msk [vmem:[%s173 + $0x98] sm:$0xff] %vm4087, %v3614
      %4108 = vst.msk [vmem:[%s173 + $0xa0] sm:$0xff] %vm4087, %v3616
      %4109 = vst.msk [vmem:[%s173 + $0xa8] sm:$0xff] %vm4087, %v3618
      %4110 = vst.msk [vmem:[%s173 + $0xb0] sm:$0xff] %vm4087, %v3620
      %4111 = vst.msk [vmem:[%s173 + $0xb8] sm:$0xff] %vm4087, %v3622
      %4112 = vst.msk [vmem:[%s173 + $0xc0] sm:$0xff] %vm4087, %v3624
      %4113 = vst.msk [vmem:[%s173 + $0xc8] sm:$0xff] %vm4087, %v3626
      %4114 = vst.msk [vmem:[%s173 + $0xd0] sm:$0xff] %vm4087, %v3628
      %4115 = vst.msk [vmem:[%s173 + $0xd8] sm:$0xff] %vm4087, %v3630
      %4116 = vst.msk [vmem:[%s173 + $0xe0] sm:$0xff] %vm4087, %v3632
      %4117 = vst.msk [vmem:[%s173 + $0xe8] sm:$0xff] %vm4087, %v3634
      %4118 = vst.msk [vmem:[%s173 + $0xf0] sm:$0xff] %vm4087, %v3636
      %4119 = vst.msk [vmem:[%s173 + $0xf8] sm:$0xff] %vm4087, %v3638
      %4120 = vst.msk [vmem:[%s173 + $0x100] sm:$0xff] %vm4087, %v3640
      %4121 = vst.msk [vmem:[%s173 + $0x108] sm:$0xff] %vm4087, %v3642
      %4122 = vst.msk [vmem:[%s173 + $0x110] sm:$0xff] %vm4087, %v3644
      %4123 = vst.msk [vmem:[%s173 + $0x118] sm:$0xff] %vm4087, %v3646
      %4124 = vst.msk [vmem:[%s173 + $0x120] sm:$0xff] %vm4087, %v3648
      %4125 = vst.msk [vmem:[%s173 + $0x128] sm:$0xff] %vm4087, %v3650
      %4126 = vst.msk [vmem:[%s173 + $0x130] sm:$0xff] %vm4087, %v3652
      %4127 = vst.msk [vmem:[%s173 + $0x138] sm:$0xff] %vm4087, %v3654
      %4128 = vst.msk [vmem:[%s173 + $0x140] sm:$0xff] %vm4087, %v3656
      %4129 = vst.msk [vmem:[%s173 + $0x148] sm:$0xff] %vm4087, %v3658
      %4130 = vst.msk [vmem:[%s173 + $0x150] sm:$0xff] %vm4087, %v3660
      %4131 = vst.msk [vmem:[%s173 + $0x158] sm:$0xff] %vm4087, %v3662
      %4132 = vst.msk [vmem:[%s173 + $0x160] sm:$0xff] %vm4087, %v3664
      %4133 = vst.msk [vmem:[%s173 + $0x168] sm:$0xff] %vm4087, %v3666
      %4134 = vst.msk [vmem:[%s173 + $0x170] sm:$0xff] %vm4087, %v3668
      %4135 = vst.msk [vmem:[%s173 + $0x178] sm:$0xff] %vm4087, %v3670
      %4136 = vst.msk [vmem:[%s173 + $0x180] sm:$0xff] %vm4087, %v3672
      %4137 = vst.msk [vmem:[%s173 + $0x188] sm:$0xff] %vm4087, %v3674
      %4138 = vst.msk [vmem:[%s173 + $0x190] sm:$0xff] %vm4087, %v3676
      %4139 = vst.msk [vmem:[%s173 + $0x198] sm:$0xff] %vm4087, %v3678
      %4140 = vst.msk [vmem:[%s173 + $0x1a0] sm:$0xff] %vm4087, %v3680
      %4141 = vst.msk [vmem:[%s173 + $0x1a8] sm:$0xff] %vm4087, %v3682
      %4142 = vst.msk [vmem:[%s173 + $0x1b0] sm:$0xff] %vm4087, %v3684
      %4143 = vst.msk [vmem:[%s173 + $0x1b8] sm:$0xff] %vm4087, %v3686
      %4144 = vst.msk [vmem:[%s173 + $0x1c0] sm:$0xff] %vm4087, %v3688
      %4145 = vst.msk [vmem:[%s173 + $0x1c8] sm:$0xff] %vm4087, %v3690
      %4146 = vst.msk [vmem:[%s173 + $0x1d0] sm:$0xff] %vm4087, %v3692
      %4147 = vst.msk [vmem:[%s173 + $0x1d8] sm:$0xff] %vm4087, %v3694
      %4148 = vst.msk [vmem:[%s173 + $0x1e0] sm:$0xff] %vm4087, %v3696
      %4149 = vst.msk [vmem:[%s173 + $0x1e8] sm:$0xff] %vm4087, %v3698
      %4150 = vst.msk [vmem:[%s173 + $0x1f0] sm:$0xff] %vm4087, %v3700
      %4151 = vst.msk [vmem:[%s173 + $0x1f8] sm:$0xff] %vm4087, %v3702
      %4152 = vst.msk [vmem:[%s173 + $0x200] sm:$0xff] %vm4087, %v3704
      %4153 = vst.msk [vmem:[%s173 + $0x208] sm:$0xff] %vm4087, %v3706
      %4154 = vst.msk [vmem:[%s173 + $0x210] sm:$0xff] %vm4087, %v3708
      %4155 = vst.msk [vmem:[%s173 + $0x218] sm:$0xff] %vm4087, %v3710
      %4156 = vst.msk [vmem:[%s173 + $0x220] sm:$0xff] %vm4087, %v3712
      %4157 = vst.msk [vmem:[%s173 + $0x228] sm:$0xff] %vm4087, %v3714
      %4158 = vst.msk [vmem:[%s173 + $0x230] sm:$0xff] %vm4087, %v3716
      %4159 = vst.msk [vmem:[%s173 + $0x238] sm:$0xff] %vm4087, %v3718
      %4160 = vst.msk [vmem:[%s173 + $0x240] sm:$0xff] %vm4087, %v3720
      %4161 = vst.msk [vmem:[%s173 + $0x248] sm:$0xff] %vm4087, %v3722
      %4162 = vst.msk [vmem:[%s173 + $0x250] sm:$0xff] %vm4087, %v3724
      %4163 = vst.msk [vmem:[%s173 + $0x258] sm:$0xff] %vm4087, %v3726
      %4164 = vst.msk [vmem:[%s173 + $0x260] sm:$0xff] %vm4087, %v3728
      %4165 = vst.msk [vmem:[%s173 + $0x268] sm:$0xff] %vm4087, %v3730
      %4166 = vst.msk [vmem:[%s173 + $0x270] sm:$0xff] %vm4087, %v3732
      %4167 = vst.msk [vmem:[%s173 + $0x278] sm:$0xff] %vm4087, %v3734
      %4168 = vst.msk [vmem:[%s173 + $0x280] sm:$0xff] %vm4087, %v3736
      %4169 = vst.msk [vmem:[%s173 + $0x288] sm:$0xff] %vm4087, %v3738
      %4170 = vst.msk [vmem:[%s173 + $0x290] sm:$0xff] %vm4087, %v3740
      %4171 = vst.msk [vmem:[%s173 + $0x298] sm:$0xff] %vm4087, %v3742
      %4172 = vst.msk [vmem:[%s173 + $0x2a0] sm:$0xff] %vm4087, %v3744
      %4173 = vst.msk [vmem:[%s173 + $0x2a8] sm:$0xff] %vm4087, %v3746
      %4174 = vst.msk [vmem:[%s173 + $0x2b0] sm:$0xff] %vm4087, %v3748
      %4175 = vst.msk [vmem:[%s173 + $0x2b8] sm:$0xff] %vm4087, %v3750
      %4176 = vst.msk [vmem:[%s173 + $0x2c0] sm:$0xff] %vm4087, %v3752
      %4177 = vst.msk [vmem:[%s173 + $0x2c8] sm:$0xff] %vm4087, %v3754
      %4178 = vst.msk [vmem:[%s173 + $0x2d0] sm:$0xff] %vm4087, %v3756
      %4179 = vst.msk [vmem:[%s173 + $0x2d8] sm:$0xff] %vm4087, %v3758
      %4180 = vst.msk [vmem:[%s173 + $0x2e0] sm:$0xff] %vm4087, %v3760
      %4181 = vst.msk [vmem:[%s173 + $0x2e8] sm:$0xff] %vm4087, %v3762
      %4182 = vst.msk [vmem:[%s173 + $0x2f0] sm:$0xff] %vm4087, %v3764
      %4183 = vst.msk [vmem:[%s173 + $0x2f8] sm:$0xff] %vm4087, %v3766
      %4184 = vst.msk [vmem:[%s173 + $0x300] sm:$0xff] %vm4087, %v3768
      %4185 = vst.msk [vmem:[%s173 + $0x308] sm:$0xff] %vm4087, %v3770
      %4186 = vst.msk [vmem:[%s173 + $0x310] sm:$0xff] %vm4087, %v3772
      %4187 = vst.msk [vmem:[%s173 + $0x318] sm:$0xff] %vm4087, %v3774
      %4188 = vst.msk [vmem:[%s173 + $0x320] sm:$0xff] %vm4087, %v3776
      %4189 = vst.msk [vmem:[%s173 + $0x328] sm:$0xff] %vm4087, %v3778
      %4190 = vst.msk [vmem:[%s173 + $0x330] sm:$0xff] %vm4087, %v3780
      %4191 = vst.msk [vmem:[%s173 + $0x338] sm:$0xff] %vm4087, %v3782
      %4192 = vst.msk [vmem:[%s173 + $0x340] sm:$0xff] %vm4087, %v3784
      %4193 = vst.msk [vmem:[%s173 + $0x348] sm:$0xff] %vm4087, %v3786
      %4194 = vst.msk [vmem:[%s173 + $0x350] sm:$0xff] %vm4087, %v3788
      %4195 = vst.msk [vmem:[%s173 + $0x358] sm:$0xff] %vm4087, %v3790
      %4196 = vst.msk [vmem:[%s173 + $0x360] sm:$0xff] %vm4087, %v3792
      %4197 = vst.msk [vmem:[%s173 + $0x368] sm:$0xff] %vm4087, %v3794
      %4198 = vst.msk [vmem:[%s173 + $0x370] sm:$0xff] %vm4087, %v3796
      %4199 = vst.msk [vmem:[%s173 + $0x378] sm:$0xff] %vm4087, %v3798
      %4200 = vst.msk [vmem:[%s173 + $0x380] sm:$0xff] %vm4087, %v3800
      %4201 = vst.msk [vmem:[%s173 + $0x388] sm:$0xff] %vm4087, %v3802
      %4202 = vst.msk [vmem:[%s173 + $0x390] sm:$0xff] %vm4087, %v3804
      %4203 = vst.msk [vmem:[%s173 + $0x398] sm:$0xff] %vm4087, %v3806
      %4204 = vst.msk [vmem:[%s173 + $0x3a0] sm:$0xff] %vm4087, %v3808
      %4205 = vst.msk [vmem:[%s173 + $0x3a8] sm:$0xff] %vm4087, %v3810
      %4206 = vst.msk [vmem:[%s173 + $0x3b0] sm:$0xff] %vm4087, %v3812
      %4207 = vst.msk [vmem:[%s173 + $0x3b8] sm:$0xff] %vm4087, %v3814
      %4208 = vst.msk [vmem:[%s173 + $0x3c0] sm:$0xff] %vm4087, %v3816
      %4209 = vst.msk [vmem:[%s173 + $0x3c8] sm:$0xff] %vm4087, %v3818
      %4210 = vst.msk [vmem:[%s173 + $0x3d0] sm:$0xff] %vm4087, %v3820
      %4211 = vst.msk [vmem:[%s173 + $0x3d8] sm:$0xff] %vm4087, %v3822
      %4212 = vst.msk [vmem:[%s173 + $0x3e0] sm:$0xff] %vm4087, %v3824
      %4213 = vst.msk [vmem:[%s173 + $0x3e8] sm:$0xff] %vm4087, %v3826
      %4214 = vst.msk [vmem:[%s173 + $0x3f0] sm:$0xff] %vm4087, %v3828
      %4215 = vst.msk [vmem:[%s173 + $0x3f8] sm:$0xff] %vm4087, %v3830
      %4216 = vst.msk [vmem:[%s173 + $0x400] sm:$0xff] %vm4087, %v3832
      %4217 = vst.msk [vmem:[%s173 + $0x408] sm:$0xff] %vm4087, %v3834
      %4218 = vst.msk [vmem:[%s173 + $0x410] sm:$0xff] %vm4087, %v3836
      %4219 = vst.msk [vmem:[%s173 + $0x418] sm:$0xff] %vm4087, %v3838
      %4220 = vst.msk [vmem:[%s173 + $0x420] sm:$0xff] %vm4087, %v3840
      %4221 = vst.msk [vmem:[%s173 + $0x428] sm:$0xff] %vm4087, %v3842
      %4222 = vst.msk [vmem:[%s173 + $0x430] sm:$0xff] %vm4087, %v3844
      %4223 = vst.msk [vmem:[%s173 + $0x438] sm:$0xff] %vm4087, %v3846
      %4224 = vst.msk [vmem:[%s173 + $0x440] sm:$0xff] %vm4087, %v3848
      %4225 = vst.msk [vmem:[%s173 + $0x448] sm:$0xff] %vm4087, %v3850
      %4226 = vst.msk [vmem:[%s173 + $0x450] sm:$0xff] %vm4087, %v3852
      %4227 = vst.msk [vmem:[%s173 + $0x458] sm:$0xff] %vm4087, %v3854
      %4228 = vst.msk [vmem:[%s173 + $0x460] sm:$0xff] %vm4087, %v3856
      %4229 = vst.msk [vmem:[%s173 + $0x468] sm:$0xff] %vm4087, %v3858
      %4230 = vst.msk [vmem:[%s173 + $0x470] sm:$0xff] %vm4087, %v3860
      %4231 = vst.msk [vmem:[%s173 + $0x478] sm:$0xff] %vm4087, %v3862
      %4232 = vst.msk [vmem:[%s173 + $0x480] sm:$0xff] %vm4087, %v3864
      %4233 = vst.msk [vmem:[%s173 + $0x488] sm:$0xff] %vm4087, %v3866
      %4234 = vst.msk [vmem:[%s173 + $0x490] sm:$0xff] %vm4087, %v3868
      %4235 = vst.msk [vmem:[%s173 + $0x498] sm:$0xff] %vm4087, %v3870
      %4236 = vst.msk [vmem:[%s173 + $0x4a0] sm:$0xff] %vm4087, %v3872
      %4237 = vst.msk [vmem:[%s173 + $0x4a8] sm:$0xff] %vm4087, %v3874
      %4238 = vst.msk [vmem:[%s173 + $0x4b0] sm:$0xff] %vm4087, %v3876
      %4239 = vst.msk [vmem:[%s173 + $0x4b8] sm:$0xff] %vm4087, %v3878
      %4240 = vst.msk [vmem:[%s173 + $0x4c0] sm:$0xff] %vm4087, %v3880
      %4241 = vst.msk [vmem:[%s173 + $0x4c8] sm:$0xff] %vm4087, %v3882
      %4242 = vst.msk [vmem:[%s173 + $0x4d0] sm:$0xff] %vm4087, %v3884
      %4243 = vst.msk [vmem:[%s173 + $0x4d8] sm:$0xff] %vm4087, %v3886
      %4244 = vst.msk [vmem:[%s173 + $0x4e0] sm:$0xff] %vm4087, %v3888
      %4245 = vst.msk [vmem:[%s173 + $0x4e8] sm:$0xff] %vm4087, %v3890
      %4246 = vst.msk [vmem:[%s173 + $0x4f0] sm:$0xff] %vm4087, %v3892
      %4247 = vst.msk [vmem:[%s173 + $0x4f8] sm:$0xff] %vm4087, %v3894
      %4248 = vst.msk [vmem:[%s173 + $0x500] sm:$0xff] %vm4087, %v3896
      %4249 = vst.msk [vmem:[%s173 + $0x508] sm:$0xff] %vm4087, %v3898
      %4250 = vst.msk [vmem:[%s173 + $0x510] sm:$0xff] %vm4087, %v3900
      %4251 = vst.msk [vmem:[%s173 + $0x518] sm:$0xff] %vm4087, %v3902
      %4252 = vst.msk [vmem:[%s173 + $0x520] sm:$0xff] %vm4087, %v3904
      %4253 = vst.msk [vmem:[%s173 + $0x528] sm:$0xff] %vm4087, %v3906
      %4254 = vst.msk [vmem:[%s173 + $0x530] sm:$0xff] %vm4087, %v3908
      %4255 = vst.msk [vmem:[%s173 + $0x538] sm:$0xff] %vm4087, %v3910
      %4256 = vst.msk [vmem:[%s173 + $0x540] sm:$0xff] %vm4087, %v3912
      %4257 = vst.msk [vmem:[%s173 + $0x548] sm:$0xff] %vm4087, %v3914
      %4258 = vst.msk [vmem:[%s173 + $0x550] sm:$0xff] %vm4087, %v3916
      %4259 = vst.msk [vmem:[%s173 + $0x558] sm:$0xff] %vm4087, %v3918
      %4260 = vst.msk [vmem:[%s173 + $0x560] sm:$0xff] %vm4087, %v3920
      %4261 = vst.msk [vmem:[%s173 + $0x568] sm:$0xff] %vm4087, %v3922
      %4262 = vst.msk [vmem:[%s173 + $0x570] sm:$0xff] %vm4087, %v3924
      %4263 = vst.msk [vmem:[%s173 + $0x578] sm:$0xff] %vm4087, %v3926
      %4264 = vst.msk [vmem:[%s173 + $0x580] sm:$0xff] %vm4087, %v3928
      %4265 = vst.msk [vmem:[%s173 + $0x588] sm:$0xff] %vm4087, %v3930
      %4266 = vst.msk [vmem:[%s173 + $0x590] sm:$0xff] %vm4087, %v3932
      %4267 = vst.msk [vmem:[%s173 + $0x598] sm:$0xff] %vm4087, %v3934
      %4268 = vst.msk [vmem:[%s173 + $0x5a0] sm:$0xff] %vm4087, %v3936
      %4269 = vst.msk [vmem:[%s173 + $0x5a8] sm:$0xff] %vm4087, %v3938
      %4270 = vst.msk [vmem:[%s173 + $0x5b0] sm:$0xff] %vm4087, %v3940
      %4271 = vst.msk [vmem:[%s173 + $0x5b8] sm:$0xff] %vm4087, %v3942
      %4272 = vst.msk [vmem:[%s173 + $0x5c0] sm:$0xff] %vm4087, %v3944
      %4273 = vst.msk [vmem:[%s173 + $0x5c8] sm:$0xff] %vm4087, %v3946
      %4274 = vst.msk [vmem:[%s173 + $0x5d0] sm:$0xff] %vm4087, %v3948
      %4275 = vst.msk [vmem:[%s173 + $0x5d8] sm:$0xff] %vm4087, %v3950
      %4276 = vst.msk [vmem:[%s173 + $0x5e0] sm:$0xff] %vm4087, %v3952
      %4277 = vst.msk [vmem:[%s173 + $0x5e8] sm:$0xff] %vm4087, %v3954
      %4278 = vst.msk [vmem:[%s173 + $0x5f0] sm:$0xff] %vm4087, %v3956
      %4279 = vst.msk [vmem:[%s173 + $0x5f8] sm:$0xff] %vm4087, %v3958
      %4280 = vst.msk [vmem:[%s173 + $0x600] sm:$0xff] %vm4087, %v3960
      %4281 = vst.msk [vmem:[%s173 + $0x608] sm:$0xff] %vm4087, %v3962
      %4282 = vst.msk [vmem:[%s173 + $0x610] sm:$0xff] %vm4087, %v3964
      %4283 = vst.msk [vmem:[%s173 + $0x618] sm:$0xff] %vm4087, %v3966
      %4284 = vst.msk [vmem:[%s173 + $0x620] sm:$0xff] %vm4087, %v3968
      %4285 = vst.msk [vmem:[%s173 + $0x628] sm:$0xff] %vm4087, %v3970
      %4286 = vst.msk [vmem:[%s173 + $0x630] sm:$0xff] %vm4087, %v3972
      %4287 = vst.msk [vmem:[%s173 + $0x638] sm:$0xff] %vm4087, %v3974
      %4288 = vst.msk [vmem:[%s173 + $0x640] sm:$0xff] %vm4087, %v3976
      %4289 = vst.msk [vmem:[%s173 + $0x648] sm:$0xff] %vm4087, %v3978
      %4290 = vst.msk [vmem:[%s173 + $0x650] sm:$0xff] %vm4087, %v3980
      %4291 = vst.msk [vmem:[%s173 + $0x658] sm:$0xff] %vm4087, %v3982
      %4292 = vst.msk [vmem:[%s173 + $0x660] sm:$0xff] %vm4087, %v3984
      %4293 = vst.msk [vmem:[%s173 + $0x668] sm:$0xff] %vm4087, %v3986
      %4294 = vst.msk [vmem:[%s173 + $0x670] sm:$0xff] %vm4087, %v3988
      %4295 = vst.msk [vmem:[%s173 + $0x678] sm:$0xff] %vm4087, %v3990
      %4296 = vst.msk [vmem:[%s173 + $0x680] sm:$0xff] %vm4087, %v3992
      %4297 = vst.msk [vmem:[%s173 + $0x688] sm:$0xff] %vm4087, %v3994
      %4298 = vst.msk [vmem:[%s173 + $0x690] sm:$0xff] %vm4087, %v3996
      %4299 = vst.msk [vmem:[%s173 + $0x698] sm:$0xff] %vm4087, %v3998
      %4300 = vst.msk [vmem:[%s173 + $0x6a0] sm:$0xff] %vm4087, %v4000
      %4301 = vst.msk [vmem:[%s173 + $0x6a8] sm:$0xff] %vm4087, %v4002
      %4302 = vst.msk [vmem:[%s173 + $0x6b0] sm:$0xff] %vm4087, %v4004
      %4303 = vst.msk [vmem:[%s173 + $0x6b8] sm:$0xff] %vm4087, %v4006
      %4304 = vst.msk [vmem:[%s173 + $0x6c0] sm:$0xff] %vm4087, %v4008
      %4305 = vst.msk [vmem:[%s173 + $0x6c8] sm:$0xff] %vm4087, %v4010
      %4306 = vst.msk [vmem:[%s173 + $0x6d0] sm:$0xff] %vm4087, %v4012
      %4307 = vst.msk [vmem:[%s173 + $0x6d8] sm:$0xff] %vm4087, %v4014
      %4308 = vst.msk [vmem:[%s173 + $0x6e0] sm:$0xff] %vm4087, %v4016
      %4309 = vst.msk [vmem:[%s173 + $0x6e8] sm:$0xff] %vm4087, %v4018
      %4310 = vst.msk [vmem:[%s173 + $0x6f0] sm:$0xff] %vm4087, %v4020
      %4311 = vst.msk [vmem:[%s173 + $0x6f8] sm:$0xff] %vm4087, %v4022
      %4312 = vst.msk [vmem:[%s173 + $0x700] sm:$0xff] %vm4087, %v4024
      %4313 = vst.msk [vmem:[%s173 + $0x708] sm:$0xff] %vm4087, %v4026
      %4314 = vst.msk [vmem:[%s173 + $0x710] sm:$0xff] %vm4087, %v4028
      %4315 = vst.msk [vmem:[%s173 + $0x718] sm:$0xff] %vm4087, %v4030
      %4316 = vst.msk [vmem:[%s173 + $0x720] sm:$0xff] %vm4087, %v4032
      %4317 = vst.msk [vmem:[%s173 + $0x728] sm:$0xff] %vm4087, %v4034
      %4318 = vst.msk [vmem:[%s173 + $0x730] sm:$0xff] %vm4087, %v4036
      %4319 = vst.msk [vmem:[%s173 + $0x738] sm:$0xff] %vm4087, %v4038
      %4320 = vst.msk [vmem:[%s173 + $0x740] sm:$0xff] %vm4087, %v4040
      %4321 = vst.msk [vmem:[%s173 + $0x748] sm:$0xff] %vm4087, %v4042
      %4322 = vst.msk [vmem:[%s173 + $0x750] sm:$0xff] %vm4087, %v4044
      %4323 = vst.msk [vmem:[%s173 + $0x758] sm:$0xff] %vm4087, %v4046
      %4324 = vst.msk [vmem:[%s173 + $0x760] sm:$0xff] %vm4087, %v4048
      %4325 = vst.msk [vmem:[%s173 + $0x768] sm:$0xff] %vm4087, %v4050
      %4326 = vst.msk [vmem:[%s173 + $0x770] sm:$0xff] %vm4087, %v4052
      %4327 = vst.msk [vmem:[%s173 + $0x778] sm:$0xff] %vm4087, %v4054
      %4328 = vst.msk [vmem:[%s173 + $0x780] sm:$0xff] %vm4087, %v4056
      %4329 = vst.msk [vmem:[%s173 + $0x788] sm:$0xff] %vm4087, %v4058
      %4330 = vst.msk [vmem:[%s173 + $0x790] sm:$0xff] %vm4087, %v4060
      %4331 = vst.msk [vmem:[%s173 + $0x798] sm:$0xff] %vm4087, %v4062
      %4332 = vst.msk [vmem:[%s173 + $0x7a0] sm:$0xff] %vm4087, %v4064
      %4333 = vst.msk [vmem:[%s173 + $0x7a8] sm:$0xff] %vm4087, %v4066
      %4334 = vst.msk [vmem:[%s173 + $0x7b0] sm:$0xff] %vm4087, %v4068
      %4335 = vst.msk [vmem:[%s173 + $0x7b8] sm:$0xff] %vm4087, %v4070
      %4336 = vst.msk [vmem:[%s173 + $0x7c0] sm:$0xff] %vm4087, %v4072
      %4337 = vst.msk [vmem:[%s173 + $0x7c8] sm:$0xff] %vm4087, %v4074
      %4338 = vst.msk [vmem:[%s173 + $0x7d0] sm:$0xff] %vm4087, %v4076
      %4339 = vst.msk [vmem:[%s173 + $0x7d8] sm:$0xff] %vm4087, %v4078
      %4340 = vst.msk [vmem:[%s173 + $0x7e0] sm:$0xff] %vm4087, %v4080
      %4341 = vst.msk [vmem:[%s173 + $0x7e8] sm:$0xff] %vm4087, %v4082
      %4342 = vst.msk [vmem:[%s173 + $0x7f0] sm:$0xff] %vm4087, %v4084
      %4343 = vst.msk [vmem:[%s173 + $0x7f8] sm:$0xff] %vm4087, %v4086
      %s4344 = smul.u32 256, %s15
      %p4345 = scmp.lt.s32.totalorder %s4344, 1023
      %s4346 = scalar_select %p4345, %s4344, 1023
      %s4347 = smul.addr %s4346, 8
      %s4348 = scalar_lea.vmem %s3, %s4347
      // Predicated region
      $region33: #{tpu_custom_call.1} parent=31 // pred_check
        %p4349 = pneg %p101
      $region34: #{tpu_custom_call.1} parent=31 // pred_check_branch
        %4351 = sbr.rel (%p4349) target = $region36
      $region35: #{tpu_custom_call.1} parent=31 // pred_region
        %s4352 = smul.u32 256, %s15
      $region36: #{tpu_custom_call.1} parent=31 // pred_fallthru
        _
    $region32: #{tpu_custom_call.1} parent=5 // pred_fallthru
      _
    %p4353 = scmp.le.s32.totalorder 2, %s10
    // Predicated region
    $region37: #{tpu_custom_call.1} parent=5 // pred_check
      %p4354 = pneg %p4353
    $region38: #{tpu_custom_call.1} parent=5 // pred_check_branch
      %4356 = sbr.rel (%p4354) target = $region40
    $region39: #{tpu_custom_call.1} parent=5 // pred_region
      %s4357 = ssub.s32 %s10, 2
      // Predicated region
      $region41: #{tpu_custom_call.1} parent=39 // pred_check
        %p4358 = pneg %p107
      $region42: #{tpu_custom_call.1} parent=39 // pred_check_branch
        %4360 = sbr.rel (%p4358) target = $region44
      $region43: #{tpu_custom_call.1} parent=39 // pred_region
        %s4361 = smul.u32 256, %s16
        %p4362 = scmp.lt.s32.totalorder %s4361, 1023
        %s4363 = scalar_select %p4362, %s4361, 1023
        %s4364 = smul.addr %s4363, 8
        %s4365 = scalar_lea.vmem %s3, %s4364
      $region44: #{tpu_custom_call.1} parent=39 // pred_fallthru
        _
    $region40: #{tpu_custom_call.1} parent=5 // pred_fallthru
      _
  $region6: #{tpu_custom_call.1} parent=0 // loop_footer
    %s14 = sadd.s32 1, %s10
  $region7: #{tpu_custom_call.1} parent=0 // loop_footer_branch
    %9 = sbr.rel target = $region3
  $region8: #{tpu_custom_call.1} parent=0 // loop_exit
    _

</llo_original>
